<compile_context>
chip_gen: v5e
topology: v5e:2x2
jax: 0.10.0
libtpu: 0.0.40
codegen_flags: <defaults>
</compile_context>

<pallas_src>
import jax
import jax.numpy as jnp
from jax.experimental import pallas as pl
from jax.experimental.pallas import tpu as pltpu

# ---- problem sizes (small, consistent with the module) ----------------------
N_CLASSES = 16                     # es feature dim (decoder2 input)
EC_DIM = 16                        # ec feature dim
LATENT_DIM = EC_DIM + N_CLASSES    # decoder input = cat((ec, es), -1)
H1, H2 = 512, 1024                 # hidden widths fixed by the module
DATA_SIZE = 256                    # output width
BATCH = 16                         # demo batch; larger batches amortize the
                                   # ~3 MiB weight DMA and are handled as-is.


def _mish_kernel(x):
    # Mish(x) = x * tanh(softplus(x)) = x * ((1+e^x)^2 - 1) / ((1+e^x)^2 + 1)
    # One exp + one EUP approx reciprocal; guard large x where mish(x) == x to
    # 1e-8 relative (also keeps the clamped exp / square well inside f32).
    e = jnp.exp(jnp.minimum(x, 20.0))
    t = (1.0 + e) * (1.0 + e)
    y = x * (t - 1.0) * pl.reciprocal(t + 1.0, approx=True)
    return jnp.where(x > 20.0, x, y)


def _mish_ref(x):
    # Exact Mish for the pure-JAX reference (matches the PyTorch definition).
    return x * jnp.tanh(jnp.logaddexp(x, 0.0))


def decoder_kernel(ec_ref, es_ref, w1a_ref, w1b_ref, b1_ref,
                   w2_ref, b2_ref, v2_ref, c2_ref,
                   w3_ref, v3_ref, b3_ref, out_ref):
    ec = ec_ref[...].astype(jnp.bfloat16)            # (B, 16)
    es = es_ref[...].astype(jnp.bfloat16)            # (B, 16)

    # Fused first layers of both branches: one (B, 2*H1) pre-activation,
    # assembled from two tiny matmuls (no concat needed anywhere).
    pre = (jnp.dot(ec, w1a_ref[...], preferred_element_type=jnp.float32)
           + jnp.dot(es, w1b_ref[...], preferred_element_type=jnp.float32)
           + b1_ref[...])
    act = _mish_kernel(pre)                          # single Mish pass, (B, 2*H1)
    h = act[:, :H1].astype(jnp.bfloat16)             # decoder branch hidden
    g = act[:, H1:].astype(jnp.bfloat16)             # decoder2 branch hidden

    # Second layers stay separate (block-diagonal merge would add 2 MiB of
    # zero-weight HBM traffic to a DMA-bound kernel).
    h2 = _mish_kernel(jnp.dot(h, w2_ref[...], preferred_element_type=jnp.float32)
                      + b2_ref[...])
    g2 = _mish_kernel(jnp.dot(g, v2_ref[...], preferred_element_type=jnp.float32)
                      + c2_ref[...])

    # Final layers: two (B, H2) @ (H2, DATA_SIZE) matmuls summed, with the
    # pre-summed bias (b3 + c3). ReLU applies after the branch sum.
    d = (jnp.dot(h2.astype(jnp.bfloat16), w3_ref[...],
                 preferred_element_type=jnp.float32)
         + jnp.dot(g2.astype(jnp.bfloat16), v3_ref[...],
                   preferred_element_type=jnp.float32)
         + b3_ref[...])
    out_ref[...] = jnp.maximum(d, 0.0)


def prepare_decoder_params(params):
    """One-time weight transform. Call once and cache the result alongside the
    model parameters; `decoder_forward` consumes the prepared tuple directly so
    the per-call hot path does no weight concats/adds."""
    (w1, b1, w2, b2, w3, b3, v1, c1, v2, c2, v3, c3) = params
    zeros = jnp.zeros((EC_DIM, H1), jnp.bfloat16)
    # cat(ec, es) @ w1 == ec @ w1[:16] + es @ w1[16:], so fold both branches'
    # first layers into two (16, 2*H1) weights (one per input):
    w1a = jnp.concatenate([w1[:EC_DIM], zeros], axis=1)            # (16, 2*H1)
    w1b = jnp.concatenate([w1[EC_DIM:], v1], axis=1)               # (16, 2*H1)
    b1m = jnp.concatenate([b1, c1], axis=1).astype(jnp.float32)    # (1, 2*H1)
    b3m = (b3 + c3).astype(jnp.float32)                            # (1, DATA_SIZE)
    return (w1a, w1b, b1m,
            w2, b2.astype(jnp.float32),
            v2, c2.astype(jnp.float32),
            w3, v3, b3m)


@jax.jit
def decoder_forward(ec, es, prepared):
    w1a, w1b, b1, w2, b2, v2, c2, w3, v3, b3 = prepared
    B = ec.shape[0]

    flops = int(2 * B * (EC_DIM * 2 * H1 + N_CLASSES * 2 * H1
                         + 2 * H1 * H2 + 2 * H2 * DATA_SIZE))
    transcendentals = int(2 * B * (2 * H1 + 2 * H2))   # exp + rcp per Mish elem
    bytes_accessed = int(
        (ec.size + es.size) * 4
        + (w1a.size + w1b.size + w2.size + v2.size + w3.size + v3.size) * 2
        + (b1.size + b2.size + c2.size + b3.size) * 4
        + B * DATA_SIZE * 4)

    vmem_spec = pl.BlockSpec(memory_space=pltpu.MemorySpace.VMEM)

    return pl.pallas_call(
        decoder_kernel,
        out_shape=jax.ShapeDtypeStruct((B, DATA_SIZE), jnp.float32),
        in_specs=[vmem_spec] * 12,
        out_specs=vmem_spec,
        cost_estimate=pl.CostEstimate(
            flops=flops,
            transcendentals=transcendentals,
            bytes_accessed=bytes_accessed),
    )(ec, es, w1a, w1b, b1, w2, b2, v2, c2, w3, v3, b3)


def init_params(key):
    """Deterministic synthetic parameters. Weights stored as (in, out) bf16,
    biases as (1, out) f32."""
    ks = jax.random.split(key, 12)

    def lin(kw, kb, din, dout):
        w = (jax.random.normal(kw, (din, dout), jnp.float32)
             * (1.0 / jnp.sqrt(din))).astype(jnp.bfloat16)
        b = jax.random.normal(kb, (1, dout), jnp.float32) * 0.01
        return w, b

    w1, b1 = lin(ks[0], ks[1], LATENT_DIM, H1)
    w2, b2 = lin(ks[2], ks[3], H1, H2)
    w3, b3 = lin(ks[4], ks[5], H2, DATA_SIZE)
    v1, c1 = lin(ks[6], ks[7], N_CLASSES, H1)
    v2, c2 = lin(ks[8], ks[9], H1, H2)
    v3, c3 = lin(ks[10], ks[11], H2, DATA_SIZE)
    return (w1, b1, w2, b2, w3, b3, v1, c1, v2, c2, v3, c3)


def decoder_reference(ec, es, params):
    """Pure-JAX reference mirroring the PyTorch forward (two separate branches,
    original per-layer weights, exact Mish), with the same bf16-operand /
    f32-accumulate matmul numerics as the kernel."""
    (w1, b1, w2, b2, w3, b3, v1, c1, v2, c2, v3, c3) = params

    def dot(x, w):
        return jnp.dot(x.astype(jnp.bfloat16), w,
                       preferred_element_type=jnp.float32)

    cat = jnp.concatenate([ec, es], axis=-1)
    h = _mish_ref(dot(cat, w1) + b1)
    h = _mish_ref(dot(h, w2) + b2)
    d1 = dot(h, w3) + b3
    g = _mish_ref(dot(es, v1) + c1)
    g = _mish_ref(dot(g, v2) + c2)
    d2 = dot(g, v3) + c3
    return jnp.maximum(d1 + d2, 0.0)


if __name__ == "__main__":
    key = jax.random.PRNGKey(0)
    k_ec, k_es, k_p = jax.random.split(key, 3)
    ec = jax.random.normal(k_ec, (BATCH, EC_DIM), jnp.float32)
    es = jax.random.normal(k_es, (BATCH, N_CLASSES), jnp.float32)
    params = init_params(k_p)

    # One-time merge, cached; the forward path below is just the pallas_call.
    prepared = jax.block_until_ready(prepare_decoder_params(params))

    out = jax.block_until_ready(decoder_forward(ec, es, prepared))
    ref = decoder_reference(ec, es, params)

    assert out.shape == (BATCH, DATA_SIZE)
    # Tolerance covers bf16 matmul operands plus the EUP approx-reciprocal Mish.
    assert jnp.allclose(out, ref, atol=1e-2, rtol=1e-2), "mismatch vs reference"
    print("KERNEL_OK")
</pallas_src>

<mosaic_0001>
module attributes {stable_mosaic.version = 11 : i64} {
  func.func @decoder_kernel(%arg0: memref<16x16xf32, #tpu.memory_space<vmem>>, %arg1: memref<16x16xf32, #tpu.memory_space<vmem>>, %arg2: memref<16x1024xbf16, #tpu.memory_space<vmem>>, %arg3: memref<16x1024xbf16, #tpu.memory_space<vmem>>, %arg4: memref<1x1024xf32, #tpu.memory_space<vmem>>, %arg5: memref<512x1024xbf16, #tpu.memory_space<vmem>>, %arg6: memref<1x1024xf32, #tpu.memory_space<vmem>>, %arg7: memref<512x1024xbf16, #tpu.memory_space<vmem>>, %arg8: memref<1x1024xf32, #tpu.memory_space<vmem>>, %arg9: memref<1024x256xbf16, #tpu.memory_space<vmem>>, %arg10: memref<1024x256xbf16, #tpu.memory_space<vmem>>, %arg11: memref<1x256xf32, #tpu.memory_space<vmem>>, %arg12: memref<16x256xf32, #tpu.memory_space<vmem>>) attributes {dimension_semantics = [], scalar_prefetch = 0 : i64, scratch_operands = 0 : i64, tpu.core_type = #tpu.core_type<tc>} {
    %c0 = arith.constant 0 : index
    %c0_0 = arith.constant 0 : index
    %0 = vector.load %arg0[%c0, %c0_0] : memref<16x16xf32, #tpu.memory_space<vmem>>, vector<16x16xf32>
    %1 = arith.truncf %0 : vector<16x16xf32> to vector<16x16xbf16>
    %c0_1 = arith.constant 0 : index
    %c0_2 = arith.constant 0 : index
    %2 = vector.load %arg1[%c0_1, %c0_2] : memref<16x16xf32, #tpu.memory_space<vmem>>, vector<16x16xf32>
    %3 = arith.truncf %2 : vector<16x16xf32> to vector<16x16xbf16>
    %c0_3 = arith.constant 0 : index
    %c0_4 = arith.constant 0 : index
    %4 = vector.load %arg2[%c0_3, %c0_4] : memref<16x1024xbf16, #tpu.memory_space<vmem>>, vector<16x1024xbf16>
    %cst = arith.constant dense<0.000000e+00> : vector<16x1024xf32>
    %5 = tpu.matmul %1, %4, %cst {dimension_numbers = #tpu.dot_dimension_numbers<[1], [0], [0], [1], [0, 0, 1, 1], [], []>} : vector<16x16xbf16>, vector<16x1024xbf16>, vector<16x1024xf32> -> vector<16x1024xf32>
    %c0_5 = arith.constant 0 : index
    %c0_6 = arith.constant 0 : index
    %6 = vector.load %arg3[%c0_5, %c0_6] : memref<16x1024xbf16, #tpu.memory_space<vmem>>, vector<16x1024xbf16>
    %cst_7 = arith.constant dense<0.000000e+00> : vector<16x1024xf32>
    %7 = tpu.matmul %3, %6, %cst_7 {dimension_numbers = #tpu.dot_dimension_numbers<[1], [0], [0], [1], [0, 0, 1, 1], [], []>} : vector<16x16xbf16>, vector<16x1024xbf16>, vector<16x1024xf32> -> vector<16x1024xf32>
    %8 = arith.addf %5, %7 : vector<16x1024xf32>
    %c0_8 = arith.constant 0 : index
    %c0_9 = arith.constant 0 : index
    %9 = vector.load %arg4[%c0_8, %c0_9] : memref<1x1024xf32, #tpu.memory_space<vmem>>, vector<1x1024xf32>
    %10 = vector.broadcast %9 : vector<1x1024xf32> to vector<16x1024xf32>
    %11 = arith.addf %8, %10 : vector<16x1024xf32>
    %cst_10 = arith.constant 2.000000e+01 : f32
    %12 = vector.broadcast %cst_10 : f32 to vector<16x1024xf32>
    %13 = arith.minimumf %11, %12 : vector<16x1024xf32>
    %14 = math.exp %13 : vector<16x1024xf32>
    %cst_11 = arith.constant 1.000000e+00 : f32
    %15 = vector.broadcast %cst_11 : f32 to vector<16x1024xf32>
    %16 = arith.addf %15, %14 : vector<16x1024xf32>
    %cst_12 = arith.constant 1.000000e+00 : f32
    %17 = vector.broadcast %cst_12 : f32 to vector<16x1024xf32>
    %18 = arith.addf %17, %14 : vector<16x1024xf32>
    %19 = arith.mulf %16, %18 : vector<16x1024xf32>
    %cst_13 = arith.constant 1.000000e+00 : f32
    %20 = vector.broadcast %cst_13 : f32 to vector<16x1024xf32>
    %21 = arith.subf %19, %20 : vector<16x1024xf32>
    %22 = arith.mulf %11, %21 : vector<16x1024xf32>
    %cst_14 = arith.constant 1.000000e+00 : f32
    %23 = vector.broadcast %cst_14 : f32 to vector<16x1024xf32>
    %24 = arith.addf %19, %23 : vector<16x1024xf32>
    %25 = tpu.reciprocal %24 {approx = true} : vector<16x1024xf32> -> vector<16x1024xf32>
    %26 = arith.mulf %22, %25 : vector<16x1024xf32>
    %cst_15 = arith.constant 2.000000e+01 : f32
    %27 = vector.broadcast %cst_15 : f32 to vector<16x1024xf32>
    %28 = arith.cmpf ogt, %11, %27 : vector<16x1024xf32>
    %29 = arith.select %28, %11, %26 : vector<16x1024xi1>, vector<16x1024xf32>
    %30 = vector.extract_strided_slice %29 {offsets = [0, 0], sizes = [16, 512], strides = [1, 1]} : vector<16x1024xf32> to vector<16x512xf32>
    %31 = arith.truncf %30 : vector<16x512xf32> to vector<16x512xbf16>
    %32 = vector.extract_strided_slice %29 {offsets = [0, 512], sizes = [16, 512], strides = [1, 1]} : vector<16x1024xf32> to vector<16x512xf32>
    %33 = arith.truncf %32 : vector<16x512xf32> to vector<16x512xbf16>
    %c0_16 = arith.constant 0 : index
    %c0_17 = arith.constant 0 : index
    %34 = vector.load %arg5[%c0_16, %c0_17] : memref<512x1024xbf16, #tpu.memory_space<vmem>>, vector<512x1024xbf16>
    %cst_18 = arith.constant dense<0.000000e+00> : vector<16x1024xf32>
    %35 = tpu.matmul %31, %34, %cst_18 {dimension_numbers = #tpu.dot_dimension_numbers<[1], [0], [0], [1], [0, 0, 1, 1], [], []>} : vector<16x512xbf16>, vector<512x1024xbf16>, vector<16x1024xf32> -> vector<16x1024xf32>
    %c0_19 = arith.constant 0 : index
    %c0_20 = arith.constant 0 : index
    %36 = vector.load %arg6[%c0_19, %c0_20] : memref<1x1024xf32, #tpu.memory_space<vmem>>, vector<1x1024xf32>
    %37 = vector.broadcast %36 : vector<1x1024xf32> to vector<16x1024xf32>
    %38 = arith.addf %35, %37 : vector<16x1024xf32>
    %cst_21 = arith.constant 2.000000e+01 : f32
    %39 = vector.broadcast %cst_21 : f32 to vector<16x1024xf32>
    %40 = arith.minimumf %38, %39 : vector<16x1024xf32>
    %41 = math.exp %40 : vector<16x1024xf32>
    %cst_22 = arith.constant 1.000000e+00 : f32
    %42 = vector.broadcast %cst_22 : f32 to vector<16x1024xf32>
    %43 = arith.addf %42, %41 : vector<16x1024xf32>
    %cst_23 = arith.constant 1.000000e+00 : f32
    %44 = vector.broadcast %cst_23 : f32 to vector<16x1024xf32>
    %45 = arith.addf %44, %41 : vector<16x1024xf32>
    %46 = arith.mulf %43, %45 : vector<16x1024xf32>
    %cst_24 = arith.constant 1.000000e+00 : f32
    %47 = vector.broadcast %cst_24 : f32 to vector<16x1024xf32>
    %48 = arith.subf %46, %47 : vector<16x1024xf32>
    %49 = arith.mulf %38, %48 : vector<16x1024xf32>
    %cst_25 = arith.constant 1.000000e+00 : f32
    %50 = vector.broadcast %cst_25 : f32 to vector<16x1024xf32>
    %51 = arith.addf %46, %50 : vector<16x1024xf32>
    %52 = tpu.reciprocal %51 {approx = true} : vector<16x1024xf32> -> vector<16x1024xf32>
    %53 = arith.mulf %49, %52 : vector<16x1024xf32>
    %cst_26 = arith.constant 2.000000e+01 : f32
    %54 = vector.broadcast %cst_26 : f32 to vector<16x1024xf32>
    %55 = arith.cmpf ogt, %38, %54 : vector<16x1024xf32>
    %56 = arith.select %55, %38, %53 : vector<16x1024xi1>, vector<16x1024xf32>
    %c0_27 = arith.constant 0 : index
    %c0_28 = arith.constant 0 : index
    %57 = vector.load %arg7[%c0_27, %c0_28] : memref<512x1024xbf16, #tpu.memory_space<vmem>>, vector<512x1024xbf16>
    %cst_29 = arith.constant dense<0.000000e+00> : vector<16x1024xf32>
    %58 = tpu.matmul %33, %57, %cst_29 {dimension_numbers = #tpu.dot_dimension_numbers<[1], [0], [0], [1], [0, 0, 1, 1], [], []>} : vector<16x512xbf16>, vector<512x1024xbf16>, vector<16x1024xf32> -> vector<16x1024xf32>
    %c0_30 = arith.constant 0 : index
    %c0_31 = arith.constant 0 : index
    %59 = vector.load %arg8[%c0_30, %c0_31] : memref<1x1024xf32, #tpu.memory_space<vmem>>, vector<1x1024xf32>
    %60 = vector.broadcast %59 : vector<1x1024xf32> to vector<16x1024xf32>
    %61 = arith.addf %58, %60 : vector<16x1024xf32>
    %cst_32 = arith.constant 2.000000e+01 : f32
    %62 = vector.broadcast %cst_32 : f32 to vector<16x1024xf32>
    %63 = arith.minimumf %61, %62 : vector<16x1024xf32>
    %64 = math.exp %63 : vector<16x1024xf32>
    %cst_33 = arith.constant 1.000000e+00 : f32
    %65 = vector.broadcast %cst_33 : f32 to vector<16x1024xf32>
    %66 = arith.addf %65, %64 : vector<16x1024xf32>
    %cst_34 = arith.constant 1.000000e+00 : f32
    %67 = vector.broadcast %cst_34 : f32 to vector<16x1024xf32>
    %68 = arith.addf %67, %64 : vector<16x1024xf32>
    %69 = arith.mulf %66, %68 : vector<16x1024xf32>
    %cst_35 = arith.constant 1.000000e+00 : f32
    %70 = vector.broadcast %cst_35 : f32 to vector<16x1024xf32>
    %71 = arith.subf %69, %70 : vector<16x1024xf32>
    %72 = arith.mulf %61, %71 : vector<16x1024xf32>
    %cst_36 = arith.constant 1.000000e+00 : f32
    %73 = vector.broadcast %cst_36 : f32 to vector<16x1024xf32>
    %74 = arith.addf %69, %73 : vector<16x1024xf32>
    %75 = tpu.reciprocal %74 {approx = true} : vector<16x1024xf32> -> vector<16x1024xf32>
    %76 = arith.mulf %72, %75 : vector<16x1024xf32>
    %cst_37 = arith.constant 2.000000e+01 : f32
    %77 = vector.broadcast %cst_37 : f32 to vector<16x1024xf32>
    %78 = arith.cmpf ogt, %61, %77 : vector<16x1024xf32>
    %79 = arith.select %78, %61, %76 : vector<16x1024xi1>, vector<16x1024xf32>
    %80 = arith.truncf %56 : vector<16x1024xf32> to vector<16x1024xbf16>
    %c0_38 = arith.constant 0 : index
    %c0_39 = arith.constant 0 : index
    %81 = vector.load %arg9[%c0_38, %c0_39] : memref<1024x256xbf16, #tpu.memory_space<vmem>>, vector<1024x256xbf16>
    %cst_40 = arith.constant dense<0.000000e+00> : vector<16x256xf32>
    %82 = tpu.matmul %80, %81, %cst_40 {dimension_numbers = #tpu.dot_dimension_numbers<[1], [0], [0], [1], [0, 0, 1, 1], [], []>} : vector<16x1024xbf16>, vector<1024x256xbf16>, vector<16x256xf32> -> vector<16x256xf32>
    %83 = arith.truncf %79 : vector<16x1024xf32> to vector<16x1024xbf16>
    %c0_41 = arith.constant 0 : index
    %c0_42 = arith.constant 0 : index
    %84 = vector.load %arg10[%c0_41, %c0_42] : memref<1024x256xbf16, #tpu.memory_space<vmem>>, vector<1024x256xbf16>
    %cst_43 = arith.constant dense<0.000000e+00> : vector<16x256xf32>
    %85 = tpu.matmul %83, %84, %cst_43 {dimension_numbers = #tpu.dot_dimension_numbers<[1], [0], [0], [1], [0, 0, 1, 1], [], []>} : vector<16x1024xbf16>, vector<1024x256xbf16>, vector<16x256xf32> -> vector<16x256xf32>
    %86 = arith.addf %82, %85 : vector<16x256xf32>
    %c0_44 = arith.constant 0 : index
    %c0_45 = arith.constant 0 : index
    %87 = vector.load %arg11[%c0_44, %c0_45] : memref<1x256xf32, #tpu.memory_space<vmem>>, vector<1x256xf32>
    %88 = vector.broadcast %87 : vector<1x256xf32> to vector<16x256xf32>
    %89 = arith.addf %86, %88 : vector<16x256xf32>
    %cst_46 = arith.constant 0.000000e+00 : f32
    %90 = vector.broadcast %cst_46 : f32 to vector<16x256xf32>
    %91 = arith.maximumf %89, %90 : vector<16x256xf32>
    %c0_47 = arith.constant 0 : index
    %c0_48 = arith.constant 0 : index
    %92 = vector.load %arg12[%c0_47, %c0_48] : memref<16x256xf32, #tpu.memory_space<vmem>>, vector<16x256xf32>
    tpu.vector_store %arg12[%c0_47, %c0_48], %91 {strides = array<i32>} : memref<16x256xf32, #tpu.memory_space<vmem>>, vector<16x256xf32>,
    return
  }
}

</mosaic_0001>

<llo_original>
// kernel: decoder_forward.1
$region0: #{decoder_forward.1}
  #allocation0 [shape = 'u32[]', space=smem, size = 0x4, offset = 0x4, fixed_abs, tag = 'smem constant byte address 0x4 - core index']
  #allocation1 [shape = 'u32[72,128]{1,0:T(1,128)}', space=vmem, size = 0x9000, scoped, tag = 'internal scratch']
  %s0 = inlined_call_operand.hbm [shape: f32[16,16], index: 0, kind: input, shape index: {}]
  %s1 = inlined_call_operand.hbm [shape: f32[16,16], index: 1, kind: input, shape index: {}]
  %s2 = inlined_call_operand.hbm [shape: bf16[16,1024], index: 2, kind: input, shape index: {}]
  %s3 = inlined_call_operand.hbm [shape: bf16[16,1024], index: 3, kind: input, shape index: {}]
  %s4 = inlined_call_operand.hbm [shape: f32[1,1024], index: 4, kind: input, shape index: {}]
  %s5 = inlined_call_operand.hbm [shape: bf16[512,1024], index: 5, kind: input, shape index: {}]
  %s6 = inlined_call_operand.hbm [shape: f32[1,1024], index: 6, kind: input, shape index: {}]
  %s7 = inlined_call_operand.hbm [shape: bf16[512,1024], index: 7, kind: input, shape index: {}]
  %s8 = inlined_call_operand.hbm [shape: f32[1,1024], index: 8, kind: input, shape index: {}]
  %s9 = inlined_call_operand.hbm [shape: bf16[1024,256], index: 9, kind: input, shape index: {}]
  %s10 = inlined_call_operand.hbm [shape: bf16[1024,256], index: 10, kind: input, shape index: {}]
  %s11 = inlined_call_operand.vmem [shape: f32[1,256], index: 11, kind: input, shape index: {}]
  %s12 = inlined_call_operand.hbm [shape: f32[16,256], index: 12, kind: output, shape index: {}]
  %s13 = sld [smem:[#allocation0]]
  $region102: #{decoder_forward.1} parent=0
    _
  %s15 = ssub.s32 1, %s13
  %s16 = scalar_select 0, %s15, %s13
  $region1: #{decoder_forward.1} parent=0
    #allocation2 [shape = 'u8[8192]{0}', space=vmem, size = 0x2000, scoped, tag = 'input window, operand 0, single buffered']
    #allocation3 [shape = 's32[1]{0}', space=sflag, size = 0x4, scoped, tag = 'scoped memory for decoder_forward.1']
    #allocation4 [shape = 's32[1]{0}', space=sflag, size = 0x4, scoped, tag = 'scoped memory for decoder_forward.1']
    #allocation5 [shape = 'u8[8192]{0}', space=vmem, size = 0x2000, scoped, tag = 'input window, operand 1, single buffered']
    #allocation6 [shape = 's32[1]{0}', space=sflag, size = 0x4, scoped, tag = 'scoped memory for decoder_forward.1']
    #allocation7 [shape = 'u8[32768]{0}', space=vmem, size = 0x8000, scoped, tag = 'input window, operand 2, single buffered']
    #allocation8 [shape = 'u8[32768]{0}', space=vmem, size = 0x8000, scoped, tag = 'input window, operand 3, single buffered']
    #allocation9 [shape = 's32[1]{0}', space=sflag, size = 0x4, scoped, tag = 'scoped memory for decoder_forward.1']
    #allocation10 [shape = 'u8[4096]{0}', space=vmem, size = 0x1000, scoped, tag = 'input window, operand 4, single buffered']
    #allocation11 [shape = 'u8[1048576]{0}', space=vmem, size = 0x100000, scoped, tag = 'input window, operand 5, single buffered']
    #allocation12 [shape = 's32[1]{0}', space=sflag, size = 0x4, scoped, tag = 'scoped memory for decoder_forward.1']
    #allocation13 [shape = 'u8[4096]{0}', space=vmem, size = 0x1000, scoped, tag = 'input window, operand 6, single buffered']
    #allocation14 [shape = 'u8[1048576]{0}', space=vmem, size = 0x100000, scoped, tag = 'input window, operand 7, single buffered']
    #allocation15 [shape = 's32[1]{0}', space=sflag, size = 0x4, scoped, tag = 'scoped memory for decoder_forward.1']
    #allocation16 [shape = 'u8[4096]{0}', space=vmem, size = 0x1000, scoped, tag = 'input window, operand 8, single buffered']
    #allocation17 [shape = 'u8[524288]{0}', space=vmem, size = 0x80000, scoped, tag = 'input window, operand 9, single buffered']
    #allocation18 [shape = 's32[1]{0}', space=sflag, size = 0x4, scoped, tag = 'scoped memory for decoder_forward.1']
    #allocation19 [shape = 'u8[524288]{0}', space=vmem, size = 0x80000, scoped, tag = 'input window, operand 10, single buffered']
    #allocation20 [shape = 'u8[16384]{0}', space=vmem, size = 0x4000, scoped, tag = 'output window, operand 0, single buffered']
    %17 = vsyncpa [#allocation3], 0
    %18 = vsyncpa [#allocation6], 0
    %19 = vsyncpa [#allocation9], 0
    %20 = vsyncpa [#allocation12], 0
    %21 = vsyncpa [#allocation15], 0
    %22 = vsyncpa [#allocation18], 0
    %23 = vsyncpa [#allocation4], 0
    // Predicated region
    $region2: #{decoder_forward.1} parent=1 // pred_check
      _
    $region3: #{decoder_forward.1} parent=1 // pred_check_branch
      %25 = sbr.rel (0) target = $region5
    $region4: #{decoder_forward.1} parent=1 // pred_region
      %27 = vsyncadd [#allocation3], 0
      %s28 = sshll.u32 %s0, 4
      %s29 = int_to_ptr.hbm [resolvable:$true] %s28
      %s30 = sshll.u32 [#allocation2], 4
      %s31 = int_to_ptr.vmem [resolvable:$true] %s30
      %36 = dma.hbm_to_vmem [thread:$0]  %s29, 256, %s31, [#allocation3], 128, 128, 8
    $region5: #{decoder_forward.1} parent=1 // pred_fallthru
      _
    // Predicated region
    $region6: #{decoder_forward.1} parent=1 // pred_check
      _
    $region7: #{decoder_forward.1} parent=1 // pred_check_branch
      %38 = sbr.rel (0) target = $region9
    $region8: #{decoder_forward.1} parent=1 // pred_region
      %40 = vsyncadd [#allocation6], 0
      %s41 = sshll.u32 %s1, 4
      %s42 = int_to_ptr.hbm [resolvable:$true] %s41
      %s43 = sshll.u32 [#allocation5], 4
      %s44 = int_to_ptr.vmem [resolvable:$true] %s43
      %49 = dma.hbm_to_vmem [thread:$0]  %s42, 256, %s44, [#allocation6], 128, 128, 8
    $region9: #{decoder_forward.1} parent=1 // pred_fallthru
      _
    // Predicated region
    $region10: #{decoder_forward.1} parent=1 // pred_check
      _
    $region11: #{decoder_forward.1} parent=1 // pred_check_branch
      %51 = sbr.rel (0) target = $region13
    $region12: #{decoder_forward.1} parent=1 // pred_region
      %53 = vsyncadd [#allocation6], 0
      %s54 = sshll.u32 %s2, 4
      %s55 = int_to_ptr.hbm [resolvable:$true] %s54
      %s56 = sshll.u32 [#allocation7], 4
      %s57 = int_to_ptr.vmem [resolvable:$true] %s56
      %62 = dma.hbm_to_vmem [thread:$0]  %s55, 1024, %s57, [#allocation6], 512, 512, 32
    $region13: #{decoder_forward.1} parent=1 // pred_fallthru
      _
    // Predicated region
    $region14: #{decoder_forward.1} parent=1 // pred_check
      _
    $region15: #{decoder_forward.1} parent=1 // pred_check_branch
      %64 = sbr.rel (0) target = $region17
    $region16: #{decoder_forward.1} parent=1 // pred_region
      %66 = vsyncadd [#allocation9], 0
      %s67 = sshll.u32 %s3, 4
      %s68 = int_to_ptr.hbm [resolvable:$true] %s67
      %s69 = sshll.u32 [#allocation8], 4
      %s70 = int_to_ptr.vmem [resolvable:$true] %s69
      %75 = dma.hbm_to_vmem [thread:$0]  %s68, 1024, %s70, [#allocation9], 512, 512, 32
    $region17: #{decoder_forward.1} parent=1 // pred_fallthru
      _
    // Predicated region
    $region18: #{decoder_forward.1} parent=1 // pred_check
      _
    $region19: #{decoder_forward.1} parent=1 // pred_check_branch
      %77 = sbr.rel (0) target = $region21
    $region20: #{decoder_forward.1} parent=1 // pred_region
      %79 = vsyncadd [#allocation9], 0
      %s81 = sshll.u32 %s4, 4
      %s82 = int_to_ptr.hbm [resolvable:$true] %s81
      %s83 = sshll.u32 [#allocation10], 4
      %s84 = int_to_ptr.vmem [resolvable:$true] %s83
      %86 = dma.hbm_to_vmem [thread:$0]  %s82, 128, %s84, [#allocation9]
    $region21: #{decoder_forward.1} parent=1 // pred_fallthru
      _
    // Predicated region
    $region22: #{decoder_forward.1} parent=1 // pred_check
      _
    $region23: #{decoder_forward.1} parent=1 // pred_check_branch
      %88 = sbr.rel (0) target = $region25
    $region24: #{decoder_forward.1} parent=1 // pred_region
      %90 = vsyncadd [#allocation12], 0
      %s91 = sshll.u32 %s5, 4
      %s92 = int_to_ptr.hbm [resolvable:$true] %s91
      %s93 = sshll.u32 [#allocation11], 4
      %s94 = int_to_ptr.vmem [resolvable:$true] %s93
      %99 = dma.hbm_to_vmem [thread:$0]  %s92, 32768, %s94, [#allocation12], 512, 512, 32
    $region25: #{decoder_forward.1} parent=1 // pred_fallthru
      _
    // Predicated region
    $region26: #{decoder_forward.1} parent=1 // pred_check
      _
    $region27: #{decoder_forward.1} parent=1 // pred_check_branch
      %101 = sbr.rel (0) target = $region29
    $region28: #{decoder_forward.1} parent=1 // pred_region
      %103 = vsyncadd [#allocation12], 0
      %s105 = sshll.u32 %s6, 4
      %s106 = int_to_ptr.hbm [resolvable:$true] %s105
      %s107 = sshll.u32 [#allocation13], 4
      %s108 = int_to_ptr.vmem [resolvable:$true] %s107
      %110 = dma.hbm_to_vmem [thread:$0]  %s106, 128, %s108, [#allocation12]
    $region29: #{decoder_forward.1} parent=1 // pred_fallthru
      _
    // Predicated region
    $region30: #{decoder_forward.1} parent=1 // pred_check
      _
    $region31: #{decoder_forward.1} parent=1 // pred_check_branch
      %112 = sbr.rel (0) target = $region33
    $region32: #{decoder_forward.1} parent=1 // pred_region
      %114 = vsyncadd [#allocation15], 0
      %s115 = sshll.u32 %s7, 4
      %s116 = int_to_ptr.hbm [resolvable:$true] %s115
      %s117 = sshll.u32 [#allocation14], 4
      %s118 = int_to_ptr.vmem [resolvable:$true] %s117
      %123 = dma.hbm_to_vmem [thread:$0]  %s116, 32768, %s118, [#allocation15], 512, 512, 32
    $region33: #{decoder_forward.1} parent=1 // pred_fallthru
      _
    // Predicated region
    $region34: #{decoder_forward.1} parent=1 // pred_check
      _
    $region35: #{decoder_forward.1} parent=1 // pred_check_branch
      %125 = sbr.rel (0) target = $region37
    $region36: #{decoder_forward.1} parent=1 // pred_region
      %127 = vsyncadd [#allocation15], 0
      %s129 = sshll.u32 %s8, 4
      %s130 = int_to_ptr.hbm [resolvable:$true] %s129
      %s131 = sshll.u32 [#allocation16], 4
      %s132 = int_to_ptr.vmem [resolvable:$true] %s131
      %134 = dma.hbm_to_vmem [thread:$0]  %s130, 128, %s132, [#allocation15]
    $region37: #{decoder_forward.1} parent=1 // pred_fallthru
      _
    // Predicated region
    $region38: #{decoder_forward.1} parent=1 // pred_check
      _
    $region39: #{decoder_forward.1} parent=1 // pred_check_branch
      %136 = sbr.rel (0) target = $region41
    $region40: #{decoder_forward.1} parent=1 // pred_region
      %138 = vsyncadd [#allocation18], 0
      %s139 = sshll.u32 %s9, 4
      %s140 = int_to_ptr.hbm [resolvable:$true] %s139
      %s141 = sshll.u32 [#allocation17], 4
      %s142 = int_to_ptr.vmem [resolvable:$true] %s141
      %147 = dma.hbm_to_vmem [thread:$0]  %s140, 16384, %s142, [#allocation18], 128, 128, 8
    $region41: #{decoder_forward.1} parent=1 // pred_fallthru
      _
    // Predicated region
    $region42: #{decoder_forward.1} parent=1 // pred_check
      _
    $region43: #{decoder_forward.1} parent=1 // pred_check_branch
      %149 = sbr.rel (0) target = $region45
    $region44: #{decoder_forward.1} parent=1 // pred_region
      %151 = vsyncadd [#allocation18], 0
      %s152 = sshll.u32 %s10, 4
      %s153 = int_to_ptr.hbm [resolvable:$true] %s152
      %s154 = sshll.u32 [#allocation19], 4
      %s155 = int_to_ptr.vmem [resolvable:$true] %s154
      %160 = dma.hbm_to_vmem [thread:$0]  %s153, 16384, %s155, [#allocation18], 128, 128, 8
    $region45: #{decoder_forward.1} parent=1 // pred_fallthru
      _
    // Predicated region
    $region46: #{decoder_forward.1} parent=1 // pred_check
      _
    $region47: #{decoder_forward.1} parent=1 // pred_check_branch
      %162 = sbr.rel (0) target = $region49
    $region48: #{decoder_forward.1} parent=1 // pred_region
      _
    $region49: #{decoder_forward.1} parent=1 // pred_fallthru
      _
    // Predicated region
    $region50: #{decoder_forward.1} parent=1 // pred_check
      _
    $region51: #{decoder_forward.1} parent=1 // pred_check_branch
      %164 = sbr.rel (0) target = $region53
    $region52: #{decoder_forward.1} parent=1 // pred_region
      %166 = dma.done [#allocation3], 256
    $region53: #{decoder_forward.1} parent=1 // pred_fallthru
      _
    // Predicated region
    $region54: #{decoder_forward.1} parent=1 // pred_check
      _
    $region55: #{decoder_forward.1} parent=1 // pred_check_branch
      %168 = sbr.rel (0) target = $region57
    $region56: #{decoder_forward.1} parent=1 // pred_region
      %170 = dma.done [#allocation6], 256
    $region57: #{decoder_forward.1} parent=1 // pred_fallthru
      _
    // Predicated region
    $region58: #{decoder_forward.1} parent=1 // pred_check
      _
    $region59: #{decoder_forward.1} parent=1 // pred_check_branch
      %172 = sbr.rel (0) target = $region61
    $region60: #{decoder_forward.1} parent=1 // pred_region
      %174 = dma.done [#allocation6], 1024
    $region61: #{decoder_forward.1} parent=1 // pred_fallthru
      _
    // Predicated region
    $region62: #{decoder_forward.1} parent=1 // pred_check
      _
    $region63: #{decoder_forward.1} parent=1 // pred_check_branch
      %176 = sbr.rel (0) target = $region65
    $region64: #{decoder_forward.1} parent=1 // pred_region
      %178 = dma.done [#allocation9], 1024
    $region65: #{decoder_forward.1} parent=1 // pred_fallthru
      _
    // Predicated region
    $region66: #{decoder_forward.1} parent=1 // pred_check
      _
    $region67: #{decoder_forward.1} parent=1 // pred_check_branch
      %180 = sbr.rel (0) target = $region69
    $region68: #{decoder_forward.1} parent=1 // pred_region
      %182 = dma.done [#allocation9], 128
    $region69: #{decoder_forward.1} parent=1 // pred_fallthru
      _
    // Predicated region
    $region70: #{decoder_forward.1} parent=1 // pred_check
      _
    $region71: #{decoder_forward.1} parent=1 // pred_check_branch
      %184 = sbr.rel (0) target = $region73
    $region72: #{decoder_forward.1} parent=1 // pred_region
      %186 = dma.done [#allocation12], 32768
    $region73: #{decoder_forward.1} parent=1 // pred_fallthru
      _
    // Predicated region
    $region74: #{decoder_forward.1} parent=1 // pred_check
      _
    $region75: #{decoder_forward.1} parent=1 // pred_check_branch
      %188 = sbr.rel (0) target = $region77
    $region76: #{decoder_forward.1} parent=1 // pred_region
      %190 = dma.done [#allocation12], 128
    $region77: #{decoder_forward.1} parent=1 // pred_fallthru
      _
    // Predicated region
    $region78: #{decoder_forward.1} parent=1 // pred_check
      _
    $region79: #{decoder_forward.1} parent=1 // pred_check_branch
      %192 = sbr.rel (0) target = $region81
    $region80: #{decoder_forward.1} parent=1 // pred_region
      %194 = dma.done [#allocation15], 32768
    $region81: #{decoder_forward.1} parent=1 // pred_fallthru
      _
    // Predicated region
    $region82: #{decoder_forward.1} parent=1 // pred_check
      _
    $region83: #{decoder_forward.1} parent=1 // pred_check_branch
      %196 = sbr.rel (0) target = $region85
    $region84: #{decoder_forward.1} parent=1 // pred_region
      %198 = dma.done [#allocation15], 128
    $region85: #{decoder_forward.1} parent=1 // pred_fallthru
      _
    // Predicated region
    $region86: #{decoder_forward.1} parent=1 // pred_check
      _
    $region87: #{decoder_forward.1} parent=1 // pred_check_branch
      %200 = sbr.rel (0) target = $region89
    $region88: #{decoder_forward.1} parent=1 // pred_region
      %202 = dma.done [#allocation18], 16384
    $region89: #{decoder_forward.1} parent=1 // pred_fallthru
      _
    // Predicated region
    $region90: #{decoder_forward.1} parent=1 // pred_check
      _
    $region91: #{decoder_forward.1} parent=1 // pred_check_branch
      %204 = sbr.rel (0) target = $region93
    $region92: #{decoder_forward.1} parent=1 // pred_region
      %206 = dma.done [#allocation18], 16384
    $region93: #{decoder_forward.1} parent=1 // pred_fallthru
      _
    %v208 = vld [vmem:[#allocation2] sm:$0xff]
    %v209 = vld [vmem:[#allocation2 + $0x8] sm:$0xff]
    %v210 = vpack.c.bf16 %v209, %v208
    %v211 = vld [vmem:[#allocation5] sm:$0xff]
    %v212 = vld [vmem:[#allocation5 + $0x8] sm:$0xff]
    %v213 = vpack.c.bf16 %v212, %v211
    %v214 = vld [vmem:[#allocation7] sm:$0xff]
    %v215 = vld [vmem:[#allocation7 + $0x8] sm:$0xff]
    %v216 = vld [vmem:[#allocation7 + $0x10] sm:$0xff]
    %v217 = vld [vmem:[#allocation7 + $0x18] sm:$0xff]
    %v218 = vld [vmem:[#allocation7 + $0x20] sm:$0xff]
    %v219 = vld [vmem:[#allocation7 + $0x28] sm:$0xff]
    %v220 = vld [vmem:[#allocation7 + $0x30] sm:$0xff]
    %v221 = vld [vmem:[#allocation7 + $0x38] sm:$0xff]
    %v222 = vld [vmem:[#allocation8] sm:$0xff]
    %v223 = vld [vmem:[#allocation8 + $0x8] sm:$0xff]
    %v224 = vld [vmem:[#allocation8 + $0x10] sm:$0xff]
    %v225 = vld [vmem:[#allocation8 + $0x18] sm:$0xff]
    %v226 = vld [vmem:[#allocation8 + $0x20] sm:$0xff]
    %v227 = vld [vmem:[#allocation8 + $0x28] sm:$0xff]
    %v228 = vld [vmem:[#allocation8 + $0x30] sm:$0xff]
    %v229 = vld [vmem:[#allocation8 + $0x38] sm:$0xff]
    %v238 = vunpack.c.l.b16 %v222
    %v239 = vunpack.c.h.b16 %v222
    %v240 = vunpack.c.l.b16 %v223
    %v241 = vunpack.c.h.b16 %v223
    %v242 = vunpack.c.l.b16 %v224
    %v243 = vunpack.c.h.b16 %v224
    %v244 = vunpack.c.l.b16 %v225
    %v245 = vunpack.c.h.b16 %v225
    %v246 = vunpack.c.l.b16 %v226
    %v247 = vunpack.c.h.b16 %v226
    %v248 = vunpack.c.l.b16 %v227
    %v249 = vunpack.c.h.b16 %v227
    %v250 = vunpack.c.l.b16 %v228
    %v251 = vunpack.c.h.b16 %v228
    %v252 = vunpack.c.l.b16 %v229
    %v253 = vunpack.c.h.b16 %v229
    %v254 = vpack.c.b16 %v246, %v238
    %v255 = vpack.c.b16 %v247, %v239
    %v256 = vpack.c.b16 %v248, %v240
    %v257 = vpack.c.b16 %v249, %v241
    %v258 = vpack.c.b16 %v250, %v242
    %v259 = vpack.c.b16 %v251, %v243
    %v260 = vpack.c.b16 %v252, %v244
    %v261 = vpack.c.b16 %v253, %v245
    %vm270 = vcmask 130048
    %v272 = vsel %vm270, %v213, 0
    %274 = vmatpush.bf16.msra.mxu0 0
    %275 = vmatpush.bf16.msra.mxu0 0
    %276 = vmatpush.bf16.msra.mxu0 0
    %277 = vmatpush.bf16.msra.mxu0 0
    %278 = vmatpush.bf16.msra.mxu0 0
    %279 = vmatpush.bf16.msra.mxu0 0
    %280 = vmatpush.bf16.msra.mxu0 0
    %281 = vmatpush.bf16.msra.mxu0 %v254
    %282 = vmatmul.bf16.gmra.mxu0 %v272
    %v283 = vpop.f32.mrf.mxu0
    %v284 = vadd.f32 0.0, %v283
    %v285 = vpop.f32.mrf.mxu0
    %v286 = vadd.f32 0.0, %v285
    %287 = vdwg.mxu0
    %288 = vmatpush.bf16.msra.mxu0 0
    %289 = vmatpush.bf16.msra.mxu0 0
    %290 = vmatpush.bf16.msra.mxu0 0
    %291 = vmatpush.bf16.msra.mxu0 0
    %292 = vmatpush.bf16.msra.mxu0 0
    %293 = vmatpush.bf16.msra.mxu0 0
    %294 = vmatpush.bf16.msra.mxu0 0
    %295 = vmatpush.bf16.msra.mxu0 %v255
    %296 = vmatmul.bf16.gmra.mxu0 %v272
    %v297 = vpop.f32.mrf.mxu0
    %v298 = vadd.f32 0.0, %v297
    %v299 = vpop.f32.mrf.mxu0
    %v300 = vadd.f32 0.0, %v299
    %301 = vdwg.mxu0
    %302 = vmatpush.bf16.msra.mxu0 0
    %303 = vmatpush.bf16.msra.mxu0 0
    %304 = vmatpush.bf16.msra.mxu0 0
    %305 = vmatpush.bf16.msra.mxu0 0
    %306 = vmatpush.bf16.msra.mxu0 0
    %307 = vmatpush.bf16.msra.mxu0 0
    %308 = vmatpush.bf16.msra.mxu0 0
    %309 = vmatpush.bf16.msra.mxu0 %v256
    %310 = vmatmul.bf16.gmra.mxu0 %v272
    %v311 = vpop.f32.mrf.mxu0
    %v312 = vadd.f32 0.0, %v311
    %v313 = vpop.f32.mrf.mxu0
    %v314 = vadd.f32 0.0, %v313
    %315 = vdwg.mxu0
    %316 = vmatpush.bf16.msra.mxu0 0
    %317 = vmatpush.bf16.msra.mxu0 0
    %318 = vmatpush.bf16.msra.mxu0 0
    %319 = vmatpush.bf16.msra.mxu0 0
    %320 = vmatpush.bf16.msra.mxu0 0
    %321 = vmatpush.bf16.msra.mxu0 0
    %322 = vmatpush.bf16.msra.mxu0 0
    %323 = vmatpush.bf16.msra.mxu0 %v257
    %324 = vmatmul.bf16.gmra.mxu0 %v272
    %v325 = vpop.f32.mrf.mxu0
    %v326 = vadd.f32 0.0, %v325
    %v327 = vpop.f32.mrf.mxu0
    %v328 = vadd.f32 0.0, %v327
    %329 = vdwg.mxu0
    %330 = vmatpush.bf16.msra.mxu0 0
    %331 = vmatpush.bf16.msra.mxu0 0
    %332 = vmatpush.bf16.msra.mxu0 0
    %333 = vmatpush.bf16.msra.mxu0 0
    %334 = vmatpush.bf16.msra.mxu0 0
    %335 = vmatpush.bf16.msra.mxu0 0
    %336 = vmatpush.bf16.msra.mxu0 0
    %337 = vmatpush.bf16.msra.mxu0 %v258
    %338 = vmatmul.bf16.gmra.mxu0 %v272
    %v339 = vpop.f32.mrf.mxu0
    %v340 = vadd.f32 0.0, %v339
    %v341 = vpop.f32.mrf.mxu0
    %v342 = vadd.f32 0.0, %v341
    %343 = vdwg.mxu0
    %344 = vmatpush.bf16.msra.mxu0 0
    %345 = vmatpush.bf16.msra.mxu0 0
    %346 = vmatpush.bf16.msra.mxu0 0
    %347 = vmatpush.bf16.msra.mxu0 0
    %348 = vmatpush.bf16.msra.mxu0 0
    %349 = vmatpush.bf16.msra.mxu0 0
    %350 = vmatpush.bf16.msra.mxu0 0
    %351 = vmatpush.bf16.msra.mxu0 %v259
    %352 = vmatmul.bf16.gmra.mxu0 %v272
    %v353 = vpop.f32.mrf.mxu0
    %v354 = vadd.f32 0.0, %v353
    %v355 = vpop.f32.mrf.mxu0
    %v356 = vadd.f32 0.0, %v355
    %357 = vdwg.mxu0
    %358 = vmatpush.bf16.msra.mxu0 0
    %359 = vmatpush.bf16.msra.mxu0 0
    %360 = vmatpush.bf16.msra.mxu0 0
    %361 = vmatpush.bf16.msra.mxu0 0
    %362 = vmatpush.bf16.msra.mxu0 0
    %363 = vmatpush.bf16.msra.mxu0 0
    %364 = vmatpush.bf16.msra.mxu0 0
    %365 = vmatpush.bf16.msra.mxu0 %v260
    %366 = vmatmul.bf16.gmra.mxu0 %v272
    %v367 = vpop.f32.mrf.mxu0
    %v368 = vadd.f32 0.0, %v367
    %v369 = vpop.f32.mrf.mxu0
    %v370 = vadd.f32 0.0, %v369
    %371 = vdwg.mxu0
    %372 = vmatpush.bf16.msra.mxu0 0
    %373 = vmatpush.bf16.msra.mxu0 0
    %374 = vmatpush.bf16.msra.mxu0 0
    %375 = vmatpush.bf16.msra.mxu0 0
    %376 = vmatpush.bf16.msra.mxu0 0
    %377 = vmatpush.bf16.msra.mxu0 0
    %378 = vmatpush.bf16.msra.mxu0 0
    %379 = vmatpush.bf16.msra.mxu0 %v261
    %380 = vmatmul.bf16.gmra.mxu0 %v272
    %v381 = vpop.f32.mrf.mxu0
    %v382 = vadd.f32 0.0, %v381
    %v383 = vpop.f32.mrf.mxu0
    %v384 = vadd.f32 0.0, %v383
    %385 = vdwg.mxu0
    %v394 = vunpack.c.l.b16 %v214
    %v395 = vunpack.c.h.b16 %v214
    %v396 = vunpack.c.l.b16 %v215
    %v397 = vunpack.c.h.b16 %v215
    %v398 = vunpack.c.l.b16 %v216
    %v399 = vunpack.c.h.b16 %v216
    %v400 = vunpack.c.l.b16 %v217
    %v401 = vunpack.c.h.b16 %v217
    %v402 = vunpack.c.l.b16 %v218
    %v403 = vunpack.c.h.b16 %v218
    %v404 = vunpack.c.l.b16 %v219
    %v405 = vunpack.c.h.b16 %v219
    %v406 = vunpack.c.l.b16 %v220
    %v407 = vunpack.c.h.b16 %v220
    %v408 = vunpack.c.l.b16 %v221
    %v409 = vunpack.c.h.b16 %v221
    %v410 = vpack.c.b16 %v402, %v394
    %v411 = vpack.c.b16 %v403, %v395
    %v412 = vpack.c.b16 %v404, %v396
    %v413 = vpack.c.b16 %v405, %v397
    %v414 = vpack.c.b16 %v406, %v398
    %v415 = vpack.c.b16 %v407, %v399
    %v416 = vpack.c.b16 %v408, %v400
    %v417 = vpack.c.b16 %v409, %v401
    %v427 = vsel %vm270, %v210, 0
    %429 = vmatpush.bf16.msra.mxu0 0
    %430 = vmatpush.bf16.msra.mxu0 0
    %431 = vmatpush.bf16.msra.mxu0 0
    %432 = vmatpush.bf16.msra.mxu0 0
    %433 = vmatpush.bf16.msra.mxu0 0
    %434 = vmatpush.bf16.msra.mxu0 0
    %435 = vmatpush.bf16.msra.mxu0 0
    %436 = vmatpush.bf16.msra.mxu0 %v410
    %437 = vmatmul.bf16.gmra.mxu0 %v427
    %v438 = vpop.f32.mrf.mxu0
    %v439 = vadd.f32 %v284, %v438
    %v440 = vpop.f32.mrf.mxu0
    %v441 = vadd.f32 %v286, %v440
    %442 = vdwg.mxu0
    %443 = vmatpush.bf16.msra.mxu0 0
    %444 = vmatpush.bf16.msra.mxu0 0
    %445 = vmatpush.bf16.msra.mxu0 0
    %446 = vmatpush.bf16.msra.mxu0 0
    %447 = vmatpush.bf16.msra.mxu0 0
    %448 = vmatpush.bf16.msra.mxu0 0
    %449 = vmatpush.bf16.msra.mxu0 0
    %450 = vmatpush.bf16.msra.mxu0 %v411
    %451 = vmatmul.bf16.gmra.mxu0 %v427
    %v452 = vpop.f32.mrf.mxu0
    %v453 = vadd.f32 %v298, %v452
    %v454 = vpop.f32.mrf.mxu0
    %v455 = vadd.f32 %v300, %v454
    %456 = vdwg.mxu0
    %457 = vmatpush.bf16.msra.mxu0 0
    %458 = vmatpush.bf16.msra.mxu0 0
    %459 = vmatpush.bf16.msra.mxu0 0
    %460 = vmatpush.bf16.msra.mxu0 0
    %461 = vmatpush.bf16.msra.mxu0 0
    %462 = vmatpush.bf16.msra.mxu0 0
    %463 = vmatpush.bf16.msra.mxu0 0
    %464 = vmatpush.bf16.msra.mxu0 %v412
    %465 = vmatmul.bf16.gmra.mxu0 %v427
    %v466 = vpop.f32.mrf.mxu0
    %v467 = vadd.f32 %v312, %v466
    %v468 = vpop.f32.mrf.mxu0
    %v469 = vadd.f32 %v314, %v468
    %470 = vdwg.mxu0
    %471 = vmatpush.bf16.msra.mxu0 0
    %472 = vmatpush.bf16.msra.mxu0 0
    %473 = vmatpush.bf16.msra.mxu0 0
    %474 = vmatpush.bf16.msra.mxu0 0
    %475 = vmatpush.bf16.msra.mxu0 0
    %476 = vmatpush.bf16.msra.mxu0 0
    %477 = vmatpush.bf16.msra.mxu0 0
    %478 = vmatpush.bf16.msra.mxu0 %v413
    %479 = vmatmul.bf16.gmra.mxu0 %v427
    %v480 = vpop.f32.mrf.mxu0
    %v481 = vadd.f32 %v326, %v480
    %v482 = vpop.f32.mrf.mxu0
    %v483 = vadd.f32 %v328, %v482
    %484 = vdwg.mxu0
    %485 = vmatpush.bf16.msra.mxu0 0
    %486 = vmatpush.bf16.msra.mxu0 0
    %487 = vmatpush.bf16.msra.mxu0 0
    %488 = vmatpush.bf16.msra.mxu0 0
    %489 = vmatpush.bf16.msra.mxu0 0
    %490 = vmatpush.bf16.msra.mxu0 0
    %491 = vmatpush.bf16.msra.mxu0 0
    %492 = vmatpush.bf16.msra.mxu0 %v414
    %493 = vmatmul.bf16.gmra.mxu0 %v427
    %v494 = vpop.f32.mrf.mxu0
    %v495 = vadd.f32 %v340, %v494
    %v496 = vpop.f32.mrf.mxu0
    %v497 = vadd.f32 %v342, %v496
    %498 = vdwg.mxu0
    %499 = vmatpush.bf16.msra.mxu0 0
    %500 = vmatpush.bf16.msra.mxu0 0
    %501 = vmatpush.bf16.msra.mxu0 0
    %502 = vmatpush.bf16.msra.mxu0 0
    %503 = vmatpush.bf16.msra.mxu0 0
    %504 = vmatpush.bf16.msra.mxu0 0
    %505 = vmatpush.bf16.msra.mxu0 0
    %506 = vmatpush.bf16.msra.mxu0 %v415
    %507 = vmatmul.bf16.gmra.mxu0 %v427
    %v508 = vpop.f32.mrf.mxu0
    %v509 = vadd.f32 %v354, %v508
    %v510 = vpop.f32.mrf.mxu0
    %v511 = vadd.f32 %v356, %v510
    %512 = vdwg.mxu0
    %513 = vmatpush.bf16.msra.mxu0 0
    %514 = vmatpush.bf16.msra.mxu0 0
    %515 = vmatpush.bf16.msra.mxu0 0
    %516 = vmatpush.bf16.msra.mxu0 0
    %517 = vmatpush.bf16.msra.mxu0 0
    %518 = vmatpush.bf16.msra.mxu0 0
    %519 = vmatpush.bf16.msra.mxu0 0
    %520 = vmatpush.bf16.msra.mxu0 %v416
    %521 = vmatmul.bf16.gmra.mxu0 %v427
    %v522 = vpop.f32.mrf.mxu0
    %v523 = vadd.f32 %v368, %v522
    %v524 = vpop.f32.mrf.mxu0
    %v525 = vadd.f32 %v370, %v524
    %526 = vdwg.mxu0
    %527 = vmatpush.bf16.msra.mxu0 0
    %528 = vmatpush.bf16.msra.mxu0 0
    %529 = vmatpush.bf16.msra.mxu0 0
    %530 = vmatpush.bf16.msra.mxu0 0
    %531 = vmatpush.bf16.msra.mxu0 0
    %532 = vmatpush.bf16.msra.mxu0 0
    %533 = vmatpush.bf16.msra.mxu0 0
    %534 = vmatpush.bf16.msra.mxu0 %v417
    %535 = vmatmul.bf16.gmra.mxu0 %v427
    %v536 = vpop.f32.mrf.mxu0
    %v537 = vadd.f32 %v382, %v536
    %v538 = vpop.f32.mrf.mxu0
    %v539 = vadd.f32 %v384, %v538
    %540 = vdwg.mxu0
    %v541 = vld [vmem:[#allocation10] sm:$0xff]
    %v543 = vperm.slane %v541, 0
    %v544 = vperm.slane %v541, 1
    %v545 = vperm.slane %v541, 2
    %v546 = vperm.slane %v541, 3
    %v547 = vperm.slane %v541, 4
    %v548 = vperm.slane %v541, 5
    %v549 = vperm.slane %v541, 6
    %v550 = vperm.slane %v541, 7
    %v559 = vadd.f32 %v439, %v543
    %v560 = vadd.f32 %v453, %v544
    %v561 = vadd.f32 %v467, %v545
    %v562 = vadd.f32 %v481, %v546
    %v563 = vadd.f32 %v495, %v547
    %v564 = vadd.f32 %v509, %v548
    %v565 = vadd.f32 %v523, %v549
    %v566 = vadd.f32 %v537, %v550
    %v567 = vadd.f32 %v441, %v543
    %v568 = vadd.f32 %v455, %v544
    %v569 = vadd.f32 %v469, %v545
    %v570 = vadd.f32 %v483, %v546
    %v571 = vadd.f32 %v497, %v547
    %v572 = vadd.f32 %v511, %v548
    %v573 = vadd.f32 %v525, %v549
    %v574 = vadd.f32 %v539, %v550
    %v575 = vmin.f32 %v559, 20.0
    %v576 = vmin.f32 %v560, 20.0
    %v577 = vmin.f32 %v561, 20.0
    %v578 = vmin.f32 %v562, 20.0
    %v579 = vmin.f32 %v563, 20.0
    %v580 = vmin.f32 %v564, 20.0
    %v581 = vmin.f32 %v565, 20.0
    %v582 = vmin.f32 %v566, 20.0
    %v583 = vmin.f32 %v567, 20.0
    %v584 = vmin.f32 %v568, 20.0
    %v585 = vmin.f32 %v569, 20.0
    %v586 = vmin.f32 %v570, 20.0
    %v587 = vmin.f32 %v571, 20.0
    %v588 = vmin.f32 %v572, 20.0
    %v589 = vmin.f32 %v573, 20.0
    %v590 = vmin.f32 %v574, 20.0
    %v591 = vmul.f32 %v575, 1.442695
    %v592 = vpow.pop %v591
    %v593 = vmul.f32 %v576, 1.442695
    %v594 = vpow.pop %v593
    %v595 = vmul.f32 %v577, 1.442695
    %v596 = vpow.pop %v595
    %v597 = vmul.f32 %v578, 1.442695
    %v598 = vpow.pop %v597
    %v599 = vmul.f32 %v579, 1.442695
    %v600 = vpow.pop %v599
    %v601 = vmul.f32 %v580, 1.442695
    %v602 = vpow.pop %v601
    %v603 = vmul.f32 %v581, 1.442695
    %v604 = vpow.pop %v603
    %v605 = vmul.f32 %v582, 1.442695
    %v606 = vpow.pop %v605
    %v607 = vmul.f32 %v583, 1.442695
    %v608 = vpow.pop %v607
    %v609 = vmul.f32 %v584, 1.442695
    %v610 = vpow.pop %v609
    %v611 = vmul.f32 %v585, 1.442695
    %v612 = vpow.pop %v611
    %v613 = vmul.f32 %v586, 1.442695
    %v614 = vpow.pop %v613
    %v615 = vmul.f32 %v587, 1.442695
    %v616 = vpow.pop %v615
    %v617 = vmul.f32 %v588, 1.442695
    %v618 = vpow.pop %v617
    %v619 = vmul.f32 %v589, 1.442695
    %v620 = vpow.pop %v619
    %v621 = vmul.f32 %v590, 1.442695
    %v622 = vpow.pop %v621
    %v623 = vadd.f32 %v592, 1.0
    %v624 = vadd.f32 %v594, 1.0
    %v625 = vadd.f32 %v596, 1.0
    %v626 = vadd.f32 %v598, 1.0
    %v627 = vadd.f32 %v600, 1.0
    %v628 = vadd.f32 %v602, 1.0
    %v629 = vadd.f32 %v604, 1.0
    %v630 = vadd.f32 %v606, 1.0
    %v631 = vadd.f32 %v608, 1.0
    %v632 = vadd.f32 %v610, 1.0
    %v633 = vadd.f32 %v612, 1.0
    %v634 = vadd.f32 %v614, 1.0
    %v635 = vadd.f32 %v616, 1.0
    %v636 = vadd.f32 %v618, 1.0
    %v637 = vadd.f32 %v620, 1.0
    %v638 = vadd.f32 %v622, 1.0
    %v639 = vmul.f32 %v623, %v623
    %v640 = vmul.f32 %v624, %v624
    %v641 = vmul.f32 %v625, %v625
    %v642 = vmul.f32 %v626, %v626
    %v643 = vmul.f32 %v627, %v627
    %v644 = vmul.f32 %v628, %v628
    %v645 = vmul.f32 %v629, %v629
    %v646 = vmul.f32 %v630, %v630
    %v647 = vmul.f32 %v631, %v631
    %v648 = vmul.f32 %v632, %v632
    %v649 = vmul.f32 %v633, %v633
    %v650 = vmul.f32 %v634, %v634
    %v651 = vmul.f32 %v635, %v635
    %v652 = vmul.f32 %v636, %v636
    %v653 = vmul.f32 %v637, %v637
    %v654 = vmul.f32 %v638, %v638
    %v655 = vsub.f32 %v639, 1.0
    %v656 = vsub.f32 %v640, 1.0
    %v657 = vsub.f32 %v641, 1.0
    %v658 = vsub.f32 %v642, 1.0
    %v659 = vsub.f32 %v643, 1.0
    %v660 = vsub.f32 %v644, 1.0
    %v661 = vsub.f32 %v645, 1.0
    %v662 = vsub.f32 %v646, 1.0
    %v663 = vsub.f32 %v647, 1.0
    %v664 = vsub.f32 %v648, 1.0
    %v665 = vsub.f32 %v649, 1.0
    %v666 = vsub.f32 %v650, 1.0
    %v667 = vsub.f32 %v651, 1.0
    %v668 = vsub.f32 %v652, 1.0
    %v669 = vsub.f32 %v653, 1.0
    %v670 = vsub.f32 %v654, 1.0
    %v671 = vmul.f32 %v559, %v655
    %v672 = vmul.f32 %v560, %v656
    %v673 = vmul.f32 %v561, %v657
    %v674 = vmul.f32 %v562, %v658
    %v675 = vmul.f32 %v563, %v659
    %v676 = vmul.f32 %v564, %v660
    %v677 = vmul.f32 %v565, %v661
    %v678 = vmul.f32 %v566, %v662
    %v679 = vmul.f32 %v567, %v663
    %v680 = vmul.f32 %v568, %v664
    %v681 = vmul.f32 %v569, %v665
    %v682 = vmul.f32 %v570, %v666
    %v683 = vmul.f32 %v571, %v667
    %v684 = vmul.f32 %v572, %v668
    %v685 = vmul.f32 %v573, %v669
    %v686 = vmul.f32 %v574, %v670
    %v687 = vadd.f32 %v639, 1.0
    %v688 = vadd.f32 %v640, 1.0
    %v689 = vadd.f32 %v641, 1.0
    %v690 = vadd.f32 %v642, 1.0
    %v691 = vadd.f32 %v643, 1.0
    %v692 = vadd.f32 %v644, 1.0
    %v693 = vadd.f32 %v645, 1.0
    %v694 = vadd.f32 %v646, 1.0
    %v695 = vadd.f32 %v647, 1.0
    %v696 = vadd.f32 %v648, 1.0
    %v697 = vadd.f32 %v649, 1.0
    %v698 = vadd.f32 %v650, 1.0
    %v699 = vadd.f32 %v651, 1.0
    %v700 = vadd.f32 %v652, 1.0
    %v701 = vadd.f32 %v653, 1.0
    %v702 = vadd.f32 %v654, 1.0
    %v703 = vrcp.pop %v687
    %v704 = vrcp.pop %v688
    %v705 = vrcp.pop %v689
    %v706 = vrcp.pop %v690
    %v707 = vrcp.pop %v691
    %v708 = vrcp.pop %v692
    %v709 = vrcp.pop %v693
    %v710 = vrcp.pop %v694
    %v711 = vrcp.pop %v695
    %v712 = vrcp.pop %v696
    %v713 = vrcp.pop %v697
    %v714 = vrcp.pop %v698
    %v715 = vrcp.pop %v699
    %v716 = vrcp.pop %v700
    %v717 = vrcp.pop %v701
    %v718 = vrcp.pop %v702
    %v719 = vmul.f32 %v671, %v703
    %v720 = vmul.f32 %v672, %v704
    %v721 = vmul.f32 %v673, %v705
    %v722 = vmul.f32 %v674, %v706
    %v723 = vmul.f32 %v675, %v707
    %v724 = vmul.f32 %v676, %v708
    %v725 = vmul.f32 %v677, %v709
    %v726 = vmul.f32 %v678, %v710
    %v727 = vmul.f32 %v679, %v711
    %v728 = vmul.f32 %v680, %v712
    %v729 = vmul.f32 %v681, %v713
    %v730 = vmul.f32 %v682, %v714
    %v731 = vmul.f32 %v683, %v715
    %v732 = vmul.f32 %v684, %v716
    %v733 = vmul.f32 %v685, %v717
    %v734 = vmul.f32 %v686, %v718
    %vm735 = vcmp.gt.f32.partialorder %v559, 20.0
    %vm736 = vcmp.gt.f32.partialorder %v560, 20.0
    %vm737 = vcmp.gt.f32.partialorder %v561, 20.0
    %vm738 = vcmp.gt.f32.partialorder %v562, 20.0
    %vm739 = vcmp.gt.f32.partialorder %v563, 20.0
    %vm740 = vcmp.gt.f32.partialorder %v564, 20.0
    %vm741 = vcmp.gt.f32.partialorder %v565, 20.0
    %vm742 = vcmp.gt.f32.partialorder %v566, 20.0
    %vm743 = vcmp.gt.f32.partialorder %v567, 20.0
    %vm744 = vcmp.gt.f32.partialorder %v568, 20.0
    %vm745 = vcmp.gt.f32.partialorder %v569, 20.0
    %vm746 = vcmp.gt.f32.partialorder %v570, 20.0
    %vm747 = vcmp.gt.f32.partialorder %v571, 20.0
    %vm748 = vcmp.gt.f32.partialorder %v572, 20.0
    %vm749 = vcmp.gt.f32.partialorder %v573, 20.0
    %vm750 = vcmp.gt.f32.partialorder %v574, 20.0
    %v751 = vsel %vm735, %v559, %v719
    %v752 = vsel %vm736, %v560, %v720
    %v753 = vsel %vm737, %v561, %v721
    %v754 = vsel %vm738, %v562, %v722
    %v755 = vsel %vm739, %v563, %v723
    %v756 = vsel %vm740, %v564, %v724
    %v757 = vsel %vm741, %v565, %v725
    %v758 = vsel %vm742, %v566, %v726
    %v759 = vsel %vm743, %v567, %v727
    %v760 = vsel %vm744, %v568, %v728
    %v761 = vsel %vm745, %v569, %v729
    %v762 = vsel %vm746, %v570, %v730
    %v763 = vsel %vm747, %v571, %v731
    %v764 = vsel %vm748, %v572, %v732
    %v765 = vsel %vm749, %v573, %v733
    %v766 = vsel %vm750, %v574, %v734
    %v767 = vpack.c.bf16 %v759, %v751
    %v768 = vpack.c.bf16 %v760, %v752
    %v769 = vpack.c.bf16 %v761, %v753
    %v770 = vpack.c.bf16 %v762, %v754
    %v771 = vpack.c.bf16 %v763, %v755
    %v772 = vpack.c.bf16 %v764, %v756
    %v773 = vpack.c.bf16 %v765, %v757
    %v774 = vpack.c.bf16 %v766, %v758
    %v775 = vld [vmem:[#allocation11] sm:$0xff]
    %v776 = vld [vmem:[#allocation11 + $0x8] sm:$0xff]
    %v777 = vld [vmem:[#allocation11 + $0x10] sm:$0xff]
    %v778 = vld [vmem:[#allocation11 + $0x18] sm:$0xff]
    %v779 = vld [vmem:[#allocation11 + $0x20] sm:$0xff]
    %v780 = vld [vmem:[#allocation11 + $0x28] sm:$0xff]
    %v781 = vld [vmem:[#allocation11 + $0x30] sm:$0xff]
    %v782 = vld [vmem:[#allocation11 + $0x38] sm:$0xff]
    %v783 = vld [vmem:[#allocation11 + $0x40] sm:$0xff]
    %v784 = vld [vmem:[#allocation11 + $0x48] sm:$0xff]
    %v785 = vld [vmem:[#allocation11 + $0x50] sm:$0xff]
    %v786 = vld [vmem:[#allocation11 + $0x58] sm:$0xff]
    %v787 = vld [vmem:[#allocation11 + $0x60] sm:$0xff]
    %v788 = vld [vmem:[#allocation11 + $0x68] sm:$0xff]
    %v789 = vld [vmem:[#allocation11 + $0x70] sm:$0xff]
    %v790 = vld [vmem:[#allocation11 + $0x78] sm:$0xff]
    %v791 = vld [vmem:[#allocation11 + $0x80] sm:$0xff]
    %v792 = vld [vmem:[#allocation11 + $0x88] sm:$0xff]
    %v793 = vld [vmem:[#allocation11 + $0x90] sm:$0xff]
    %v794 = vld [vmem:[#allocation11 + $0x98] sm:$0xff]
    %v795 = vld [vmem:[#allocation11 + $0xa0] sm:$0xff]
    %v796 = vld [vmem:[#allocation11 + $0xa8] sm:$0xff]
    %v797 = vld [vmem:[#allocation11 + $0xb0] sm:$0xff]
    %v798 = vld [vmem:[#allocation11 + $0xb8] sm:$0xff]
    %v799 = vld [vmem:[#allocation11 + $0xc0] sm:$0xff]
    %v800 = vld [vmem:[#allocation11 + $0xc8] sm:$0xff]
    %v801 = vld [vmem:[#allocation11 + $0xd0] sm:$0xff]
    %v802 = vld [vmem:[#allocation11 + $0xd8] sm:$0xff]
    %v803 = vld [vmem:[#allocation11 + $0xe0] sm:$0xff]
    %v804 = vld [vmem:[#allocation11 + $0xe8] sm:$0xff]
    %v805 = vld [vmem:[#allocation11 + $0xf0] sm:$0xff]
    %v806 = vld [vmem:[#allocation11 + $0xf8] sm:$0xff]
    %v807 = vld [vmem:[#allocation11 + $0x100] sm:$0xff]
    %v808 = vld [vmem:[#allocation11 + $0x108] sm:$0xff]
    %v809 = vld [vmem:[#allocation11 + $0x110] sm:$0xff]
    %v810 = vld [vmem:[#allocation11 + $0x118] sm:$0xff]
    %v811 = vld [vmem:[#allocation11 + $0x120] sm:$0xff]
    %v812 = vld [vmem:[#allocation11 + $0x128] sm:$0xff]
    %v813 = vld [vmem:[#allocation11 + $0x130] sm:$0xff]
    %v814 = vld [vmem:[#allocation11 + $0x138] sm:$0xff]
    %v815 = vld [vmem:[#allocation11 + $0x140] sm:$0xff]
    %v816 = vld [vmem:[#allocation11 + $0x148] sm:$0xff]
    %v817 = vld [vmem:[#allocation11 + $0x150] sm:$0xff]
    %v818 = vld [vmem:[#allocation11 + $0x158] sm:$0xff]
    %v819 = vld [vmem:[#allocation11 + $0x160] sm:$0xff]
    %v820 = vld [vmem:[#allocation11 + $0x168] sm:$0xff]
    %v821 = vld [vmem:[#allocation11 + $0x170] sm:$0xff]
    %v822 = vld [vmem:[#allocation11 + $0x178] sm:$0xff]
    %v823 = vld [vmem:[#allocation11 + $0x180] sm:$0xff]
    %v824 = vld [vmem:[#allocation11 + $0x188] sm:$0xff]
    %v825 = vld [vmem:[#allocation11 + $0x190] sm:$0xff]
    %v826 = vld [vmem:[#allocation11 + $0x198] sm:$0xff]
    %v827 = vld [vmem:[#allocation11 + $0x1a0] sm:$0xff]
    %v828 = vld [vmem:[#allocation11 + $0x1a8] sm:$0xff]
    %v829 = vld [vmem:[#allocation11 + $0x1b0] sm:$0xff]
    %v830 = vld [vmem:[#allocation11 + $0x1b8] sm:$0xff]
    %v831 = vld [vmem:[#allocation11 + $0x1c0] sm:$0xff]
    %v832 = vld [vmem:[#allocation11 + $0x1c8] sm:$0xff]
    %v833 = vld [vmem:[#allocation11 + $0x1d0] sm:$0xff]
    %v834 = vld [vmem:[#allocation11 + $0x1d8] sm:$0xff]
    %v835 = vld [vmem:[#allocation11 + $0x1e0] sm:$0xff]
    %v836 = vld [vmem:[#allocation11 + $0x1e8] sm:$0xff]
    %v837 = vld [vmem:[#allocation11 + $0x1f0] sm:$0xff]
    %v838 = vld [vmem:[#allocation11 + $0x1f8] sm:$0xff]
    %v839 = vld [vmem:[#allocation11 + $0x200] sm:$0xff]
    %v840 = vld [vmem:[#allocation11 + $0x208] sm:$0xff]
    %v841 = vld [vmem:[#allocation11 + $0x210] sm:$0xff]
    %v842 = vld [vmem:[#allocation11 + $0x218] sm:$0xff]
    %v843 = vld [vmem:[#allocation11 + $0x220] sm:$0xff]
    %v844 = vld [vmem:[#allocation11 + $0x228] sm:$0xff]
    %v845 = vld [vmem:[#allocation11 + $0x230] sm:$0xff]
    %v846 = vld [vmem:[#allocation11 + $0x238] sm:$0xff]
    %v847 = vld [vmem:[#allocation11 + $0x240] sm:$0xff]
    %v848 = vld [vmem:[#allocation11 + $0x248] sm:$0xff]
    %v849 = vld [vmem:[#allocation11 + $0x250] sm:$0xff]
    %v850 = vld [vmem:[#allocation11 + $0x258] sm:$0xff]
    %v851 = vld [vmem:[#allocation11 + $0x260] sm:$0xff]
    %v852 = vld [vmem:[#allocation11 + $0x268] sm:$0xff]
    %v853 = vld [vmem:[#allocation11 + $0x270] sm:$0xff]
    %v854 = vld [vmem:[#allocation11 + $0x278] sm:$0xff]
    %v855 = vld [vmem:[#allocation11 + $0x280] sm:$0xff]
    %v856 = vld [vmem:[#allocation11 + $0x288] sm:$0xff]
    %v857 = vld [vmem:[#allocation11 + $0x290] sm:$0xff]
    %v858 = vld [vmem:[#allocation11 + $0x298] sm:$0xff]
    %v859 = vld [vmem:[#allocation11 + $0x2a0] sm:$0xff]
    %v860 = vld [vmem:[#allocation11 + $0x2a8] sm:$0xff]
    %v861 = vld [vmem:[#allocation11 + $0x2b0] sm:$0xff]
    %v862 = vld [vmem:[#allocation11 + $0x2b8] sm:$0xff]
    %v863 = vld [vmem:[#allocation11 + $0x2c0] sm:$0xff]
    %v864 = vld [vmem:[#allocation11 + $0x2c8] sm:$0xff]
    %v865 = vld [vmem:[#allocation11 + $0x2d0] sm:$0xff]
    %v866 = vld [vmem:[#allocation11 + $0x2d8] sm:$0xff]
    %v867 = vld [vmem:[#allocation11 + $0x2e0] sm:$0xff]
    %v868 = vld [vmem:[#allocation11 + $0x2e8] sm:$0xff]
    %v869 = vld [vmem:[#allocation11 + $0x2f0] sm:$0xff]
    %v870 = vld [vmem:[#allocation11 + $0x2f8] sm:$0xff]
    %v871 = vld [vmem:[#allocation11 + $0x300] sm:$0xff]
    %v872 = vld [vmem:[#allocation11 + $0x308] sm:$0xff]
    %v873 = vld [vmem:[#allocation11 + $0x310] sm:$0xff]
    %v874 = vld [vmem:[#allocation11 + $0x318] sm:$0xff]
    %v875 = vld [vmem:[#allocation11 + $0x320] sm:$0xff]
    %v876 = vld [vmem:[#allocation11 + $0x328] sm:$0xff]
    %v877 = vld [vmem:[#allocation11 + $0x330] sm:$0xff]
    %v878 = vld [vmem:[#allocation11 + $0x338] sm:$0xff]
    %v879 = vld [vmem:[#allocation11 + $0x340] sm:$0xff]
    %v880 = vld [vmem:[#allocation11 + $0x348] sm:$0xff]
    %v881 = vld [vmem:[#allocation11 + $0x350] sm:$0xff]
    %v882 = vld [vmem:[#allocation11 + $0x358] sm:$0xff]
    %v883 = vld [vmem:[#allocation11 + $0x360] sm:$0xff]
    %v884 = vld [vmem:[#allocation11 + $0x368] sm:$0xff]
    %v885 = vld [vmem:[#allocation11 + $0x370] sm:$0xff]
    %v886 = vld [vmem:[#allocation11 + $0x378] sm:$0xff]
    %v887 = vld [vmem:[#allocation11 + $0x380] sm:$0xff]
    %v888 = vld [vmem:[#allocation11 + $0x388] sm:$0xff]
    %v889 = vld [vmem:[#allocation11 + $0x390] sm:$0xff]
    %v890 = vld [vmem:[#allocation11 + $0x398] sm:$0xff]
    %v891 = vld [vmem:[#allocation11 + $0x3a0] sm:$0xff]
    %v892 = vld [vmem:[#allocation11 + $0x3a8] sm:$0xff]
    %v893 = vld [vmem:[#allocation11 + $0x3b0] sm:$0xff]
    %v894 = vld [vmem:[#allocation11 + $0x3b8] sm:$0xff]
    %v895 = vld [vmem:[#allocation11 + $0x3c0] sm:$0xff]
    %v896 = vld [vmem:[#allocation11 + $0x3c8] sm:$0xff]
    %v897 = vld [vmem:[#allocation11 + $0x3d0] sm:$0xff]
    %v898 = vld [vmem:[#allocation11 + $0x3d8] sm:$0xff]
    %v899 = vld [vmem:[#allocation11 + $0x3e0] sm:$0xff]
    %v900 = vld [vmem:[#allocation11 + $0x3e8] sm:$0xff]
    %v901 = vld [vmem:[#allocation11 + $0x3f0] sm:$0xff]
    %v902 = vld [vmem:[#allocation11 + $0x3f8] sm:$0xff]
    %v903 = vld [vmem:[#allocation11 + $0x400] sm:$0xff]
    %v904 = vld [vmem:[#allocation11 + $0x408] sm:$0xff]
    %v905 = vld [vmem:[#allocation11 + $0x410] sm:$0xff]
    %v906 = vld [vmem:[#allocation11 + $0x418] sm:$0xff]
    %v907 = vld [vmem:[#allocation11 + $0x420] sm:$0xff]
    %v908 = vld [vmem:[#allocation11 + $0x428] sm:$0xff]
    %v909 = vld [vmem:[#allocation11 + $0x430] sm:$0xff]
    %v910 = vld [vmem:[#allocation11 + $0x438] sm:$0xff]
    %v911 = vld [vmem:[#allocation11 + $0x440] sm:$0xff]
    %v912 = vld [vmem:[#allocation11 + $0x448] sm:$0xff]
    %v913 = vld [vmem:[#allocation11 + $0x450] sm:$0xff]
    %v914 = vld [vmem:[#allocation11 + $0x458] sm:$0xff]
    %v915 = vld [vmem:[#allocation11 + $0x460] sm:$0xff]
    %v916 = vld [vmem:[#allocation11 + $0x468] sm:$0xff]
    %v917 = vld [vmem:[#allocation11 + $0x470] sm:$0xff]
    %v918 = vld [vmem:[#allocation11 + $0x478] sm:$0xff]
    %v919 = vld [vmem:[#allocation11 + $0x480] sm:$0xff]
    %v920 = vld [vmem:[#allocation11 + $0x488] sm:$0xff]
    %v921 = vld [vmem:[#allocation11 + $0x490] sm:$0xff]
    %v922 = vld [vmem:[#allocation11 + $0x498] sm:$0xff]
    %v923 = vld [vmem:[#allocation11 + $0x4a0] sm:$0xff]
    %v924 = vld [vmem:[#allocation11 + $0x4a8] sm:$0xff]
    %v925 = vld [vmem:[#allocation11 + $0x4b0] sm:$0xff]
    %v926 = vld [vmem:[#allocation11 + $0x4b8] sm:$0xff]
    %v927 = vld [vmem:[#allocation11 + $0x4c0] sm:$0xff]
    %v928 = vld [vmem:[#allocation11 + $0x4c8] sm:$0xff]
    %v929 = vld [vmem:[#allocation11 + $0x4d0] sm:$0xff]
    %v930 = vld [vmem:[#allocation11 + $0x4d8] sm:$0xff]
    %v931 = vld [vmem:[#allocation11 + $0x4e0] sm:$0xff]
    %v932 = vld [vmem:[#allocation11 + $0x4e8] sm:$0xff]
    %v933 = vld [vmem:[#allocation11 + $0x4f0] sm:$0xff]
    %v934 = vld [vmem:[#allocation11 + $0x4f8] sm:$0xff]
    %v935 = vld [vmem:[#allocation11 + $0x500] sm:$0xff]
    %v936 = vld [vmem:[#allocation11 + $0x508] sm:$0xff]
    %v937 = vld [vmem:[#allocation11 + $0x510] sm:$0xff]
    %v938 = vld [vmem:[#allocation11 + $0x518] sm:$0xff]
    %v939 = vld [vmem:[#allocation11 + $0x520] sm:$0xff]
    %v940 = vld [vmem:[#allocation11 + $0x528] sm:$0xff]
    %v941 = vld [vmem:[#allocation11 + $0x530] sm:$0xff]
    %v942 = vld [vmem:[#allocation11 + $0x538] sm:$0xff]
    %v943 = vld [vmem:[#allocation11 + $0x540] sm:$0xff]
    %v944 = vld [vmem:[#allocation11 + $0x548] sm:$0xff]
    %v945 = vld [vmem:[#allocation11 + $0x550] sm:$0xff]
    %v946 = vld [vmem:[#allocation11 + $0x558] sm:$0xff]
    %v947 = vld [vmem:[#allocation11 + $0x560] sm:$0xff]
    %v948 = vld [vmem:[#allocation11 + $0x568] sm:$0xff]
    %v949 = vld [vmem:[#allocation11 + $0x570] sm:$0xff]
    %v950 = vld [vmem:[#allocation11 + $0x578] sm:$0xff]
    %v951 = vld [vmem:[#allocation11 + $0x580] sm:$0xff]
    %v952 = vld [vmem:[#allocation11 + $0x588] sm:$0xff]
    %v953 = vld [vmem:[#allocation11 + $0x590] sm:$0xff]
    %v954 = vld [vmem:[#allocation11 + $0x598] sm:$0xff]
    %v955 = vld [vmem:[#allocation11 + $0x5a0] sm:$0xff]
    %v956 = vld [vmem:[#allocation11 + $0x5a8] sm:$0xff]
    %v957 = vld [vmem:[#allocation11 + $0x5b0] sm:$0xff]
    %v958 = vld [vmem:[#allocation11 + $0x5b8] sm:$0xff]
    %v959 = vld [vmem:[#allocation11 + $0x5c0] sm:$0xff]
    %v960 = vld [vmem:[#allocation11 + $0x5c8] sm:$0xff]
    %v961 = vld [vmem:[#allocation11 + $0x5d0] sm:$0xff]
    %v962 = vld [vmem:[#allocation11 + $0x5d8] sm:$0xff]
    %v963 = vld [vmem:[#allocation11 + $0x5e0] sm:$0xff]
    %v964 = vld [vmem:[#allocation11 + $0x5e8] sm:$0xff]
    %v965 = vld [vmem:[#allocation11 + $0x5f0] sm:$0xff]
    %v966 = vld [vmem:[#allocation11 + $0x5f8] sm:$0xff]
    %v967 = vld [vmem:[#allocation11 + $0x600] sm:$0xff]
    %v968 = vld [vmem:[#allocation11 + $0x608] sm:$0xff]
    %v969 = vld [vmem:[#allocation11 + $0x610] sm:$0xff]
    %v970 = vld [vmem:[#allocation11 + $0x618] sm:$0xff]
    %v971 = vld [vmem:[#allocation11 + $0x620] sm:$0xff]
    %v972 = vld [vmem:[#allocation11 + $0x628] sm:$0xff]
    %v973 = vld [vmem:[#allocation11 + $0x630] sm:$0xff]
    %v974 = vld [vmem:[#allocation11 + $0x638] sm:$0xff]
    %v975 = vld [vmem:[#allocation11 + $0x640] sm:$0xff]
    %v976 = vld [vmem:[#allocation11 + $0x648] sm:$0xff]
    %v977 = vld [vmem:[#allocation11 + $0x650] sm:$0xff]
    %v978 = vld [vmem:[#allocation11 + $0x658] sm:$0xff]
    %v979 = vld [vmem:[#allocation11 + $0x660] sm:$0xff]
    %v980 = vld [vmem:[#allocation11 + $0x668] sm:$0xff]
    %v981 = vld [vmem:[#allocation11 + $0x670] sm:$0xff]
    %v982 = vld [vmem:[#allocation11 + $0x678] sm:$0xff]
    %v983 = vld [vmem:[#allocation11 + $0x680] sm:$0xff]
    %v984 = vld [vmem:[#allocation11 + $0x688] sm:$0xff]
    %v985 = vld [vmem:[#allocation11 + $0x690] sm:$0xff]
    %v986 = vld [vmem:[#allocation11 + $0x698] sm:$0xff]
    %v987 = vld [vmem:[#allocation11 + $0x6a0] sm:$0xff]
    %v988 = vld [vmem:[#allocation11 + $0x6a8] sm:$0xff]
    %v989 = vld [vmem:[#allocation11 + $0x6b0] sm:$0xff]
    %v990 = vld [vmem:[#allocation11 + $0x6b8] sm:$0xff]
    %v991 = vld [vmem:[#allocation11 + $0x6c0] sm:$0xff]
    %v992 = vld [vmem:[#allocation11 + $0x6c8] sm:$0xff]
    %v993 = vld [vmem:[#allocation11 + $0x6d0] sm:$0xff]
    %v994 = vld [vmem:[#allocation11 + $0x6d8] sm:$0xff]
    %v995 = vld [vmem:[#allocation11 + $0x6e0] sm:$0xff]
    %v996 = vld [vmem:[#allocation11 + $0x6e8] sm:$0xff]
    %v997 = vld [vmem:[#allocation11 + $0x6f0] sm:$0xff]
    %v998 = vld [vmem:[#allocation11 + $0x6f8] sm:$0xff]
    %v999 = vld [vmem:[#allocation11 + $0x700] sm:$0xff]
    %v1000 = vld [vmem:[#allocation11 + $0x708] sm:$0xff]
    %v1001 = vld [vmem:[#allocation11 + $0x710] sm:$0xff]
    %v1002 = vld [vmem:[#allocation11 + $0x718] sm:$0xff]
    %v1003 = vld [vmem:[#allocation11 + $0x720] sm:$0xff]
    %v1004 = vld [vmem:[#allocation11 + $0x728] sm:$0xff]
    %v1005 = vld [vmem:[#allocation11 + $0x730] sm:$0xff]
    %v1006 = vld [vmem:[#allocation11 + $0x738] sm:$0xff]
    %v1007 = vld [vmem:[#allocation11 + $0x740] sm:$0xff]
    %v1008 = vld [vmem:[#allocation11 + $0x748] sm:$0xff]
    %v1009 = vld [vmem:[#allocation11 + $0x750] sm:$0xff]
    %v1010 = vld [vmem:[#allocation11 + $0x758] sm:$0xff]
    %v1011 = vld [vmem:[#allocation11 + $0x760] sm:$0xff]
    %v1012 = vld [vmem:[#allocation11 + $0x768] sm:$0xff]
    %v1013 = vld [vmem:[#allocation11 + $0x770] sm:$0xff]
    %v1014 = vld [vmem:[#allocation11 + $0x778] sm:$0xff]
    %v1015 = vld [vmem:[#allocation11 + $0x780] sm:$0xff]
    %v1016 = vld [vmem:[#allocation11 + $0x788] sm:$0xff]
    %v1017 = vld [vmem:[#allocation11 + $0x790] sm:$0xff]
    %v1018 = vld [vmem:[#allocation11 + $0x798] sm:$0xff]
    %v1019 = vld [vmem:[#allocation11 + $0x7a0] sm:$0xff]
    %v1020 = vld [vmem:[#allocation11 + $0x7a8] sm:$0xff]
    %v1021 = vld [vmem:[#allocation11 + $0x7b0] sm:$0xff]
    %v1022 = vld [vmem:[#allocation11 + $0x7b8] sm:$0xff]
    %v1023 = vld [vmem:[#allocation11 + $0x7c0] sm:$0xff]
    %v1024 = vld [vmem:[#allocation11 + $0x7c8] sm:$0xff]
    %v1025 = vld [vmem:[#allocation11 + $0x7d0] sm:$0xff]
    %v1026 = vld [vmem:[#allocation11 + $0x7d8] sm:$0xff]
    %v1027 = vld [vmem:[#allocation11 + $0x7e0] sm:$0xff]
    %v1028 = vld [vmem:[#allocation11 + $0x7e8] sm:$0xff]
    %v1029 = vld [vmem:[#allocation11 + $0x7f0] sm:$0xff]
    %v1030 = vld [vmem:[#allocation11 + $0x7f8] sm:$0xff]
    %v1031 = vld [vmem:[#allocation13] sm:$0xff]
    %v1033 = vperm.slane %v1031, 0
    %v1034 = vperm.slane %v1031, 1
    %v1035 = vperm.slane %v1031, 2
    %v1036 = vperm.slane %v1031, 3
    %v1037 = vperm.slane %v1031, 4
    %v1038 = vperm.slane %v1031, 5
    %v1039 = vperm.slane %v1031, 6
    %v1040 = vperm.slane %v1031, 7
    %v1305 = vunpack.c.l.b16 %v775
    %v1306 = vunpack.c.h.b16 %v775
    %v1307 = vunpack.c.l.b16 %v776
    %v1308 = vunpack.c.h.b16 %v776
    %v1309 = vunpack.c.l.b16 %v777
    %v1310 = vunpack.c.h.b16 %v777
    %v1311 = vunpack.c.l.b16 %v778
    %v1312 = vunpack.c.h.b16 %v778
    %v1313 = vunpack.c.l.b16 %v779
    %v1314 = vunpack.c.h.b16 %v779
    %v1315 = vunpack.c.l.b16 %v780
    %v1316 = vunpack.c.h.b16 %v780
    %v1317 = vunpack.c.l.b16 %v781
    %v1318 = vunpack.c.h.b16 %v781
    %v1319 = vunpack.c.l.b16 %v782
    %v1320 = vunpack.c.h.b16 %v782
    %v1321 = vunpack.c.l.b16 %v783
    %v1322 = vunpack.c.h.b16 %v783
    %v1323 = vunpack.c.l.b16 %v784
    %v1324 = vunpack.c.h.b16 %v784
    %v1325 = vunpack.c.l.b16 %v785
    %v1326 = vunpack.c.h.b16 %v785
    %v1327 = vunpack.c.l.b16 %v786
    %v1328 = vunpack.c.h.b16 %v786
    %v1329 = vunpack.c.l.b16 %v787
    %v1330 = vunpack.c.h.b16 %v787
    %v1331 = vunpack.c.l.b16 %v788
    %v1332 = vunpack.c.h.b16 %v788
    %v1333 = vunpack.c.l.b16 %v789
    %v1334 = vunpack.c.h.b16 %v789
    %v1335 = vunpack.c.l.b16 %v790
    %v1336 = vunpack.c.h.b16 %v790
    %v1337 = vunpack.c.l.b16 %v791
    %v1338 = vunpack.c.h.b16 %v791
    %v1339 = vunpack.c.l.b16 %v792
    %v1340 = vunpack.c.h.b16 %v792
    %v1341 = vunpack.c.l.b16 %v793
    %v1342 = vunpack.c.h.b16 %v793
    %v1343 = vunpack.c.l.b16 %v794
    %v1344 = vunpack.c.h.b16 %v794
    %v1345 = vunpack.c.l.b16 %v795
    %v1346 = vunpack.c.h.b16 %v795
    %v1347 = vunpack.c.l.b16 %v796
    %v1348 = vunpack.c.h.b16 %v796
    %v1349 = vunpack.c.l.b16 %v797
    %v1350 = vunpack.c.h.b16 %v797
    %v1351 = vunpack.c.l.b16 %v798
    %v1352 = vunpack.c.h.b16 %v798
    %v1353 = vunpack.c.l.b16 %v799
    %v1354 = vunpack.c.h.b16 %v799
    %v1355 = vunpack.c.l.b16 %v800
    %v1356 = vunpack.c.h.b16 %v800
    %v1357 = vunpack.c.l.b16 %v801
    %v1358 = vunpack.c.h.b16 %v801
    %v1359 = vunpack.c.l.b16 %v802
    %v1360 = vunpack.c.h.b16 %v802
    %v1361 = vunpack.c.l.b16 %v803
    %v1362 = vunpack.c.h.b16 %v803
    %v1363 = vunpack.c.l.b16 %v804
    %v1364 = vunpack.c.h.b16 %v804
    %v1365 = vunpack.c.l.b16 %v805
    %v1366 = vunpack.c.h.b16 %v805
    %v1367 = vunpack.c.l.b16 %v806
    %v1368 = vunpack.c.h.b16 %v806
    %v1369 = vunpack.c.l.b16 %v807
    %v1370 = vunpack.c.h.b16 %v807
    %v1371 = vunpack.c.l.b16 %v808
    %v1372 = vunpack.c.h.b16 %v808
    %v1373 = vunpack.c.l.b16 %v809
    %v1374 = vunpack.c.h.b16 %v809
    %v1375 = vunpack.c.l.b16 %v810
    %v1376 = vunpack.c.h.b16 %v810
    %v1377 = vunpack.c.l.b16 %v811
    %v1378 = vunpack.c.h.b16 %v811
    %v1379 = vunpack.c.l.b16 %v812
    %v1380 = vunpack.c.h.b16 %v812
    %v1381 = vunpack.c.l.b16 %v813
    %v1382 = vunpack.c.h.b16 %v813
    %v1383 = vunpack.c.l.b16 %v814
    %v1384 = vunpack.c.h.b16 %v814
    %v1385 = vunpack.c.l.b16 %v815
    %v1386 = vunpack.c.h.b16 %v815
    %v1387 = vunpack.c.l.b16 %v816
    %v1388 = vunpack.c.h.b16 %v816
    %v1389 = vunpack.c.l.b16 %v817
    %v1390 = vunpack.c.h.b16 %v817
    %v1391 = vunpack.c.l.b16 %v818
    %v1392 = vunpack.c.h.b16 %v818
    %v1393 = vunpack.c.l.b16 %v819
    %v1394 = vunpack.c.h.b16 %v819
    %v1395 = vunpack.c.l.b16 %v820
    %v1396 = vunpack.c.h.b16 %v820
    %v1397 = vunpack.c.l.b16 %v821
    %v1398 = vunpack.c.h.b16 %v821
    %v1399 = vunpack.c.l.b16 %v822
    %v1400 = vunpack.c.h.b16 %v822
    %v1401 = vunpack.c.l.b16 %v823
    %v1402 = vunpack.c.h.b16 %v823
    %v1403 = vunpack.c.l.b16 %v824
    %v1404 = vunpack.c.h.b16 %v824
    %v1405 = vunpack.c.l.b16 %v825
    %v1406 = vunpack.c.h.b16 %v825
    %v1407 = vunpack.c.l.b16 %v826
    %v1408 = vunpack.c.h.b16 %v826
    %v1409 = vunpack.c.l.b16 %v827
    %v1410 = vunpack.c.h.b16 %v827
    %v1411 = vunpack.c.l.b16 %v828
    %v1412 = vunpack.c.h.b16 %v828
    %v1413 = vunpack.c.l.b16 %v829
    %v1414 = vunpack.c.h.b16 %v829
    %v1415 = vunpack.c.l.b16 %v830
    %v1416 = vunpack.c.h.b16 %v830
    %v1417 = vunpack.c.l.b16 %v831
    %v1418 = vunpack.c.h.b16 %v831
    %v1419 = vunpack.c.l.b16 %v832
    %v1420 = vunpack.c.h.b16 %v832
    %v1421 = vunpack.c.l.b16 %v833
    %v1422 = vunpack.c.h.b16 %v833
    %v1423 = vunpack.c.l.b16 %v834
    %v1424 = vunpack.c.h.b16 %v834
    %v1425 = vunpack.c.l.b16 %v835
    %v1426 = vunpack.c.h.b16 %v835
    %v1427 = vunpack.c.l.b16 %v836
    %v1428 = vunpack.c.h.b16 %v836
    %v1429 = vunpack.c.l.b16 %v837
    %v1430 = vunpack.c.h.b16 %v837
    %v1431 = vunpack.c.l.b16 %v838
    %v1432 = vunpack.c.h.b16 %v838
    %v1433 = vunpack.c.l.b16 %v839
    %v1434 = vunpack.c.h.b16 %v839
    %v1435 = vunpack.c.l.b16 %v840
    %v1436 = vunpack.c.h.b16 %v840
    %v1437 = vunpack.c.l.b16 %v841
    %v1438 = vunpack.c.h.b16 %v841
    %v1439 = vunpack.c.l.b16 %v842
    %v1440 = vunpack.c.h.b16 %v842
    %v1441 = vunpack.c.l.b16 %v843
    %v1442 = vunpack.c.h.b16 %v843
    %v1443 = vunpack.c.l.b16 %v844
    %v1444 = vunpack.c.h.b16 %v844
    %v1445 = vunpack.c.l.b16 %v845
    %v1446 = vunpack.c.h.b16 %v845
    %v1447 = vunpack.c.l.b16 %v846
    %v1448 = vunpack.c.h.b16 %v846
    %v1449 = vunpack.c.l.b16 %v847
    %v1450 = vunpack.c.h.b16 %v847
    %v1451 = vunpack.c.l.b16 %v848
    %v1452 = vunpack.c.h.b16 %v848
    %v1453 = vunpack.c.l.b16 %v849
    %v1454 = vunpack.c.h.b16 %v849
    %v1455 = vunpack.c.l.b16 %v850
    %v1456 = vunpack.c.h.b16 %v850
    %v1457 = vunpack.c.l.b16 %v851
    %v1458 = vunpack.c.h.b16 %v851
    %v1459 = vunpack.c.l.b16 %v852
    %v1460 = vunpack.c.h.b16 %v852
    %v1461 = vunpack.c.l.b16 %v853
    %v1462 = vunpack.c.h.b16 %v853
    %v1463 = vunpack.c.l.b16 %v854
    %v1464 = vunpack.c.h.b16 %v854
    %v1465 = vunpack.c.l.b16 %v855
    %v1466 = vunpack.c.h.b16 %v855
    %v1467 = vunpack.c.l.b16 %v856
    %v1468 = vunpack.c.h.b16 %v856
    %v1469 = vunpack.c.l.b16 %v857
    %v1470 = vunpack.c.h.b16 %v857
    %v1471 = vunpack.c.l.b16 %v858
    %v1472 = vunpack.c.h.b16 %v858
    %v1473 = vunpack.c.l.b16 %v859
    %v1474 = vunpack.c.h.b16 %v859
    %v1475 = vunpack.c.l.b16 %v860
    %v1476 = vunpack.c.h.b16 %v860
    %v1477 = vunpack.c.l.b16 %v861
    %v1478 = vunpack.c.h.b16 %v861
    %v1479 = vunpack.c.l.b16 %v862
    %v1480 = vunpack.c.h.b16 %v862
    %v1481 = vunpack.c.l.b16 %v863
    %v1482 = vunpack.c.h.b16 %v863
    %v1483 = vunpack.c.l.b16 %v864
    %v1484 = vunpack.c.h.b16 %v864
    %v1485 = vunpack.c.l.b16 %v865
    %v1486 = vunpack.c.h.b16 %v865
    %v1487 = vunpack.c.l.b16 %v866
    %v1488 = vunpack.c.h.b16 %v866
    %v1489 = vunpack.c.l.b16 %v867
    %v1490 = vunpack.c.h.b16 %v867
    %v1491 = vunpack.c.l.b16 %v868
    %v1492 = vunpack.c.h.b16 %v868
    %v1493 = vunpack.c.l.b16 %v869
    %v1494 = vunpack.c.h.b16 %v869
    %v1495 = vunpack.c.l.b16 %v870
    %v1496 = vunpack.c.h.b16 %v870
    %v1497 = vunpack.c.l.b16 %v871
    %v1498 = vunpack.c.h.b16 %v871
    %v1499 = vunpack.c.l.b16 %v872
    %v1500 = vunpack.c.h.b16 %v872
    %v1501 = vunpack.c.l.b16 %v873
    %v1502 = vunpack.c.h.b16 %v873
    %v1503 = vunpack.c.l.b16 %v874
    %v1504 = vunpack.c.h.b16 %v874
    %v1505 = vunpack.c.l.b16 %v875
    %v1506 = vunpack.c.h.b16 %v875
    %v1507 = vunpack.c.l.b16 %v876
    %v1508 = vunpack.c.h.b16 %v876
    %v1509 = vunpack.c.l.b16 %v877
    %v1510 = vunpack.c.h.b16 %v877
    %v1511 = vunpack.c.l.b16 %v878
    %v1512 = vunpack.c.h.b16 %v878
    %v1513 = vunpack.c.l.b16 %v879
    %v1514 = vunpack.c.h.b16 %v879
    %v1515 = vunpack.c.l.b16 %v880
    %v1516 = vunpack.c.h.b16 %v880
    %v1517 = vunpack.c.l.b16 %v881
    %v1518 = vunpack.c.h.b16 %v881
    %v1519 = vunpack.c.l.b16 %v882
    %v1520 = vunpack.c.h.b16 %v882
    %v1521 = vunpack.c.l.b16 %v883
    %v1522 = vunpack.c.h.b16 %v883
    %v1523 = vunpack.c.l.b16 %v884
    %v1524 = vunpack.c.h.b16 %v884
    %v1525 = vunpack.c.l.b16 %v885
    %v1526 = vunpack.c.h.b16 %v885
    %v1527 = vunpack.c.l.b16 %v886
    %v1528 = vunpack.c.h.b16 %v886
    %v1529 = vunpack.c.l.b16 %v887
    %v1530 = vunpack.c.h.b16 %v887
    %v1531 = vunpack.c.l.b16 %v888
    %v1532 = vunpack.c.h.b16 %v888
    %v1533 = vunpack.c.l.b16 %v889
    %v1534 = vunpack.c.h.b16 %v889
    %v1535 = vunpack.c.l.b16 %v890
    %v1536 = vunpack.c.h.b16 %v890
    %v1537 = vunpack.c.l.b16 %v891
    %v1538 = vunpack.c.h.b16 %v891
    %v1539 = vunpack.c.l.b16 %v892
    %v1540 = vunpack.c.h.b16 %v892
    %v1541 = vunpack.c.l.b16 %v893
    %v1542 = vunpack.c.h.b16 %v893
    %v1543 = vunpack.c.l.b16 %v894
    %v1544 = vunpack.c.h.b16 %v894
    %v1545 = vunpack.c.l.b16 %v895
    %v1546 = vunpack.c.h.b16 %v895
    %v1547 = vunpack.c.l.b16 %v896
    %v1548 = vunpack.c.h.b16 %v896
    %v1549 = vunpack.c.l.b16 %v897
    %v1550 = vunpack.c.h.b16 %v897
    %v1551 = vunpack.c.l.b16 %v898
    %v1552 = vunpack.c.h.b16 %v898
    %v1553 = vunpack.c.l.b16 %v899
    %v1554 = vunpack.c.h.b16 %v899
    %v1555 = vunpack.c.l.b16 %v900
    %v1556 = vunpack.c.h.b16 %v900
    %v1557 = vunpack.c.l.b16 %v901
    %v1558 = vunpack.c.h.b16 %v901
    %v1559 = vunpack.c.l.b16 %v902
    %v1560 = vunpack.c.h.b16 %v902
    %v1561 = vunpack.c.l.b16 %v903
    %v1562 = vunpack.c.h.b16 %v903
    %v1563 = vunpack.c.l.b16 %v904
    %v1564 = vunpack.c.h.b16 %v904
    %v1565 = vunpack.c.l.b16 %v905
    %v1566 = vunpack.c.h.b16 %v905
    %v1567 = vunpack.c.l.b16 %v906
    %v1568 = vunpack.c.h.b16 %v906
    %v1569 = vunpack.c.l.b16 %v907
    %v1570 = vunpack.c.h.b16 %v907
    %v1571 = vunpack.c.l.b16 %v908
    %v1572 = vunpack.c.h.b16 %v908
    %v1573 = vunpack.c.l.b16 %v909
    %v1574 = vunpack.c.h.b16 %v909
    %v1575 = vunpack.c.l.b16 %v910
    %v1576 = vunpack.c.h.b16 %v910
    %v1577 = vunpack.c.l.b16 %v911
    %v1578 = vunpack.c.h.b16 %v911
    %v1579 = vunpack.c.l.b16 %v912
    %v1580 = vunpack.c.h.b16 %v912
    %v1581 = vunpack.c.l.b16 %v913
    %v1582 = vunpack.c.h.b16 %v913
    %v1583 = vunpack.c.l.b16 %v914
    %v1584 = vunpack.c.h.b16 %v914
    %v1585 = vunpack.c.l.b16 %v915
    %v1586 = vunpack.c.h.b16 %v915
    %v1587 = vunpack.c.l.b16 %v916
    %v1588 = vunpack.c.h.b16 %v916
    %v1589 = vunpack.c.l.b16 %v917
    %v1590 = vunpack.c.h.b16 %v917
    %v1591 = vunpack.c.l.b16 %v918
    %v1592 = vunpack.c.h.b16 %v918
    %v1593 = vunpack.c.l.b16 %v919
    %v1594 = vunpack.c.h.b16 %v919
    %v1595 = vunpack.c.l.b16 %v920
    %v1596 = vunpack.c.h.b16 %v920
    %v1597 = vunpack.c.l.b16 %v921
    %v1598 = vunpack.c.h.b16 %v921
    %v1599 = vunpack.c.l.b16 %v922
    %v1600 = vunpack.c.h.b16 %v922
    %v1601 = vunpack.c.l.b16 %v923
    %v1602 = vunpack.c.h.b16 %v923
    %v1603 = vunpack.c.l.b16 %v924
    %v1604 = vunpack.c.h.b16 %v924
    %v1605 = vunpack.c.l.b16 %v925
    %v1606 = vunpack.c.h.b16 %v925
    %v1607 = vunpack.c.l.b16 %v926
    %v1608 = vunpack.c.h.b16 %v926
    %v1609 = vunpack.c.l.b16 %v927
    %v1610 = vunpack.c.h.b16 %v927
    %v1611 = vunpack.c.l.b16 %v928
    %v1612 = vunpack.c.h.b16 %v928
    %v1613 = vunpack.c.l.b16 %v929
    %v1614 = vunpack.c.h.b16 %v929
    %v1615 = vunpack.c.l.b16 %v930
    %v1616 = vunpack.c.h.b16 %v930
    %v1617 = vunpack.c.l.b16 %v931
    %v1618 = vunpack.c.h.b16 %v931
    %v1619 = vunpack.c.l.b16 %v932
    %v1620 = vunpack.c.h.b16 %v932
    %v1621 = vunpack.c.l.b16 %v933
    %v1622 = vunpack.c.h.b16 %v933
    %v1623 = vunpack.c.l.b16 %v934
    %v1624 = vunpack.c.h.b16 %v934
    %v1625 = vunpack.c.l.b16 %v935
    %v1626 = vunpack.c.h.b16 %v935
    %v1627 = vunpack.c.l.b16 %v936
    %v1628 = vunpack.c.h.b16 %v936
    %v1629 = vunpack.c.l.b16 %v937
    %v1630 = vunpack.c.h.b16 %v937
    %v1631 = vunpack.c.l.b16 %v938
    %v1632 = vunpack.c.h.b16 %v938
    %v1633 = vunpack.c.l.b16 %v939
    %v1634 = vunpack.c.h.b16 %v939
    %v1635 = vunpack.c.l.b16 %v940
    %v1636 = vunpack.c.h.b16 %v940
    %v1637 = vunpack.c.l.b16 %v941
    %v1638 = vunpack.c.h.b16 %v941
    %v1639 = vunpack.c.l.b16 %v942
    %v1640 = vunpack.c.h.b16 %v942
    %v1641 = vunpack.c.l.b16 %v943
    %v1642 = vunpack.c.h.b16 %v943
    %v1643 = vunpack.c.l.b16 %v944
    %v1644 = vunpack.c.h.b16 %v944
    %v1645 = vunpack.c.l.b16 %v945
    %v1646 = vunpack.c.h.b16 %v945
    %v1647 = vunpack.c.l.b16 %v946
    %v1648 = vunpack.c.h.b16 %v946
    %v1649 = vunpack.c.l.b16 %v947
    %v1650 = vunpack.c.h.b16 %v947
    %v1651 = vunpack.c.l.b16 %v948
    %v1652 = vunpack.c.h.b16 %v948
    %v1653 = vunpack.c.l.b16 %v949
    %v1654 = vunpack.c.h.b16 %v949
    %v1655 = vunpack.c.l.b16 %v950
    %v1656 = vunpack.c.h.b16 %v950
    %v1657 = vunpack.c.l.b16 %v951
    %v1658 = vunpack.c.h.b16 %v951
    %v1659 = vunpack.c.l.b16 %v952
    %v1660 = vunpack.c.h.b16 %v952
    %v1661 = vunpack.c.l.b16 %v953
    %v1662 = vunpack.c.h.b16 %v953
    %v1663 = vunpack.c.l.b16 %v954
    %v1664 = vunpack.c.h.b16 %v954
    %v1665 = vunpack.c.l.b16 %v955
    %v1666 = vunpack.c.h.b16 %v955
    %v1667 = vunpack.c.l.b16 %v956
    %v1668 = vunpack.c.h.b16 %v956
    %v1669 = vunpack.c.l.b16 %v957
    %v1670 = vunpack.c.h.b16 %v957
    %v1671 = vunpack.c.l.b16 %v958
    %v1672 = vunpack.c.h.b16 %v958
    %v1673 = vunpack.c.l.b16 %v959
    %v1674 = vunpack.c.h.b16 %v959
    %v1675 = vunpack.c.l.b16 %v960
    %v1676 = vunpack.c.h.b16 %v960
    %v1677 = vunpack.c.l.b16 %v961
    %v1678 = vunpack.c.h.b16 %v961
    %v1679 = vunpack.c.l.b16 %v962
    %v1680 = vunpack.c.h.b16 %v962
    %v1681 = vunpack.c.l.b16 %v963
    %v1682 = vunpack.c.h.b16 %v963
    %v1683 = vunpack.c.l.b16 %v964
    %v1684 = vunpack.c.h.b16 %v964
    %v1685 = vunpack.c.l.b16 %v965
    %v1686 = vunpack.c.h.b16 %v965
    %v1687 = vunpack.c.l.b16 %v966
    %v1688 = vunpack.c.h.b16 %v966
    %v1689 = vunpack.c.l.b16 %v967
    %v1690 = vunpack.c.h.b16 %v967
    %v1691 = vunpack.c.l.b16 %v968
    %v1692 = vunpack.c.h.b16 %v968
    %v1693 = vunpack.c.l.b16 %v969
    %v1694 = vunpack.c.h.b16 %v969
    %v1695 = vunpack.c.l.b16 %v970
    %v1696 = vunpack.c.h.b16 %v970
    %v1697 = vunpack.c.l.b16 %v971
    %v1698 = vunpack.c.h.b16 %v971
    %v1699 = vunpack.c.l.b16 %v972
    %v1700 = vunpack.c.h.b16 %v972
    %v1701 = vunpack.c.l.b16 %v973
    %v1702 = vunpack.c.h.b16 %v973
    %v1703 = vunpack.c.l.b16 %v974
    %v1704 = vunpack.c.h.b16 %v974
    %v1705 = vunpack.c.l.b16 %v975
    %v1706 = vunpack.c.h.b16 %v975
    %v1707 = vunpack.c.l.b16 %v976
    %v1708 = vunpack.c.h.b16 %v976
    %v1709 = vunpack.c.l.b16 %v977
    %v1710 = vunpack.c.h.b16 %v977
    %v1711 = vunpack.c.l.b16 %v978
    %v1712 = vunpack.c.h.b16 %v978
    %v1713 = vunpack.c.l.b16 %v979
    %v1714 = vunpack.c.h.b16 %v979
    %v1715 = vunpack.c.l.b16 %v980
    %v1716 = vunpack.c.h.b16 %v980
    %v1717 = vunpack.c.l.b16 %v981
    %v1718 = vunpack.c.h.b16 %v981
    %v1719 = vunpack.c.l.b16 %v982
    %v1720 = vunpack.c.h.b16 %v982
    %v1721 = vunpack.c.l.b16 %v983
    %v1722 = vunpack.c.h.b16 %v983
    %v1723 = vunpack.c.l.b16 %v984
    %v1724 = vunpack.c.h.b16 %v984
    %v1725 = vunpack.c.l.b16 %v985
    %v1726 = vunpack.c.h.b16 %v985
    %v1727 = vunpack.c.l.b16 %v986
    %v1728 = vunpack.c.h.b16 %v986
    %v1729 = vunpack.c.l.b16 %v987
    %v1730 = vunpack.c.h.b16 %v987
    %v1731 = vunpack.c.l.b16 %v988
    %v1732 = vunpack.c.h.b16 %v988
    %v1733 = vunpack.c.l.b16 %v989
    %v1734 = vunpack.c.h.b16 %v989
    %v1735 = vunpack.c.l.b16 %v990
    %v1736 = vunpack.c.h.b16 %v990
    %v1737 = vunpack.c.l.b16 %v991
    %v1738 = vunpack.c.h.b16 %v991
    %v1739 = vunpack.c.l.b16 %v992
    %v1740 = vunpack.c.h.b16 %v992
    %v1741 = vunpack.c.l.b16 %v993
    %v1742 = vunpack.c.h.b16 %v993
    %v1743 = vunpack.c.l.b16 %v994
    %v1744 = vunpack.c.h.b16 %v994
    %v1745 = vunpack.c.l.b16 %v995
    %v1746 = vunpack.c.h.b16 %v995
    %v1747 = vunpack.c.l.b16 %v996
    %v1748 = vunpack.c.h.b16 %v996
    %v1749 = vunpack.c.l.b16 %v997
    %v1750 = vunpack.c.h.b16 %v997
    %v1751 = vunpack.c.l.b16 %v998
    %v1752 = vunpack.c.h.b16 %v998
    %v1753 = vunpack.c.l.b16 %v999
    %v1754 = vunpack.c.h.b16 %v999
    %v1755 = vunpack.c.l.b16 %v1000
    %v1756 = vunpack.c.h.b16 %v1000
    %v1757 = vunpack.c.l.b16 %v1001
    %v1758 = vunpack.c.h.b16 %v1001
    %v1759 = vunpack.c.l.b16 %v1002
    %v1760 = vunpack.c.h.b16 %v1002
    %v1761 = vunpack.c.l.b16 %v1003
    %v1762 = vunpack.c.h.b16 %v1003
    %v1763 = vunpack.c.l.b16 %v1004
    %v1764 = vunpack.c.h.b16 %v1004
    %v1765 = vunpack.c.l.b16 %v1005
    %v1766 = vunpack.c.h.b16 %v1005
    %v1767 = vunpack.c.l.b16 %v1006
    %v1768 = vunpack.c.h.b16 %v1006
    %v1769 = vunpack.c.l.b16 %v1007
    %v1770 = vunpack.c.h.b16 %v1007
    %v1771 = vunpack.c.l.b16 %v1008
    %v1772 = vunpack.c.h.b16 %v1008
    %v1773 = vunpack.c.l.b16 %v1009
    %v1774 = vunpack.c.h.b16 %v1009
    %v1775 = vunpack.c.l.b16 %v1010
    %v1776 = vunpack.c.h.b16 %v1010
    %v1777 = vunpack.c.l.b16 %v1011
    %v1778 = vunpack.c.h.b16 %v1011
    %v1779 = vunpack.c.l.b16 %v1012
    %v1780 = vunpack.c.h.b16 %v1012
    %v1781 = vunpack.c.l.b16 %v1013
    %v1782 = vunpack.c.h.b16 %v1013
    %v1783 = vunpack.c.l.b16 %v1014
    %v1784 = vunpack.c.h.b16 %v1014
    %v1785 = vunpack.c.l.b16 %v1015
    %v1786 = vunpack.c.h.b16 %v1015
    %v1787 = vunpack.c.l.b16 %v1016
    %v1788 = vunpack.c.h.b16 %v1016
    %v1789 = vunpack.c.l.b16 %v1017
    %v1790 = vunpack.c.h.b16 %v1017
    %v1791 = vunpack.c.l.b16 %v1018
    %v1792 = vunpack.c.h.b16 %v1018
    %v1793 = vunpack.c.l.b16 %v1019
    %v1794 = vunpack.c.h.b16 %v1019
    %v1795 = vunpack.c.l.b16 %v1020
    %v1796 = vunpack.c.h.b16 %v1020
    %v1797 = vunpack.c.l.b16 %v1021
    %v1798 = vunpack.c.h.b16 %v1021
    %v1799 = vunpack.c.l.b16 %v1022
    %v1800 = vunpack.c.h.b16 %v1022
    %v1801 = vunpack.c.l.b16 %v1023
    %v1802 = vunpack.c.h.b16 %v1023
    %v1803 = vunpack.c.l.b16 %v1024
    %v1804 = vunpack.c.h.b16 %v1024
    %v1805 = vunpack.c.l.b16 %v1025
    %v1806 = vunpack.c.h.b16 %v1025
    %v1807 = vunpack.c.l.b16 %v1026
    %v1808 = vunpack.c.h.b16 %v1026
    %v1809 = vunpack.c.l.b16 %v1027
    %v1810 = vunpack.c.h.b16 %v1027
    %v1811 = vunpack.c.l.b16 %v1028
    %v1812 = vunpack.c.h.b16 %v1028
    %v1813 = vunpack.c.l.b16 %v1029
    %v1814 = vunpack.c.h.b16 %v1029
    %v1815 = vunpack.c.l.b16 %v1030
    %v1816 = vunpack.c.h.b16 %v1030
    %v1817 = vpack.c.b16 %v1313, %v1305
    %v1818 = vpack.c.b16 %v1314, %v1306
    %v1819 = vpack.c.b16 %v1315, %v1307
    %v1820 = vpack.c.b16 %v1316, %v1308
    %v1821 = vpack.c.b16 %v1317, %v1309
    %v1822 = vpack.c.b16 %v1318, %v1310
    %v1823 = vpack.c.b16 %v1319, %v1311
    %v1824 = vpack.c.b16 %v1320, %v1312
    %v1825 = vpack.c.b16 %v1329, %v1321
    %v1826 = vpack.c.b16 %v1330, %v1322
    %v1827 = vpack.c.b16 %v1331, %v1323
    %v1828 = vpack.c.b16 %v1332, %v1324
    %v1829 = vpack.c.b16 %v1333, %v1325
    %v1830 = vpack.c.b16 %v1334, %v1326
    %v1831 = vpack.c.b16 %v1335, %v1327
    %v1832 = vpack.c.b16 %v1336, %v1328
    %v1833 = vpack.c.b16 %v1345, %v1337
    %v1834 = vpack.c.b16 %v1346, %v1338
    %v1835 = vpack.c.b16 %v1347, %v1339
    %v1836 = vpack.c.b16 %v1348, %v1340
    %v1837 = vpack.c.b16 %v1349, %v1341
    %v1838 = vpack.c.b16 %v1350, %v1342
    %v1839 = vpack.c.b16 %v1351, %v1343
    %v1840 = vpack.c.b16 %v1352, %v1344
    %v1841 = vpack.c.b16 %v1361, %v1353
    %v1842 = vpack.c.b16 %v1362, %v1354
    %v1843 = vpack.c.b16 %v1363, %v1355
    %v1844 = vpack.c.b16 %v1364, %v1356
    %v1845 = vpack.c.b16 %v1365, %v1357
    %v1846 = vpack.c.b16 %v1366, %v1358
    %v1847 = vpack.c.b16 %v1367, %v1359
    %v1848 = vpack.c.b16 %v1368, %v1360
    %v1849 = vpack.c.b16 %v1377, %v1369
    %v1850 = vpack.c.b16 %v1378, %v1370
    %v1851 = vpack.c.b16 %v1379, %v1371
    %v1852 = vpack.c.b16 %v1380, %v1372
    %v1853 = vpack.c.b16 %v1381, %v1373
    %v1854 = vpack.c.b16 %v1382, %v1374
    %v1855 = vpack.c.b16 %v1383, %v1375
    %v1856 = vpack.c.b16 %v1384, %v1376
    %v1857 = vpack.c.b16 %v1393, %v1385
    %v1858 = vpack.c.b16 %v1394, %v1386
    %v1859 = vpack.c.b16 %v1395, %v1387
    %v1860 = vpack.c.b16 %v1396, %v1388
    %v1861 = vpack.c.b16 %v1397, %v1389
    %v1862 = vpack.c.b16 %v1398, %v1390
    %v1863 = vpack.c.b16 %v1399, %v1391
    %v1864 = vpack.c.b16 %v1400, %v1392
    %v1865 = vpack.c.b16 %v1409, %v1401
    %v1866 = vpack.c.b16 %v1410, %v1402
    %v1867 = vpack.c.b16 %v1411, %v1403
    %v1868 = vpack.c.b16 %v1412, %v1404
    %v1869 = vpack.c.b16 %v1413, %v1405
    %v1870 = vpack.c.b16 %v1414, %v1406
    %v1871 = vpack.c.b16 %v1415, %v1407
    %v1872 = vpack.c.b16 %v1416, %v1408
    %v1873 = vpack.c.b16 %v1425, %v1417
    %v1874 = vpack.c.b16 %v1426, %v1418
    %v1875 = vpack.c.b16 %v1427, %v1419
    %v1876 = vpack.c.b16 %v1428, %v1420
    %v1877 = vpack.c.b16 %v1429, %v1421
    %v1878 = vpack.c.b16 %v1430, %v1422
    %v1879 = vpack.c.b16 %v1431, %v1423
    %v1880 = vpack.c.b16 %v1432, %v1424
    %v1881 = vpack.c.b16 %v1441, %v1433
    %v1882 = vpack.c.b16 %v1442, %v1434
    %v1883 = vpack.c.b16 %v1443, %v1435
    %v1884 = vpack.c.b16 %v1444, %v1436
    %v1885 = vpack.c.b16 %v1445, %v1437
    %v1886 = vpack.c.b16 %v1446, %v1438
    %v1887 = vpack.c.b16 %v1447, %v1439
    %v1888 = vpack.c.b16 %v1448, %v1440
    %v1889 = vpack.c.b16 %v1457, %v1449
    %v1890 = vpack.c.b16 %v1458, %v1450
    %v1891 = vpack.c.b16 %v1459, %v1451
    %v1892 = vpack.c.b16 %v1460, %v1452
    %v1893 = vpack.c.b16 %v1461, %v1453
    %v1894 = vpack.c.b16 %v1462, %v1454
    %v1895 = vpack.c.b16 %v1463, %v1455
    %v1896 = vpack.c.b16 %v1464, %v1456
    %v1897 = vpack.c.b16 %v1473, %v1465
    %v1898 = vpack.c.b16 %v1474, %v1466
    %v1899 = vpack.c.b16 %v1475, %v1467
    %v1900 = vpack.c.b16 %v1476, %v1468
    %v1901 = vpack.c.b16 %v1477, %v1469
    %v1902 = vpack.c.b16 %v1478, %v1470
    %v1903 = vpack.c.b16 %v1479, %v1471
    %v1904 = vpack.c.b16 %v1480, %v1472
    %v1905 = vpack.c.b16 %v1489, %v1481
    %v1906 = vpack.c.b16 %v1490, %v1482
    %v1907 = vpack.c.b16 %v1491, %v1483
    %v1908 = vpack.c.b16 %v1492, %v1484
    %v1909 = vpack.c.b16 %v1493, %v1485
    %v1910 = vpack.c.b16 %v1494, %v1486
    %v1911 = vpack.c.b16 %v1495, %v1487
    %v1912 = vpack.c.b16 %v1496, %v1488
    %v1913 = vpack.c.b16 %v1505, %v1497
    %v1914 = vpack.c.b16 %v1506, %v1498
    %v1915 = vpack.c.b16 %v1507, %v1499
    %v1916 = vpack.c.b16 %v1508, %v1500
    %v1917 = vpack.c.b16 %v1509, %v1501
    %v1918 = vpack.c.b16 %v1510, %v1502
    %v1919 = vpack.c.b16 %v1511, %v1503
    %v1920 = vpack.c.b16 %v1512, %v1504
    %v1921 = vpack.c.b16 %v1521, %v1513
    %v1922 = vpack.c.b16 %v1522, %v1514
    %v1923 = vpack.c.b16 %v1523, %v1515
    %v1924 = vpack.c.b16 %v1524, %v1516
    %v1925 = vpack.c.b16 %v1525, %v1517
    %v1926 = vpack.c.b16 %v1526, %v1518
    %v1927 = vpack.c.b16 %v1527, %v1519
    %v1928 = vpack.c.b16 %v1528, %v1520
    %v1929 = vpack.c.b16 %v1537, %v1529
    %v1930 = vpack.c.b16 %v1538, %v1530
    %v1931 = vpack.c.b16 %v1539, %v1531
    %v1932 = vpack.c.b16 %v1540, %v1532
    %v1933 = vpack.c.b16 %v1541, %v1533
    %v1934 = vpack.c.b16 %v1542, %v1534
    %v1935 = vpack.c.b16 %v1543, %v1535
    %v1936 = vpack.c.b16 %v1544, %v1536
    %v1937 = vpack.c.b16 %v1553, %v1545
    %v1938 = vpack.c.b16 %v1554, %v1546
    %v1939 = vpack.c.b16 %v1555, %v1547
    %v1940 = vpack.c.b16 %v1556, %v1548
    %v1941 = vpack.c.b16 %v1557, %v1549
    %v1942 = vpack.c.b16 %v1558, %v1550
    %v1943 = vpack.c.b16 %v1559, %v1551
    %v1944 = vpack.c.b16 %v1560, %v1552
    %v1945 = vpack.c.b16 %v1569, %v1561
    %v1946 = vpack.c.b16 %v1570, %v1562
    %v1947 = vpack.c.b16 %v1571, %v1563
    %v1948 = vpack.c.b16 %v1572, %v1564
    %v1949 = vpack.c.b16 %v1573, %v1565
    %v1950 = vpack.c.b16 %v1574, %v1566
    %v1951 = vpack.c.b16 %v1575, %v1567
    %v1952 = vpack.c.b16 %v1576, %v1568
    %v1953 = vpack.c.b16 %v1585, %v1577
    %v1954 = vpack.c.b16 %v1586, %v1578
    %v1955 = vpack.c.b16 %v1587, %v1579
    %v1956 = vpack.c.b16 %v1588, %v1580
    %v1957 = vpack.c.b16 %v1589, %v1581
    %v1958 = vpack.c.b16 %v1590, %v1582
    %v1959 = vpack.c.b16 %v1591, %v1583
    %v1960 = vpack.c.b16 %v1592, %v1584
    %v1961 = vpack.c.b16 %v1601, %v1593
    %v1962 = vpack.c.b16 %v1602, %v1594
    %v1963 = vpack.c.b16 %v1603, %v1595
    %v1964 = vpack.c.b16 %v1604, %v1596
    %v1965 = vpack.c.b16 %v1605, %v1597
    %v1966 = vpack.c.b16 %v1606, %v1598
    %v1967 = vpack.c.b16 %v1607, %v1599
    %v1968 = vpack.c.b16 %v1608, %v1600
    %v1969 = vpack.c.b16 %v1617, %v1609
    %v1970 = vpack.c.b16 %v1618, %v1610
    %v1971 = vpack.c.b16 %v1619, %v1611
    %v1972 = vpack.c.b16 %v1620, %v1612
    %v1973 = vpack.c.b16 %v1621, %v1613
    %v1974 = vpack.c.b16 %v1622, %v1614
    %v1975 = vpack.c.b16 %v1623, %v1615
    %v1976 = vpack.c.b16 %v1624, %v1616
    %v1977 = vpack.c.b16 %v1633, %v1625
    %v1978 = vpack.c.b16 %v1634, %v1626
    %v1979 = vpack.c.b16 %v1635, %v1627
    %v1980 = vpack.c.b16 %v1636, %v1628
    %v1981 = vpack.c.b16 %v1637, %v1629
    %v1982 = vpack.c.b16 %v1638, %v1630
    %v1983 = vpack.c.b16 %v1639, %v1631
    %v1984 = vpack.c.b16 %v1640, %v1632
    %v1985 = vpack.c.b16 %v1649, %v1641
    %v1986 = vpack.c.b16 %v1650, %v1642
    %v1987 = vpack.c.b16 %v1651, %v1643
    %v1988 = vpack.c.b16 %v1652, %v1644
    %v1989 = vpack.c.b16 %v1653, %v1645
    %v1990 = vpack.c.b16 %v1654, %v1646
    %v1991 = vpack.c.b16 %v1655, %v1647
    %v1992 = vpack.c.b16 %v1656, %v1648
    %v1993 = vpack.c.b16 %v1665, %v1657
    %v1994 = vpack.c.b16 %v1666, %v1658
    %v1995 = vpack.c.b16 %v1667, %v1659
    %v1996 = vpack.c.b16 %v1668, %v1660
    %v1997 = vpack.c.b16 %v1669, %v1661
    %v1998 = vpack.c.b16 %v1670, %v1662
    %v1999 = vpack.c.b16 %v1671, %v1663
    %v2000 = vpack.c.b16 %v1672, %v1664
    %v2001 = vpack.c.b16 %v1681, %v1673
    %v2002 = vpack.c.b16 %v1682, %v1674
    %v2003 = vpack.c.b16 %v1683, %v1675
    %v2004 = vpack.c.b16 %v1684, %v1676
    %v2005 = vpack.c.b16 %v1685, %v1677
    %v2006 = vpack.c.b16 %v1686, %v1678
    %v2007 = vpack.c.b16 %v1687, %v1679
    %v2008 = vpack.c.b16 %v1688, %v1680
    %v2009 = vpack.c.b16 %v1697, %v1689
    %v2010 = vpack.c.b16 %v1698, %v1690
    %v2011 = vpack.c.b16 %v1699, %v1691
    %v2012 = vpack.c.b16 %v1700, %v1692
    %v2013 = vpack.c.b16 %v1701, %v1693
    %v2014 = vpack.c.b16 %v1702, %v1694
    %v2015 = vpack.c.b16 %v1703, %v1695
    %v2016 = vpack.c.b16 %v1704, %v1696
    %v2017 = vpack.c.b16 %v1713, %v1705
    %v2018 = vpack.c.b16 %v1714, %v1706
    %v2019 = vpack.c.b16 %v1715, %v1707
    %v2020 = vpack.c.b16 %v1716, %v1708
    %v2021 = vpack.c.b16 %v1717, %v1709
    %v2022 = vpack.c.b16 %v1718, %v1710
    %v2023 = vpack.c.b16 %v1719, %v1711
    %v2024 = vpack.c.b16 %v1720, %v1712
    %v2025 = vpack.c.b16 %v1729, %v1721
    %v2026 = vpack.c.b16 %v1730, %v1722
    %v2027 = vpack.c.b16 %v1731, %v1723
    %v2028 = vpack.c.b16 %v1732, %v1724
    %v2029 = vpack.c.b16 %v1733, %v1725
    %v2030 = vpack.c.b16 %v1734, %v1726
    %v2031 = vpack.c.b16 %v1735, %v1727
    %v2032 = vpack.c.b16 %v1736, %v1728
    %v2033 = vpack.c.b16 %v1745, %v1737
    %v2034 = vpack.c.b16 %v1746, %v1738
    %v2035 = vpack.c.b16 %v1747, %v1739
    %v2036 = vpack.c.b16 %v1748, %v1740
    %v2037 = vpack.c.b16 %v1749, %v1741
    %v2038 = vpack.c.b16 %v1750, %v1742
    %v2039 = vpack.c.b16 %v1751, %v1743
    %v2040 = vpack.c.b16 %v1752, %v1744
    %v2041 = vpack.c.b16 %v1761, %v1753
    %v2042 = vpack.c.b16 %v1762, %v1754
    %v2043 = vpack.c.b16 %v1763, %v1755
    %v2044 = vpack.c.b16 %v1764, %v1756
    %v2045 = vpack.c.b16 %v1765, %v1757
    %v2046 = vpack.c.b16 %v1766, %v1758
    %v2047 = vpack.c.b16 %v1767, %v1759
    %v2048 = vpack.c.b16 %v1768, %v1760
    %v2049 = vpack.c.b16 %v1777, %v1769
    %v2050 = vpack.c.b16 %v1778, %v1770
    %v2051 = vpack.c.b16 %v1779, %v1771
    %v2052 = vpack.c.b16 %v1780, %v1772
    %v2053 = vpack.c.b16 %v1781, %v1773
    %v2054 = vpack.c.b16 %v1782, %v1774
    %v2055 = vpack.c.b16 %v1783, %v1775
    %v2056 = vpack.c.b16 %v1784, %v1776
    %v2057 = vpack.c.b16 %v1793, %v1785
    %v2058 = vpack.c.b16 %v1794, %v1786
    %v2059 = vpack.c.b16 %v1795, %v1787
    %v2060 = vpack.c.b16 %v1796, %v1788
    %v2061 = vpack.c.b16 %v1797, %v1789
    %v2062 = vpack.c.b16 %v1798, %v1790
    %v2063 = vpack.c.b16 %v1799, %v1791
    %v2064 = vpack.c.b16 %v1800, %v1792
    %v2065 = vpack.c.b16 %v1809, %v1801
    %v2066 = vpack.c.b16 %v1810, %v1802
    %v2067 = vpack.c.b16 %v1811, %v1803
    %v2068 = vpack.c.b16 %v1812, %v1804
    %v2069 = vpack.c.b16 %v1813, %v1805
    %v2070 = vpack.c.b16 %v1814, %v1806
    %v2071 = vpack.c.b16 %v1815, %v1807
    %v2072 = vpack.c.b16 %v1816, %v1808
    %2329 = vmatpush.bf16.msra.mxu0 %v1873
    %2330 = vmatpush.bf16.msra.mxu0 %v1865
    %2331 = vmatpush.bf16.msra.mxu0 %v1857
    %2332 = vmatpush.bf16.msra.mxu0 %v1849
    %2333 = vmatpush.bf16.msra.mxu0 %v1841
    %2334 = vmatpush.bf16.msra.mxu0 %v1833
    %2335 = vmatpush.bf16.msra.mxu0 %v1825
    %2336 = vmatpush.bf16.msra.mxu0 %v1817
    %2337 = vmatmul.bf16.gmra.mxu0 %v767
    %v2338 = vpop.f32.mrf.mxu0
    %v2339 = vadd.f32 %v1033, %v2338
    %v2340 = vpop.f32.mrf.mxu0
    %v2341 = vadd.f32 %v1033, %v2340
    %2342 = vdwg.mxu0
    %2343 = vmatpush.bf16.msra.mxu0 %v1937
    %2344 = vmatpush.bf16.msra.mxu0 %v1929
    %2345 = vmatpush.bf16.msra.mxu0 %v1921
    %2346 = vmatpush.bf16.msra.mxu0 %v1913
    %2347 = vmatpush.bf16.msra.mxu0 %v1905
    %2348 = vmatpush.bf16.msra.mxu0 %v1897
    %2349 = vmatpush.bf16.msra.mxu0 %v1889
    %2350 = vmatpush.bf16.msra.mxu0 %v1881
    %2351 = vmatmul.bf16.gmra.mxu0 %v768
    %v2352 = vpop.f32.mrf.mxu0
    %v2353 = vadd.f32 %v2339, %v2352
    %v2354 = vpop.f32.mrf.mxu0
    %v2355 = vadd.f32 %v2341, %v2354
    %2356 = vdwg.mxu0
    %2357 = vmatpush.bf16.msra.mxu0 %v2001
    %2358 = vmatpush.bf16.msra.mxu0 %v1993
    %2359 = vmatpush.bf16.msra.mxu0 %v1985
    %2360 = vmatpush.bf16.msra.mxu0 %v1977
    %2361 = vmatpush.bf16.msra.mxu0 %v1969
    %2362 = vmatpush.bf16.msra.mxu0 %v1961
    %2363 = vmatpush.bf16.msra.mxu0 %v1953
    %2364 = vmatpush.bf16.msra.mxu0 %v1945
    %2365 = vmatmul.bf16.gmra.mxu0 %v769
    %v2366 = vpop.f32.mrf.mxu0
    %v2367 = vadd.f32 %v2353, %v2366
    %v2368 = vpop.f32.mrf.mxu0
    %v2369 = vadd.f32 %v2355, %v2368
    %2370 = vdwg.mxu0
    %2371 = vmatpush.bf16.msra.mxu0 %v2065
    %2372 = vmatpush.bf16.msra.mxu0 %v2057
    %2373 = vmatpush.bf16.msra.mxu0 %v2049
    %2374 = vmatpush.bf16.msra.mxu0 %v2041
    %2375 = vmatpush.bf16.msra.mxu0 %v2033
    %2376 = vmatpush.bf16.msra.mxu0 %v2025
    %2377 = vmatpush.bf16.msra.mxu0 %v2017
    %2378 = vmatpush.bf16.msra.mxu0 %v2009
    %2379 = vmatmul.bf16.gmra.mxu0 %v770
    %v2380 = vpop.f32.mrf.mxu0
    %v2381 = vadd.f32 %v2367, %v2380
    %v2382 = vpop.f32.mrf.mxu0
    %v2383 = vadd.f32 %v2369, %v2382
    %2384 = vdwg.mxu0
    %2385 = vmatpush.bf16.msra.mxu0 %v1874
    %2386 = vmatpush.bf16.msra.mxu0 %v1866
    %2387 = vmatpush.bf16.msra.mxu0 %v1858
    %2388 = vmatpush.bf16.msra.mxu0 %v1850
    %2389 = vmatpush.bf16.msra.mxu0 %v1842
    %2390 = vmatpush.bf16.msra.mxu0 %v1834
    %2391 = vmatpush.bf16.msra.mxu0 %v1826
    %2392 = vmatpush.bf16.msra.mxu0 %v1818
    %2393 = vmatmul.bf16.gmra.mxu0 %v767
    %v2394 = vpop.f32.mrf.mxu0
    %v2395 = vadd.f32 %v1034, %v2394
    %v2396 = vpop.f32.mrf.mxu0
    %v2397 = vadd.f32 %v1034, %v2396
    %2398 = vdwg.mxu0
    %2399 = vmatpush.bf16.msra.mxu0 %v1938
    %2400 = vmatpush.bf16.msra.mxu0 %v1930
    %2401 = vmatpush.bf16.msra.mxu0 %v1922
    %2402 = vmatpush.bf16.msra.mxu0 %v1914
    %2403 = vmatpush.bf16.msra.mxu0 %v1906
    %2404 = vmatpush.bf16.msra.mxu0 %v1898
    %2405 = vmatpush.bf16.msra.mxu0 %v1890
    %2406 = vmatpush.bf16.msra.mxu0 %v1882
    %2407 = vmatmul.bf16.gmra.mxu0 %v768
    %v2408 = vpop.f32.mrf.mxu0
    %v2409 = vadd.f32 %v2395, %v2408
    %v2410 = vpop.f32.mrf.mxu0
    %v2411 = vadd.f32 %v2397, %v2410
    %2412 = vdwg.mxu0
    %2413 = vmatpush.bf16.msra.mxu0 %v2002
    %2414 = vmatpush.bf16.msra.mxu0 %v1994
    %2415 = vmatpush.bf16.msra.mxu0 %v1986
    %2416 = vmatpush.bf16.msra.mxu0 %v1978
    %2417 = vmatpush.bf16.msra.mxu0 %v1970
    %2418 = vmatpush.bf16.msra.mxu0 %v1962
    %2419 = vmatpush.bf16.msra.mxu0 %v1954
    %2420 = vmatpush.bf16.msra.mxu0 %v1946
    %2421 = vmatmul.bf16.gmra.mxu0 %v769
    %v2422 = vpop.f32.mrf.mxu0
    %v2423 = vadd.f32 %v2409, %v2422
    %v2424 = vpop.f32.mrf.mxu0
    %v2425 = vadd.f32 %v2411, %v2424
    %2426 = vdwg.mxu0
    %2427 = vmatpush.bf16.msra.mxu0 %v2066
    %2428 = vmatpush.bf16.msra.mxu0 %v2058
    %2429 = vmatpush.bf16.msra.mxu0 %v2050
    %2430 = vmatpush.bf16.msra.mxu0 %v2042
    %2431 = vmatpush.bf16.msra.mxu0 %v2034
    %2432 = vmatpush.bf16.msra.mxu0 %v2026
    %2433 = vmatpush.bf16.msra.mxu0 %v2018
    %2434 = vmatpush.bf16.msra.mxu0 %v2010
    %2435 = vmatmul.bf16.gmra.mxu0 %v770
    %v2436 = vpop.f32.mrf.mxu0
    %v2437 = vadd.f32 %v2423, %v2436
    %v2438 = vpop.f32.mrf.mxu0
    %v2439 = vadd.f32 %v2425, %v2438
    %2440 = vdwg.mxu0
    %2441 = vmatpush.bf16.msra.mxu0 %v1875
    %2442 = vmatpush.bf16.msra.mxu0 %v1867
    %2443 = vmatpush.bf16.msra.mxu0 %v1859
    %2444 = vmatpush.bf16.msra.mxu0 %v1851
    %2445 = vmatpush.bf16.msra.mxu0 %v1843
    %2446 = vmatpush.bf16.msra.mxu0 %v1835
    %2447 = vmatpush.bf16.msra.mxu0 %v1827
    %2448 = vmatpush.bf16.msra.mxu0 %v1819
    %2449 = vmatmul.bf16.gmra.mxu0 %v767
    %v2450 = vpop.f32.mrf.mxu0
    %v2451 = vadd.f32 %v1035, %v2450
    %v2452 = vpop.f32.mrf.mxu0
    %v2453 = vadd.f32 %v1035, %v2452
    %2454 = vdwg.mxu0
    %2455 = vmatpush.bf16.msra.mxu0 %v1939
    %2456 = vmatpush.bf16.msra.mxu0 %v1931
    %2457 = vmatpush.bf16.msra.mxu0 %v1923
    %2458 = vmatpush.bf16.msra.mxu0 %v1915
    %2459 = vmatpush.bf16.msra.mxu0 %v1907
    %2460 = vmatpush.bf16.msra.mxu0 %v1899
    %2461 = vmatpush.bf16.msra.mxu0 %v1891
    %2462 = vmatpush.bf16.msra.mxu0 %v1883
    %2463 = vmatmul.bf16.gmra.mxu0 %v768
    %v2464 = vpop.f32.mrf.mxu0
    %v2465 = vadd.f32 %v2451, %v2464
    %v2466 = vpop.f32.mrf.mxu0
    %v2467 = vadd.f32 %v2453, %v2466
    %2468 = vdwg.mxu0
    %2469 = vmatpush.bf16.msra.mxu0 %v2003
    %2470 = vmatpush.bf16.msra.mxu0 %v1995
    %2471 = vmatpush.bf16.msra.mxu0 %v1987
    %2472 = vmatpush.bf16.msra.mxu0 %v1979
    %2473 = vmatpush.bf16.msra.mxu0 %v1971
    %2474 = vmatpush.bf16.msra.mxu0 %v1963
    %2475 = vmatpush.bf16.msra.mxu0 %v1955
    %2476 = vmatpush.bf16.msra.mxu0 %v1947
    %2477 = vmatmul.bf16.gmra.mxu0 %v769
    %v2478 = vpop.f32.mrf.mxu0
    %v2479 = vadd.f32 %v2465, %v2478
    %v2480 = vpop.f32.mrf.mxu0
    %v2481 = vadd.f32 %v2467, %v2480
    %2482 = vdwg.mxu0
    %2483 = vmatpush.bf16.msra.mxu0 %v2067
    %2484 = vmatpush.bf16.msra.mxu0 %v2059
    %2485 = vmatpush.bf16.msra.mxu0 %v2051
    %2486 = vmatpush.bf16.msra.mxu0 %v2043
    %2487 = vmatpush.bf16.msra.mxu0 %v2035
    %2488 = vmatpush.bf16.msra.mxu0 %v2027
    %2489 = vmatpush.bf16.msra.mxu0 %v2019
    %2490 = vmatpush.bf16.msra.mxu0 %v2011
    %2491 = vmatmul.bf16.gmra.mxu0 %v770
    %v2492 = vpop.f32.mrf.mxu0
    %v2493 = vadd.f32 %v2479, %v2492
    %v2494 = vpop.f32.mrf.mxu0
    %v2495 = vadd.f32 %v2481, %v2494
    %2496 = vdwg.mxu0
    %2497 = vmatpush.bf16.msra.mxu0 %v1876
    %2498 = vmatpush.bf16.msra.mxu0 %v1868
    %2499 = vmatpush.bf16.msra.mxu0 %v1860
    %2500 = vmatpush.bf16.msra.mxu0 %v1852
    %2501 = vmatpush.bf16.msra.mxu0 %v1844
    %2502 = vmatpush.bf16.msra.mxu0 %v1836
    %2503 = vmatpush.bf16.msra.mxu0 %v1828
    %2504 = vmatpush.bf16.msra.mxu0 %v1820
    %2505 = vmatmul.bf16.gmra.mxu0 %v767
    %v2506 = vpop.f32.mrf.mxu0
    %v2507 = vadd.f32 %v1036, %v2506
    %v2508 = vpop.f32.mrf.mxu0
    %v2509 = vadd.f32 %v1036, %v2508
    %2510 = vdwg.mxu0
    %2511 = vmatpush.bf16.msra.mxu0 %v1940
    %2512 = vmatpush.bf16.msra.mxu0 %v1932
    %2513 = vmatpush.bf16.msra.mxu0 %v1924
    %2514 = vmatpush.bf16.msra.mxu0 %v1916
    %2515 = vmatpush.bf16.msra.mxu0 %v1908
    %2516 = vmatpush.bf16.msra.mxu0 %v1900
    %2517 = vmatpush.bf16.msra.mxu0 %v1892
    %2518 = vmatpush.bf16.msra.mxu0 %v1884
    %2519 = vmatmul.bf16.gmra.mxu0 %v768
    %v2520 = vpop.f32.mrf.mxu0
    %v2521 = vadd.f32 %v2507, %v2520
    %v2522 = vpop.f32.mrf.mxu0
    %v2523 = vadd.f32 %v2509, %v2522
    %2524 = vdwg.mxu0
    %2525 = vmatpush.bf16.msra.mxu0 %v2004
    %2526 = vmatpush.bf16.msra.mxu0 %v1996
    %2527 = vmatpush.bf16.msra.mxu0 %v1988
    %2528 = vmatpush.bf16.msra.mxu0 %v1980
    %2529 = vmatpush.bf16.msra.mxu0 %v1972
    %2530 = vmatpush.bf16.msra.mxu0 %v1964
    %2531 = vmatpush.bf16.msra.mxu0 %v1956
    %2532 = vmatpush.bf16.msra.mxu0 %v1948
    %2533 = vmatmul.bf16.gmra.mxu0 %v769
    %v2534 = vpop.f32.mrf.mxu0
    %v2535 = vadd.f32 %v2521, %v2534
    %v2536 = vpop.f32.mrf.mxu0
    %v2537 = vadd.f32 %v2523, %v2536
    %2538 = vdwg.mxu0
    %2539 = vmatpush.bf16.msra.mxu0 %v2068
    %2540 = vmatpush.bf16.msra.mxu0 %v2060
    %2541 = vmatpush.bf16.msra.mxu0 %v2052
    %2542 = vmatpush.bf16.msra.mxu0 %v2044
    %2543 = vmatpush.bf16.msra.mxu0 %v2036
    %2544 = vmatpush.bf16.msra.mxu0 %v2028
    %2545 = vmatpush.bf16.msra.mxu0 %v2020
    %2546 = vmatpush.bf16.msra.mxu0 %v2012
    %2547 = vmatmul.bf16.gmra.mxu0 %v770
    %v2548 = vpop.f32.mrf.mxu0
    %v2549 = vadd.f32 %v2535, %v2548
    %v2550 = vpop.f32.mrf.mxu0
    %v2551 = vadd.f32 %v2537, %v2550
    %2552 = vdwg.mxu0
    %2553 = vmatpush.bf16.msra.mxu0 %v1877
    %2554 = vmatpush.bf16.msra.mxu0 %v1869
    %2555 = vmatpush.bf16.msra.mxu0 %v1861
    %2556 = vmatpush.bf16.msra.mxu0 %v1853
    %2557 = vmatpush.bf16.msra.mxu0 %v1845
    %2558 = vmatpush.bf16.msra.mxu0 %v1837
    %2559 = vmatpush.bf16.msra.mxu0 %v1829
    %2560 = vmatpush.bf16.msra.mxu0 %v1821
    %2561 = vmatmul.bf16.gmra.mxu0 %v767
    %v2562 = vpop.f32.mrf.mxu0
    %v2563 = vadd.f32 %v1037, %v2562
    %v2564 = vpop.f32.mrf.mxu0
    %v2565 = vadd.f32 %v1037, %v2564
    %2566 = vdwg.mxu0
    %2567 = vmatpush.bf16.msra.mxu0 %v1941
    %2568 = vmatpush.bf16.msra.mxu0 %v1933
    %2569 = vmatpush.bf16.msra.mxu0 %v1925
    %2570 = vmatpush.bf16.msra.mxu0 %v1917
    %2571 = vmatpush.bf16.msra.mxu0 %v1909
    %2572 = vmatpush.bf16.msra.mxu0 %v1901
    %2573 = vmatpush.bf16.msra.mxu0 %v1893
    %2574 = vmatpush.bf16.msra.mxu0 %v1885
    %2575 = vmatmul.bf16.gmra.mxu0 %v768
    %v2576 = vpop.f32.mrf.mxu0
    %v2577 = vadd.f32 %v2563, %v2576
    %v2578 = vpop.f32.mrf.mxu0
    %v2579 = vadd.f32 %v2565, %v2578
    %2580 = vdwg.mxu0
    %2581 = vmatpush.bf16.msra.mxu0 %v2005
    %2582 = vmatpush.bf16.msra.mxu0 %v1997
    %2583 = vmatpush.bf16.msra.mxu0 %v1989
    %2584 = vmatpush.bf16.msra.mxu0 %v1981
    %2585 = vmatpush.bf16.msra.mxu0 %v1973
    %2586 = vmatpush.bf16.msra.mxu0 %v1965
    %2587 = vmatpush.bf16.msra.mxu0 %v1957
    %2588 = vmatpush.bf16.msra.mxu0 %v1949
    %2589 = vmatmul.bf16.gmra.mxu0 %v769
    %v2590 = vpop.f32.mrf.mxu0
    %v2591 = vadd.f32 %v2577, %v2590
    %v2592 = vpop.f32.mrf.mxu0
    %v2593 = vadd.f32 %v2579, %v2592
    %2594 = vdwg.mxu0
    %2595 = vmatpush.bf16.msra.mxu0 %v2069
    %2596 = vmatpush.bf16.msra.mxu0 %v2061
    %2597 = vmatpush.bf16.msra.mxu0 %v2053
    %2598 = vmatpush.bf16.msra.mxu0 %v2045
    %2599 = vmatpush.bf16.msra.mxu0 %v2037
    %2600 = vmatpush.bf16.msra.mxu0 %v2029
    %2601 = vmatpush.bf16.msra.mxu0 %v2021
    %2602 = vmatpush.bf16.msra.mxu0 %v2013
    %2603 = vmatmul.bf16.gmra.mxu0 %v770
    %v2604 = vpop.f32.mrf.mxu0
    %v2605 = vadd.f32 %v2591, %v2604
    %v2606 = vpop.f32.mrf.mxu0
    %v2607 = vadd.f32 %v2593, %v2606
    %2608 = vdwg.mxu0
    %2609 = vmatpush.bf16.msra.mxu0 %v1878
    %2610 = vmatpush.bf16.msra.mxu0 %v1870
    %2611 = vmatpush.bf16.msra.mxu0 %v1862
    %2612 = vmatpush.bf16.msra.mxu0 %v1854
    %2613 = vmatpush.bf16.msra.mxu0 %v1846
    %2614 = vmatpush.bf16.msra.mxu0 %v1838
    %2615 = vmatpush.bf16.msra.mxu0 %v1830
    %2616 = vmatpush.bf16.msra.mxu0 %v1822
    %2617 = vmatmul.bf16.gmra.mxu0 %v767
    %v2618 = vpop.f32.mrf.mxu0
    %v2619 = vadd.f32 %v1038, %v2618
    %v2620 = vpop.f32.mrf.mxu0
    %v2621 = vadd.f32 %v1038, %v2620
    %2622 = vdwg.mxu0
    %2623 = vmatpush.bf16.msra.mxu0 %v1942
    %2624 = vmatpush.bf16.msra.mxu0 %v1934
    %2625 = vmatpush.bf16.msra.mxu0 %v1926
    %2626 = vmatpush.bf16.msra.mxu0 %v1918
    %2627 = vmatpush.bf16.msra.mxu0 %v1910
    %2628 = vmatpush.bf16.msra.mxu0 %v1902
    %2629 = vmatpush.bf16.msra.mxu0 %v1894
    %2630 = vmatpush.bf16.msra.mxu0 %v1886
    %2631 = vmatmul.bf16.gmra.mxu0 %v768
    %v2632 = vpop.f32.mrf.mxu0
    %v2633 = vadd.f32 %v2619, %v2632
    %v2634 = vpop.f32.mrf.mxu0
    %v2635 = vadd.f32 %v2621, %v2634
    %2636 = vdwg.mxu0
    %2637 = vmatpush.bf16.msra.mxu0 %v2006
    %2638 = vmatpush.bf16.msra.mxu0 %v1998
    %2639 = vmatpush.bf16.msra.mxu0 %v1990
    %2640 = vmatpush.bf16.msra.mxu0 %v1982
    %2641 = vmatpush.bf16.msra.mxu0 %v1974
    %2642 = vmatpush.bf16.msra.mxu0 %v1966
    %2643 = vmatpush.bf16.msra.mxu0 %v1958
    %2644 = vmatpush.bf16.msra.mxu0 %v1950
    %2645 = vmatmul.bf16.gmra.mxu0 %v769
    %v2646 = vpop.f32.mrf.mxu0
    %v2647 = vadd.f32 %v2633, %v2646
    %v2648 = vpop.f32.mrf.mxu0
    %v2649 = vadd.f32 %v2635, %v2648
    %2650 = vdwg.mxu0
    %2651 = vmatpush.bf16.msra.mxu0 %v2070
    %2652 = vmatpush.bf16.msra.mxu0 %v2062
    %2653 = vmatpush.bf16.msra.mxu0 %v2054
    %2654 = vmatpush.bf16.msra.mxu0 %v2046
    %2655 = vmatpush.bf16.msra.mxu0 %v2038
    %2656 = vmatpush.bf16.msra.mxu0 %v2030
    %2657 = vmatpush.bf16.msra.mxu0 %v2022
    %2658 = vmatpush.bf16.msra.mxu0 %v2014
    %2659 = vmatmul.bf16.gmra.mxu0 %v770
    %v2660 = vpop.f32.mrf.mxu0
    %v2661 = vadd.f32 %v2647, %v2660
    %v2662 = vpop.f32.mrf.mxu0
    %v2663 = vadd.f32 %v2649, %v2662
    %2664 = vdwg.mxu0
    %2665 = vmatpush.bf16.msra.mxu0 %v1879
    %2666 = vmatpush.bf16.msra.mxu0 %v1871
    %2667 = vmatpush.bf16.msra.mxu0 %v1863
    %2668 = vmatpush.bf16.msra.mxu0 %v1855
    %2669 = vmatpush.bf16.msra.mxu0 %v1847
    %2670 = vmatpush.bf16.msra.mxu0 %v1839
    %2671 = vmatpush.bf16.msra.mxu0 %v1831
    %2672 = vmatpush.bf16.msra.mxu0 %v1823
    %2673 = vmatmul.bf16.gmra.mxu0 %v767
    %v2674 = vpop.f32.mrf.mxu0
    %v2675 = vadd.f32 %v1039, %v2674
    %v2676 = vpop.f32.mrf.mxu0
    %v2677 = vadd.f32 %v1039, %v2676
    %2678 = vdwg.mxu0
    %2679 = vmatpush.bf16.msra.mxu0 %v1943
    %2680 = vmatpush.bf16.msra.mxu0 %v1935
    %2681 = vmatpush.bf16.msra.mxu0 %v1927
    %2682 = vmatpush.bf16.msra.mxu0 %v1919
    %2683 = vmatpush.bf16.msra.mxu0 %v1911
    %2684 = vmatpush.bf16.msra.mxu0 %v1903
    %2685 = vmatpush.bf16.msra.mxu0 %v1895
    %2686 = vmatpush.bf16.msra.mxu0 %v1887
    %2687 = vmatmul.bf16.gmra.mxu0 %v768
    %v2688 = vpop.f32.mrf.mxu0
    %v2689 = vadd.f32 %v2675, %v2688
    %v2690 = vpop.f32.mrf.mxu0
    %v2691 = vadd.f32 %v2677, %v2690
    %2692 = vdwg.mxu0
    %2693 = vmatpush.bf16.msra.mxu0 %v2007
    %2694 = vmatpush.bf16.msra.mxu0 %v1999
    %2695 = vmatpush.bf16.msra.mxu0 %v1991
    %2696 = vmatpush.bf16.msra.mxu0 %v1983
    %2697 = vmatpush.bf16.msra.mxu0 %v1975
    %2698 = vmatpush.bf16.msra.mxu0 %v1967
    %2699 = vmatpush.bf16.msra.mxu0 %v1959
    %2700 = vmatpush.bf16.msra.mxu0 %v1951
    %2701 = vmatmul.bf16.gmra.mxu0 %v769
    %v2702 = vpop.f32.mrf.mxu0
    %v2703 = vadd.f32 %v2689, %v2702
    %v2704 = vpop.f32.mrf.mxu0
    %v2705 = vadd.f32 %v2691, %v2704
    %2706 = vdwg.mxu0
    %2707 = vmatpush.bf16.msra.mxu0 %v2071
    %2708 = vmatpush.bf16.msra.mxu0 %v2063
    %2709 = vmatpush.bf16.msra.mxu0 %v2055
    %2710 = vmatpush.bf16.msra.mxu0 %v2047
    %2711 = vmatpush.bf16.msra.mxu0 %v2039
    %2712 = vmatpush.bf16.msra.mxu0 %v2031
    %2713 = vmatpush.bf16.msra.mxu0 %v2023
    %2714 = vmatpush.bf16.msra.mxu0 %v2015
    %2715 = vmatmul.bf16.gmra.mxu0 %v770
    %v2716 = vpop.f32.mrf.mxu0
    %v2717 = vadd.f32 %v2703, %v2716
    %v2718 = vpop.f32.mrf.mxu0
    %v2719 = vadd.f32 %v2705, %v2718
    %2720 = vdwg.mxu0
    %2721 = vmatpush.bf16.msra.mxu0 %v1880
    %2722 = vmatpush.bf16.msra.mxu0 %v1872
    %2723 = vmatpush.bf16.msra.mxu0 %v1864
    %2724 = vmatpush.bf16.msra.mxu0 %v1856
    %2725 = vmatpush.bf16.msra.mxu0 %v1848
    %2726 = vmatpush.bf16.msra.mxu0 %v1840
    %2727 = vmatpush.bf16.msra.mxu0 %v1832
    %2728 = vmatpush.bf16.msra.mxu0 %v1824
    %2729 = vmatmul.bf16.gmra.mxu0 %v767
    %v2730 = vpop.f32.mrf.mxu0
    %v2731 = vadd.f32 %v1040, %v2730
    %v2732 = vpop.f32.mrf.mxu0
    %v2733 = vadd.f32 %v1040, %v2732
    %2734 = vdwg.mxu0
    %2735 = vmatpush.bf16.msra.mxu0 %v1944
    %2736 = vmatpush.bf16.msra.mxu0 %v1936
    %2737 = vmatpush.bf16.msra.mxu0 %v1928
    %2738 = vmatpush.bf16.msra.mxu0 %v1920
    %2739 = vmatpush.bf16.msra.mxu0 %v1912
    %2740 = vmatpush.bf16.msra.mxu0 %v1904
    %2741 = vmatpush.bf16.msra.mxu0 %v1896
    %2742 = vmatpush.bf16.msra.mxu0 %v1888
    %2743 = vmatmul.bf16.gmra.mxu0 %v768
    %v2744 = vpop.f32.mrf.mxu0
    %v2745 = vadd.f32 %v2731, %v2744
    %v2746 = vpop.f32.mrf.mxu0
    %v2747 = vadd.f32 %v2733, %v2746
    %2748 = vdwg.mxu0
    %2749 = vmatpush.bf16.msra.mxu0 %v2008
    %2750 = vmatpush.bf16.msra.mxu0 %v2000
    %2751 = vmatpush.bf16.msra.mxu0 %v1992
    %2752 = vmatpush.bf16.msra.mxu0 %v1984
    %2753 = vmatpush.bf16.msra.mxu0 %v1976
    %2754 = vmatpush.bf16.msra.mxu0 %v1968
    %2755 = vmatpush.bf16.msra.mxu0 %v1960
    %2756 = vmatpush.bf16.msra.mxu0 %v1952
    %2757 = vmatmul.bf16.gmra.mxu0 %v769
    %v2758 = vpop.f32.mrf.mxu0
    %v2759 = vadd.f32 %v2745, %v2758
    %v2760 = vpop.f32.mrf.mxu0
    %v2761 = vadd.f32 %v2747, %v2760
    %2762 = vdwg.mxu0
    %2763 = vmatpush.bf16.msra.mxu0 %v2072
    %2764 = vmatpush.bf16.msra.mxu0 %v2064
    %2765 = vmatpush.bf16.msra.mxu0 %v2056
    %2766 = vmatpush.bf16.msra.mxu0 %v2048
    %2767 = vmatpush.bf16.msra.mxu0 %v2040
    %2768 = vmatpush.bf16.msra.mxu0 %v2032
    %2769 = vmatpush.bf16.msra.mxu0 %v2024
    %2770 = vmatpush.bf16.msra.mxu0 %v2016
    %2771 = vmatmul.bf16.gmra.mxu0 %v770
    %v2772 = vpop.f32.mrf.mxu0
    %v2773 = vadd.f32 %v2759, %v2772
    %v2774 = vpop.f32.mrf.mxu0
    %v2775 = vadd.f32 %v2761, %v2774
    %2776 = vdwg.mxu0
    %v2777 = vmin.f32 %v2381, 20.0
    %v2778 = vmin.f32 %v2437, 20.0
    %v2779 = vmin.f32 %v2493, 20.0
    %v2780 = vmin.f32 %v2549, 20.0
    %v2781 = vmin.f32 %v2605, 20.0
    %v2782 = vmin.f32 %v2661, 20.0
    %v2783 = vmin.f32 %v2717, 20.0
    %v2784 = vmin.f32 %v2773, 20.0
    %v2785 = vmin.f32 %v2383, 20.0
    %v2786 = vmin.f32 %v2439, 20.0
    %v2787 = vmin.f32 %v2495, 20.0
    %v2788 = vmin.f32 %v2551, 20.0
    %v2789 = vmin.f32 %v2607, 20.0
    %v2790 = vmin.f32 %v2663, 20.0
    %v2791 = vmin.f32 %v2719, 20.0
    %v2792 = vmin.f32 %v2775, 20.0
    %v2793 = vmul.f32 %v2777, 1.442695
    %v2794 = vpow.pop %v2793
    %v2795 = vmul.f32 %v2778, 1.442695
    %v2796 = vpow.pop %v2795
    %v2797 = vmul.f32 %v2779, 1.442695
    %v2798 = vpow.pop %v2797
    %v2799 = vmul.f32 %v2780, 1.442695
    %v2800 = vpow.pop %v2799
    %v2801 = vmul.f32 %v2781, 1.442695
    %v2802 = vpow.pop %v2801
    %v2803 = vmul.f32 %v2782, 1.442695
    %v2804 = vpow.pop %v2803
    %v2805 = vmul.f32 %v2783, 1.442695
    %v2806 = vpow.pop %v2805
    %v2807 = vmul.f32 %v2784, 1.442695
    %v2808 = vpow.pop %v2807
    %v2809 = vmul.f32 %v2785, 1.442695
    %v2810 = vpow.pop %v2809
    %v2811 = vmul.f32 %v2786, 1.442695
    %v2812 = vpow.pop %v2811
    %v2813 = vmul.f32 %v2787, 1.442695
    %v2814 = vpow.pop %v2813
    %v2815 = vmul.f32 %v2788, 1.442695
    %v2816 = vpow.pop %v2815
    %v2817 = vmul.f32 %v2789, 1.442695
    %v2818 = vpow.pop %v2817
    %v2819 = vmul.f32 %v2790, 1.442695
    %v2820 = vpow.pop %v2819
    %v2821 = vmul.f32 %v2791, 1.442695
    %v2822 = vpow.pop %v2821
    %v2823 = vmul.f32 %v2792, 1.442695
    %v2824 = vpow.pop %v2823
    %v2825 = vadd.f32 %v2794, 1.0
    %v2826 = vadd.f32 %v2796, 1.0
    %v2827 = vadd.f32 %v2798, 1.0
    %v2828 = vadd.f32 %v2800, 1.0
    %v2829 = vadd.f32 %v2802, 1.0
    %v2830 = vadd.f32 %v2804, 1.0
    %v2831 = vadd.f32 %v2806, 1.0
    %v2832 = vadd.f32 %v2808, 1.0
    %v2833 = vadd.f32 %v2810, 1.0
    %v2834 = vadd.f32 %v2812, 1.0
    %v2835 = vadd.f32 %v2814, 1.0
    %v2836 = vadd.f32 %v2816, 1.0
    %v2837 = vadd.f32 %v2818, 1.0
    %v2838 = vadd.f32 %v2820, 1.0
    %v2839 = vadd.f32 %v2822, 1.0
    %v2840 = vadd.f32 %v2824, 1.0
    %v2841 = vmul.f32 %v2825, %v2825
    %v2842 = vmul.f32 %v2826, %v2826
    %v2843 = vmul.f32 %v2827, %v2827
    %v2844 = vmul.f32 %v2828, %v2828
    %v2845 = vmul.f32 %v2829, %v2829
    %v2846 = vmul.f32 %v2830, %v2830
    %v2847 = vmul.f32 %v2831, %v2831
    %v2848 = vmul.f32 %v2832, %v2832
    %v2849 = vmul.f32 %v2833, %v2833
    %v2850 = vmul.f32 %v2834, %v2834
    %v2851 = vmul.f32 %v2835, %v2835
    %v2852 = vmul.f32 %v2836, %v2836
    %v2853 = vmul.f32 %v2837, %v2837
    %v2854 = vmul.f32 %v2838, %v2838
    %v2855 = vmul.f32 %v2839, %v2839
    %v2856 = vmul.f32 %v2840, %v2840
    %v2857 = vsub.f32 %v2841, 1.0
    %v2858 = vsub.f32 %v2842, 1.0
    %v2859 = vsub.f32 %v2843, 1.0
    %v2860 = vsub.f32 %v2844, 1.0
    %v2861 = vsub.f32 %v2845, 1.0
    %v2862 = vsub.f32 %v2846, 1.0
    %v2863 = vsub.f32 %v2847, 1.0
    %v2864 = vsub.f32 %v2848, 1.0
    %v2865 = vsub.f32 %v2849, 1.0
    %v2866 = vsub.f32 %v2850, 1.0
    %v2867 = vsub.f32 %v2851, 1.0
    %v2868 = vsub.f32 %v2852, 1.0
    %v2869 = vsub.f32 %v2853, 1.0
    %v2870 = vsub.f32 %v2854, 1.0
    %v2871 = vsub.f32 %v2855, 1.0
    %v2872 = vsub.f32 %v2856, 1.0
    %v2873 = vmul.f32 %v2381, %v2857
    %v2874 = vmul.f32 %v2437, %v2858
    %v2875 = vmul.f32 %v2493, %v2859
    %v2876 = vmul.f32 %v2549, %v2860
    %v2877 = vmul.f32 %v2605, %v2861
    %v2878 = vmul.f32 %v2661, %v2862
    %v2879 = vmul.f32 %v2717, %v2863
    %v2880 = vmul.f32 %v2773, %v2864
    %v2881 = vmul.f32 %v2383, %v2865
    %v2882 = vmul.f32 %v2439, %v2866
    %v2883 = vmul.f32 %v2495, %v2867
    %v2884 = vmul.f32 %v2551, %v2868
    %v2885 = vmul.f32 %v2607, %v2869
    %v2886 = vmul.f32 %v2663, %v2870
    %v2887 = vmul.f32 %v2719, %v2871
    %v2888 = vmul.f32 %v2775, %v2872
    %v2889 = vadd.f32 %v2841, 1.0
    %v2890 = vadd.f32 %v2842, 1.0
    %v2891 = vadd.f32 %v2843, 1.0
    %v2892 = vadd.f32 %v2844, 1.0
    %v2893 = vadd.f32 %v2845, 1.0
    %v2894 = vadd.f32 %v2846, 1.0
    %v2895 = vadd.f32 %v2847, 1.0
    %v2896 = vadd.f32 %v2848, 1.0
    %v2897 = vadd.f32 %v2849, 1.0
    %v2898 = vadd.f32 %v2850, 1.0
    %v2899 = vadd.f32 %v2851, 1.0
    %v2900 = vadd.f32 %v2852, 1.0
    %v2901 = vadd.f32 %v2853, 1.0
    %v2902 = vadd.f32 %v2854, 1.0
    %v2903 = vadd.f32 %v2855, 1.0
    %v2904 = vadd.f32 %v2856, 1.0
    %v2905 = vrcp.pop %v2889
    %v2906 = vrcp.pop %v2890
    %v2907 = vrcp.pop %v2891
    %v2908 = vrcp.pop %v2892
    %v2909 = vrcp.pop %v2893
    %v2910 = vrcp.pop %v2894
    %v2911 = vrcp.pop %v2895
    %v2912 = vrcp.pop %v2896
    %v2913 = vrcp.pop %v2897
    %v2914 = vrcp.pop %v2898
    %v2915 = vrcp.pop %v2899
    %v2916 = vrcp.pop %v2900
    %v2917 = vrcp.pop %v2901
    %v2918 = vrcp.pop %v2902
    %v2919 = vrcp.pop %v2903
    %v2920 = vrcp.pop %v2904
    %v2921 = vmul.f32 %v2873, %v2905
    %v2922 = vmul.f32 %v2874, %v2906
    %v2923 = vmul.f32 %v2875, %v2907
    %v2924 = vmul.f32 %v2876, %v2908
    %v2925 = vmul.f32 %v2877, %v2909
    %v2926 = vmul.f32 %v2878, %v2910
    %v2927 = vmul.f32 %v2879, %v2911
    %v2928 = vmul.f32 %v2880, %v2912
    %v2929 = vmul.f32 %v2881, %v2913
    %v2930 = vmul.f32 %v2882, %v2914
    %v2931 = vmul.f32 %v2883, %v2915
    %v2932 = vmul.f32 %v2884, %v2916
    %v2933 = vmul.f32 %v2885, %v2917
    %v2934 = vmul.f32 %v2886, %v2918
    %v2935 = vmul.f32 %v2887, %v2919
    %v2936 = vmul.f32 %v2888, %v2920
    %vm2937 = vcmp.gt.f32.partialorder %v2381, 20.0
    %vm2938 = vcmp.gt.f32.partialorder %v2437, 20.0
    %vm2939 = vcmp.gt.f32.partialorder %v2493, 20.0
    %vm2940 = vcmp.gt.f32.partialorder %v2549, 20.0
    %vm2941 = vcmp.gt.f32.partialorder %v2605, 20.0
    %vm2942 = vcmp.gt.f32.partialorder %v2661, 20.0
    %vm2943 = vcmp.gt.f32.partialorder %v2717, 20.0
    %vm2944 = vcmp.gt.f32.partialorder %v2773, 20.0
    %vm2945 = vcmp.gt.f32.partialorder %v2383, 20.0
    %vm2946 = vcmp.gt.f32.partialorder %v2439, 20.0
    %vm2947 = vcmp.gt.f32.partialorder %v2495, 20.0
    %vm2948 = vcmp.gt.f32.partialorder %v2551, 20.0
    %vm2949 = vcmp.gt.f32.partialorder %v2607, 20.0
    %vm2950 = vcmp.gt.f32.partialorder %v2663, 20.0
    %vm2951 = vcmp.gt.f32.partialorder %v2719, 20.0
    %vm2952 = vcmp.gt.f32.partialorder %v2775, 20.0
    %v2953 = vsel %vm2937, %v2381, %v2921
    %v2954 = vsel %vm2938, %v2437, %v2922
    %v2955 = vsel %vm2939, %v2493, %v2923
    %v2956 = vsel %vm2940, %v2549, %v2924
    %v2957 = vsel %vm2941, %v2605, %v2925
    %v2958 = vsel %vm2942, %v2661, %v2926
    %v2959 = vsel %vm2943, %v2717, %v2927
    %v2960 = vsel %vm2944, %v2773, %v2928
    %v2961 = vsel %vm2945, %v2383, %v2929
    %v2962 = vsel %vm2946, %v2439, %v2930
    %v2963 = vsel %vm2947, %v2495, %v2931
    %v2964 = vsel %vm2948, %v2551, %v2932
    %v2965 = vsel %vm2949, %v2607, %v2933
    %v2966 = vsel %vm2950, %v2663, %v2934
    %v2967 = vsel %vm2951, %v2719, %v2935
    %v2968 = vsel %vm2952, %v2775, %v2936
    %v2969 = vld [vmem:[#allocation14] sm:$0xff]
    %v2970 = vld [vmem:[#allocation14 + $0x8] sm:$0xff]
    %v2971 = vld [vmem:[#allocation14 + $0x10] sm:$0xff]
    %v2972 = vld [vmem:[#allocation14 + $0x18] sm:$0xff]
    %v2973 = vld [vmem:[#allocation14 + $0x20] sm:$0xff]
    %v2974 = vld [vmem:[#allocation14 + $0x28] sm:$0xff]
    %v2975 = vld [vmem:[#allocation14 + $0x30] sm:$0xff]
    %v2976 = vld [vmem:[#allocation14 + $0x38] sm:$0xff]
    %v2977 = vld [vmem:[#allocation14 + $0x40] sm:$0xff]
    %v2978 = vld [vmem:[#allocation14 + $0x48] sm:$0xff]
    %v2979 = vld [vmem:[#allocation14 + $0x50] sm:$0xff]
    %v2980 = vld [vmem:[#allocation14 + $0x58] sm:$0xff]
    %v2981 = vld [vmem:[#allocation14 + $0x60] sm:$0xff]
    %v2982 = vld [vmem:[#allocation14 + $0x68] sm:$0xff]
    %v2983 = vld [vmem:[#allocation14 + $0x70] sm:$0xff]
    %v2984 = vld [vmem:[#allocation14 + $0x78] sm:$0xff]
    %v2985 = vld [vmem:[#allocation14 + $0x80] sm:$0xff]
    %v2986 = vld [vmem:[#allocation14 + $0x88] sm:$0xff]
    %v2987 = vld [vmem:[#allocation14 + $0x90] sm:$0xff]
    %v2988 = vld [vmem:[#allocation14 + $0x98] sm:$0xff]
    %v2989 = vld [vmem:[#allocation14 + $0xa0] sm:$0xff]
    %v2990 = vld [vmem:[#allocation14 + $0xa8] sm:$0xff]
    %v2991 = vld [vmem:[#allocation14 + $0xb0] sm:$0xff]
    %v2992 = vld [vmem:[#allocation14 + $0xb8] sm:$0xff]
    %v2993 = vld [vmem:[#allocation14 + $0xc0] sm:$0xff]
    %v2994 = vld [vmem:[#allocation14 + $0xc8] sm:$0xff]
    %v2995 = vld [vmem:[#allocation14 + $0xd0] sm:$0xff]
    %v2996 = vld [vmem:[#allocation14 + $0xd8] sm:$0xff]
    %v2997 = vld [vmem:[#allocation14 + $0xe0] sm:$0xff]
    %v2998 = vld [vmem:[#allocation14 + $0xe8] sm:$0xff]
    %v2999 = vld [vmem:[#allocation14 + $0xf0] sm:$0xff]
    %v3000 = vld [vmem:[#allocation14 + $0xf8] sm:$0xff]
    %v3001 = vld [vmem:[#allocation14 + $0x100] sm:$0xff]
    %v3002 = vld [vmem:[#allocation14 + $0x108] sm:$0xff]
    %v3003 = vld [vmem:[#allocation14 + $0x110] sm:$0xff]
    %v3004 = vld [vmem:[#allocation14 + $0x118] sm:$0xff]
    %v3005 = vld [vmem:[#allocation14 + $0x120] sm:$0xff]
    %v3006 = vld [vmem:[#allocation14 + $0x128] sm:$0xff]
    %v3007 = vld [vmem:[#allocation14 + $0x130] sm:$0xff]
    %v3008 = vld [vmem:[#allocation14 + $0x138] sm:$0xff]
    %v3009 = vld [vmem:[#allocation14 + $0x140] sm:$0xff]
    %v3010 = vld [vmem:[#allocation14 + $0x148] sm:$0xff]
    %v3011 = vld [vmem:[#allocation14 + $0x150] sm:$0xff]
    %v3012 = vld [vmem:[#allocation14 + $0x158] sm:$0xff]
    %v3013 = vld [vmem:[#allocation14 + $0x160] sm:$0xff]
    %v3014 = vld [vmem:[#allocation14 + $0x168] sm:$0xff]
    %v3015 = vld [vmem:[#allocation14 + $0x170] sm:$0xff]
    %v3016 = vld [vmem:[#allocation14 + $0x178] sm:$0xff]
    %v3017 = vld [vmem:[#allocation14 + $0x180] sm:$0xff]
    %v3018 = vld [vmem:[#allocation14 + $0x188] sm:$0xff]
    %v3019 = vld [vmem:[#allocation14 + $0x190] sm:$0xff]
    %v3020 = vld [vmem:[#allocation14 + $0x198] sm:$0xff]
    %v3021 = vld [vmem:[#allocation14 + $0x1a0] sm:$0xff]
    %v3022 = vld [vmem:[#allocation14 + $0x1a8] sm:$0xff]
    %v3023 = vld [vmem:[#allocation14 + $0x1b0] sm:$0xff]
    %v3024 = vld [vmem:[#allocation14 + $0x1b8] sm:$0xff]
    %v3025 = vld [vmem:[#allocation14 + $0x1c0] sm:$0xff]
    %v3026 = vld [vmem:[#allocation14 + $0x1c8] sm:$0xff]
    %v3027 = vld [vmem:[#allocation14 + $0x1d0] sm:$0xff]
    %v3028 = vld [vmem:[#allocation14 + $0x1d8] sm:$0xff]
    %v3029 = vld [vmem:[#allocation14 + $0x1e0] sm:$0xff]
    %v3030 = vld [vmem:[#allocation14 + $0x1e8] sm:$0xff]
    %v3031 = vld [vmem:[#allocation14 + $0x1f0] sm:$0xff]
    %v3032 = vld [vmem:[#allocation14 + $0x1f8] sm:$0xff]
    %v3033 = vld [vmem:[#allocation14 + $0x200] sm:$0xff]
    %v3034 = vld [vmem:[#allocation14 + $0x208] sm:$0xff]
    %v3035 = vld [vmem:[#allocation14 + $0x210] sm:$0xff]
    %v3036 = vld [vmem:[#allocation14 + $0x218] sm:$0xff]
    %v3037 = vld [vmem:[#allocation14 + $0x220] sm:$0xff]
    %v3038 = vld [vmem:[#allocation14 + $0x228] sm:$0xff]
    %v3039 = vld [vmem:[#allocation14 + $0x230] sm:$0xff]
    %v3040 = vld [vmem:[#allocation14 + $0x238] sm:$0xff]
    %v3041 = vld [vmem:[#allocation14 + $0x240] sm:$0xff]
    %v3042 = vld [vmem:[#allocation14 + $0x248] sm:$0xff]
    %v3043 = vld [vmem:[#allocation14 + $0x250] sm:$0xff]
    %v3044 = vld [vmem:[#allocation14 + $0x258] sm:$0xff]
    %v3045 = vld [vmem:[#allocation14 + $0x260] sm:$0xff]
    %v3046 = vld [vmem:[#allocation14 + $0x268] sm:$0xff]
    %v3047 = vld [vmem:[#allocation14 + $0x270] sm:$0xff]
    %v3048 = vld [vmem:[#allocation14 + $0x278] sm:$0xff]
    %v3049 = vld [vmem:[#allocation14 + $0x280] sm:$0xff]
    %v3050 = vld [vmem:[#allocation14 + $0x288] sm:$0xff]
    %v3051 = vld [vmem:[#allocation14 + $0x290] sm:$0xff]
    %v3052 = vld [vmem:[#allocation14 + $0x298] sm:$0xff]
    %v3053 = vld [vmem:[#allocation14 + $0x2a0] sm:$0xff]
    %v3054 = vld [vmem:[#allocation14 + $0x2a8] sm:$0xff]
    %v3055 = vld [vmem:[#allocation14 + $0x2b0] sm:$0xff]
    %v3056 = vld [vmem:[#allocation14 + $0x2b8] sm:$0xff]
    %v3057 = vld [vmem:[#allocation14 + $0x2c0] sm:$0xff]
    %v3058 = vld [vmem:[#allocation14 + $0x2c8] sm:$0xff]
    %v3059 = vld [vmem:[#allocation14 + $0x2d0] sm:$0xff]
    %v3060 = vld [vmem:[#allocation14 + $0x2d8] sm:$0xff]
    %v3061 = vld [vmem:[#allocation14 + $0x2e0] sm:$0xff]
    %v3062 = vld [vmem:[#allocation14 + $0x2e8] sm:$0xff]
    %v3063 = vld [vmem:[#allocation14 + $0x2f0] sm:$0xff]
    %v3064 = vld [vmem:[#allocation14 + $0x2f8] sm:$0xff]
    %v3065 = vld [vmem:[#allocation14 + $0x300] sm:$0xff]
    %v3066 = vld [vmem:[#allocation14 + $0x308] sm:$0xff]
    %v3067 = vld [vmem:[#allocation14 + $0x310] sm:$0xff]
    %v3068 = vld [vmem:[#allocation14 + $0x318] sm:$0xff]
    %v3069 = vld [vmem:[#allocation14 + $0x320] sm:$0xff]
    %v3070 = vld [vmem:[#allocation14 + $0x328] sm:$0xff]
    %v3071 = vld [vmem:[#allocation14 + $0x330] sm:$0xff]
    %v3072 = vld [vmem:[#allocation14 + $0x338] sm:$0xff]
    %v3073 = vld [vmem:[#allocation14 + $0x340] sm:$0xff]
    %v3074 = vld [vmem:[#allocation14 + $0x348] sm:$0xff]
    %v3075 = vld [vmem:[#allocation14 + $0x350] sm:$0xff]
    %v3076 = vld [vmem:[#allocation14 + $0x358] sm:$0xff]
    %v3077 = vld [vmem:[#allocation14 + $0x360] sm:$0xff]
    %v3078 = vld [vmem:[#allocation14 + $0x368] sm:$0xff]
    %v3079 = vld [vmem:[#allocation14 + $0x370] sm:$0xff]
    %v3080 = vld [vmem:[#allocation14 + $0x378] sm:$0xff]
    %v3081 = vld [vmem:[#allocation14 + $0x380] sm:$0xff]
    %v3082 = vld [vmem:[#allocation14 + $0x388] sm:$0xff]
    %v3083 = vld [vmem:[#allocation14 + $0x390] sm:$0xff]
    %v3084 = vld [vmem:[#allocation14 + $0x398] sm:$0xff]
    %v3085 = vld [vmem:[#allocation14 + $0x3a0] sm:$0xff]
    %v3086 = vld [vmem:[#allocation14 + $0x3a8] sm:$0xff]
    %v3087 = vld [vmem:[#allocation14 + $0x3b0] sm:$0xff]
    %v3088 = vld [vmem:[#allocation14 + $0x3b8] sm:$0xff]
    %v3089 = vld [vmem:[#allocation14 + $0x3c0] sm:$0xff]
    %v3090 = vld [vmem:[#allocation14 + $0x3c8] sm:$0xff]
    %v3091 = vld [vmem:[#allocation14 + $0x3d0] sm:$0xff]
    %v3092 = vld [vmem:[#allocation14 + $0x3d8] sm:$0xff]
    %v3093 = vld [vmem:[#allocation14 + $0x3e0] sm:$0xff]
    %v3094 = vld [vmem:[#allocation14 + $0x3e8] sm:$0xff]
    %v3095 = vld [vmem:[#allocation14 + $0x3f0] sm:$0xff]
    %v3096 = vld [vmem:[#allocation14 + $0x3f8] sm:$0xff]
    %v3097 = vld [vmem:[#allocation14 + $0x400] sm:$0xff]
    %v3098 = vld [vmem:[#allocation14 + $0x408] sm:$0xff]
    %v3099 = vld [vmem:[#allocation14 + $0x410] sm:$0xff]
    %v3100 = vld [vmem:[#allocation14 + $0x418] sm:$0xff]
    %v3101 = vld [vmem:[#allocation14 + $0x420] sm:$0xff]
    %v3102 = vld [vmem:[#allocation14 + $0x428] sm:$0xff]
    %v3103 = vld [vmem:[#allocation14 + $0x430] sm:$0xff]
    %v3104 = vld [vmem:[#allocation14 + $0x438] sm:$0xff]
    %v3105 = vld [vmem:[#allocation14 + $0x440] sm:$0xff]
    %v3106 = vld [vmem:[#allocation14 + $0x448] sm:$0xff]
    %v3107 = vld [vmem:[#allocation14 + $0x450] sm:$0xff]
    %v3108 = vld [vmem:[#allocation14 + $0x458] sm:$0xff]
    %v3109 = vld [vmem:[#allocation14 + $0x460] sm:$0xff]
    %v3110 = vld [vmem:[#allocation14 + $0x468] sm:$0xff]
    %v3111 = vld [vmem:[#allocation14 + $0x470] sm:$0xff]
    %v3112 = vld [vmem:[#allocation14 + $0x478] sm:$0xff]
    %v3113 = vld [vmem:[#allocation14 + $0x480] sm:$0xff]
    %v3114 = vld [vmem:[#allocation14 + $0x488] sm:$0xff]
    %v3115 = vld [vmem:[#allocation14 + $0x490] sm:$0xff]
    %v3116 = vld [vmem:[#allocation14 + $0x498] sm:$0xff]
    %v3117 = vld [vmem:[#allocation14 + $0x4a0] sm:$0xff]
    %v3118 = vld [vmem:[#allocation14 + $0x4a8] sm:$0xff]
    %v3119 = vld [vmem:[#allocation14 + $0x4b0] sm:$0xff]
    %v3120 = vld [vmem:[#allocation14 + $0x4b8] sm:$0xff]
    %v3121 = vld [vmem:[#allocation14 + $0x4c0] sm:$0xff]
    %v3122 = vld [vmem:[#allocation14 + $0x4c8] sm:$0xff]
    %v3123 = vld [vmem:[#allocation14 + $0x4d0] sm:$0xff]
    %v3124 = vld [vmem:[#allocation14 + $0x4d8] sm:$0xff]
    %v3125 = vld [vmem:[#allocation14 + $0x4e0] sm:$0xff]
    %v3126 = vld [vmem:[#allocation14 + $0x4e8] sm:$0xff]
    %v3127 = vld [vmem:[#allocation14 + $0x4f0] sm:$0xff]
    %v3128 = vld [vmem:[#allocation14 + $0x4f8] sm:$0xff]
    %v3129 = vld [vmem:[#allocation14 + $0x500] sm:$0xff]
    %v3130 = vld [vmem:[#allocation14 + $0x508] sm:$0xff]
    %v3131 = vld [vmem:[#allocation14 + $0x510] sm:$0xff]
    %v3132 = vld [vmem:[#allocation14 + $0x518] sm:$0xff]
    %v3133 = vld [vmem:[#allocation14 + $0x520] sm:$0xff]
    %v3134 = vld [vmem:[#allocation14 + $0x528] sm:$0xff]
    %v3135 = vld [vmem:[#allocation14 + $0x530] sm:$0xff]
    %v3136 = vld [vmem:[#allocation14 + $0x538] sm:$0xff]
    %v3137 = vld [vmem:[#allocation14 + $0x540] sm:$0xff]
    %v3138 = vld [vmem:[#allocation14 + $0x548] sm:$0xff]
    %v3139 = vld [vmem:[#allocation14 + $0x550] sm:$0xff]
    %v3140 = vld [vmem:[#allocation14 + $0x558] sm:$0xff]
    %v3141 = vld [vmem:[#allocation14 + $0x560] sm:$0xff]
    %v3142 = vld [vmem:[#allocation14 + $0x568] sm:$0xff]
    %v3143 = vld [vmem:[#allocation14 + $0x570] sm:$0xff]
    %v3144 = vld [vmem:[#allocation14 + $0x578] sm:$0xff]
    %v3145 = vld [vmem:[#allocation14 + $0x580] sm:$0xff]
    %v3146 = vld [vmem:[#allocation14 + $0x588] sm:$0xff]
    %v3147 = vld [vmem:[#allocation14 + $0x590] sm:$0xff]
    %v3148 = vld [vmem:[#allocation14 + $0x598] sm:$0xff]
    %v3149 = vld [vmem:[#allocation14 + $0x5a0] sm:$0xff]
    %v3150 = vld [vmem:[#allocation14 + $0x5a8] sm:$0xff]
    %v3151 = vld [vmem:[#allocation14 + $0x5b0] sm:$0xff]
    %v3152 = vld [vmem:[#allocation14 + $0x5b8] sm:$0xff]
    %v3153 = vld [vmem:[#allocation14 + $0x5c0] sm:$0xff]
    %v3154 = vld [vmem:[#allocation14 + $0x5c8] sm:$0xff]
    %v3155 = vld [vmem:[#allocation14 + $0x5d0] sm:$0xff]
    %v3156 = vld [vmem:[#allocation14 + $0x5d8] sm:$0xff]
    %v3157 = vld [vmem:[#allocation14 + $0x5e0] sm:$0xff]
    %v3158 = vld [vmem:[#allocation14 + $0x5e8] sm:$0xff]
    %v3159 = vld [vmem:[#allocation14 + $0x5f0] sm:$0xff]
    %v3160 = vld [vmem:[#allocation14 + $0x5f8] sm:$0xff]
    %v3161 = vld [vmem:[#allocation14 + $0x600] sm:$0xff]
    %v3162 = vld [vmem:[#allocation14 + $0x608] sm:$0xff]
    %v3163 = vld [vmem:[#allocation14 + $0x610] sm:$0xff]
    %v3164 = vld [vmem:[#allocation14 + $0x618] sm:$0xff]
    %v3165 = vld [vmem:[#allocation14 + $0x620] sm:$0xff]
    %v3166 = vld [vmem:[#allocation14 + $0x628] sm:$0xff]
    %v3167 = vld [vmem:[#allocation14 + $0x630] sm:$0xff]
    %v3168 = vld [vmem:[#allocation14 + $0x638] sm:$0xff]
    %v3169 = vld [vmem:[#allocation14 + $0x640] sm:$0xff]
    %v3170 = vld [vmem:[#allocation14 + $0x648] sm:$0xff]
    %v3171 = vld [vmem:[#allocation14 + $0x650] sm:$0xff]
    %v3172 = vld [vmem:[#allocation14 + $0x658] sm:$0xff]
    %v3173 = vld [vmem:[#allocation14 + $0x660] sm:$0xff]
    %v3174 = vld [vmem:[#allocation14 + $0x668] sm:$0xff]
    %v3175 = vld [vmem:[#allocation14 + $0x670] sm:$0xff]
    %v3176 = vld [vmem:[#allocation14 + $0x678] sm:$0xff]
    %v3177 = vld [vmem:[#allocation14 + $0x680] sm:$0xff]
    %v3178 = vld [vmem:[#allocation14 + $0x688] sm:$0xff]
    %v3179 = vld [vmem:[#allocation14 + $0x690] sm:$0xff]
    %v3180 = vld [vmem:[#allocation14 + $0x698] sm:$0xff]
    %v3181 = vld [vmem:[#allocation14 + $0x6a0] sm:$0xff]
    %v3182 = vld [vmem:[#allocation14 + $0x6a8] sm:$0xff]
    %v3183 = vld [vmem:[#allocation14 + $0x6b0] sm:$0xff]
    %v3184 = vld [vmem:[#allocation14 + $0x6b8] sm:$0xff]
    %v3185 = vld [vmem:[#allocation14 + $0x6c0] sm:$0xff]
    %v3186 = vld [vmem:[#allocation14 + $0x6c8] sm:$0xff]
    %v3187 = vld [vmem:[#allocation14 + $0x6d0] sm:$0xff]
    %v3188 = vld [vmem:[#allocation14 + $0x6d8] sm:$0xff]
    %v3189 = vld [vmem:[#allocation14 + $0x6e0] sm:$0xff]
    %v3190 = vld [vmem:[#allocation14 + $0x6e8] sm:$0xff]
    %v3191 = vld [vmem:[#allocation14 + $0x6f0] sm:$0xff]
    %v3192 = vld [vmem:[#allocation14 + $0x6f8] sm:$0xff]
    %v3193 = vld [vmem:[#allocation14 + $0x700] sm:$0xff]
    %v3194 = vld [vmem:[#allocation14 + $0x708] sm:$0xff]
    %v3195 = vld [vmem:[#allocation14 + $0x710] sm:$0xff]
    %v3196 = vld [vmem:[#allocation14 + $0x718] sm:$0xff]
    %v3197 = vld [vmem:[#allocation14 + $0x720] sm:$0xff]
    %v3198 = vld [vmem:[#allocation14 + $0x728] sm:$0xff]
    %v3199 = vld [vmem:[#allocation14 + $0x730] sm:$0xff]
    %v3200 = vld [vmem:[#allocation14 + $0x738] sm:$0xff]
    %v3201 = vld [vmem:[#allocation14 + $0x740] sm:$0xff]
    %v3202 = vld [vmem:[#allocation14 + $0x748] sm:$0xff]
    %v3203 = vld [vmem:[#allocation14 + $0x750] sm:$0xff]
    %v3204 = vld [vmem:[#allocation14 + $0x758] sm:$0xff]
    %v3205 = vld [vmem:[#allocation14 + $0x760] sm:$0xff]
    %v3206 = vld [vmem:[#allocation14 + $0x768] sm:$0xff]
    %v3207 = vld [vmem:[#allocation14 + $0x770] sm:$0xff]
    %v3208 = vld [vmem:[#allocation14 + $0x778] sm:$0xff]
    %v3209 = vld [vmem:[#allocation14 + $0x780] sm:$0xff]
    %v3210 = vld [vmem:[#allocation14 + $0x788] sm:$0xff]
    %v3211 = vld [vmem:[#allocation14 + $0x790] sm:$0xff]
    %v3212 = vld [vmem:[#allocation14 + $0x798] sm:$0xff]
    %v3213 = vld [vmem:[#allocation14 + $0x7a0] sm:$0xff]
    %v3214 = vld [vmem:[#allocation14 + $0x7a8] sm:$0xff]
    %v3215 = vld [vmem:[#allocation14 + $0x7b0] sm:$0xff]
    %v3216 = vld [vmem:[#allocation14 + $0x7b8] sm:$0xff]
    %v3217 = vld [vmem:[#allocation14 + $0x7c0] sm:$0xff]
    %v3218 = vld [vmem:[#allocation14 + $0x7c8] sm:$0xff]
    %v3219 = vld [vmem:[#allocation14 + $0x7d0] sm:$0xff]
    %v3220 = vld [vmem:[#allocation14 + $0x7d8] sm:$0xff]
    %v3221 = vld [vmem:[#allocation14 + $0x7e0] sm:$0xff]
    %v3222 = vld [vmem:[#allocation14 + $0x7e8] sm:$0xff]
    %v3223 = vld [vmem:[#allocation14 + $0x7f0] sm:$0xff]
    %v3224 = vld [vmem:[#allocation14 + $0x7f8] sm:$0xff]
    %v3225 = vld [vmem:[#allocation16] sm:$0xff]
    %v3227 = vperm.slane %v3225, 0
    %v3228 = vperm.slane %v3225, 1
    %v3229 = vperm.slane %v3225, 2
    %v3230 = vperm.slane %v3225, 3
    %v3231 = vperm.slane %v3225, 4
    %v3232 = vperm.slane %v3225, 5
    %v3233 = vperm.slane %v3225, 6
    %v3234 = vperm.slane %v3225, 7
    %v3499 = vunpack.c.l.b16 %v2969
    %v3500 = vunpack.c.h.b16 %v2969
    %v3501 = vunpack.c.l.b16 %v2970
    %v3502 = vunpack.c.h.b16 %v2970
    %v3503 = vunpack.c.l.b16 %v2971
    %v3504 = vunpack.c.h.b16 %v2971
    %v3505 = vunpack.c.l.b16 %v2972
    %v3506 = vunpack.c.h.b16 %v2972
    %v3507 = vunpack.c.l.b16 %v2973
    %v3508 = vunpack.c.h.b16 %v2973
    %v3509 = vunpack.c.l.b16 %v2974
    %v3510 = vunpack.c.h.b16 %v2974
    %v3511 = vunpack.c.l.b16 %v2975
    %v3512 = vunpack.c.h.b16 %v2975
    %v3513 = vunpack.c.l.b16 %v2976
    %v3514 = vunpack.c.h.b16 %v2976
    %v3515 = vunpack.c.l.b16 %v2977
    %v3516 = vunpack.c.h.b16 %v2977
    %v3517 = vunpack.c.l.b16 %v2978
    %v3518 = vunpack.c.h.b16 %v2978
    %v3519 = vunpack.c.l.b16 %v2979
    %v3520 = vunpack.c.h.b16 %v2979
    %v3521 = vunpack.c.l.b16 %v2980
    %v3522 = vunpack.c.h.b16 %v2980
    %v3523 = vunpack.c.l.b16 %v2981
    %v3524 = vunpack.c.h.b16 %v2981
    %v3525 = vunpack.c.l.b16 %v2982
    %v3526 = vunpack.c.h.b16 %v2982
    %v3527 = vunpack.c.l.b16 %v2983
    %v3528 = vunpack.c.h.b16 %v2983
    %v3529 = vunpack.c.l.b16 %v2984
    %v3530 = vunpack.c.h.b16 %v2984
    %v3531 = vunpack.c.l.b16 %v2985
    %v3532 = vunpack.c.h.b16 %v2985
    %v3533 = vunpack.c.l.b16 %v2986
    %v3534 = vunpack.c.h.b16 %v2986
    %v3535 = vunpack.c.l.b16 %v2987
    %v3536 = vunpack.c.h.b16 %v2987
    %v3537 = vunpack.c.l.b16 %v2988
    %v3538 = vunpack.c.h.b16 %v2988
    %v3539 = vunpack.c.l.b16 %v2989
    %v3540 = vunpack.c.h.b16 %v2989
    %v3541 = vunpack.c.l.b16 %v2990
    %v3542 = vunpack.c.h.b16 %v2990
    %v3543 = vunpack.c.l.b16 %v2991
    %v3544 = vunpack.c.h.b16 %v2991
    %v3545 = vunpack.c.l.b16 %v2992
    %v3546 = vunpack.c.h.b16 %v2992
    %v3547 = vunpack.c.l.b16 %v2993
    %v3548 = vunpack.c.h.b16 %v2993
    %v3549 = vunpack.c.l.b16 %v2994
    %v3550 = vunpack.c.h.b16 %v2994
    %v3551 = vunpack.c.l.b16 %v2995
    %v3552 = vunpack.c.h.b16 %v2995
    %v3553 = vunpack.c.l.b16 %v2996
    %v3554 = vunpack.c.h.b16 %v2996
    %v3555 = vunpack.c.l.b16 %v2997
    %v3556 = vunpack.c.h.b16 %v2997
    %v3557 = vunpack.c.l.b16 %v2998
    %v3558 = vunpack.c.h.b16 %v2998
    %v3559 = vunpack.c.l.b16 %v2999
    %v3560 = vunpack.c.h.b16 %v2999
    %v3561 = vunpack.c.l.b16 %v3000
    %v3562 = vunpack.c.h.b16 %v3000
    %v3563 = vunpack.c.l.b16 %v3001
    %v3564 = vunpack.c.h.b16 %v3001
    %v3565 = vunpack.c.l.b16 %v3002
    %v3566 = vunpack.c.h.b16 %v3002
    %v3567 = vunpack.c.l.b16 %v3003
    %v3568 = vunpack.c.h.b16 %v3003
    %v3569 = vunpack.c.l.b16 %v3004
    %v3570 = vunpack.c.h.b16 %v3004
    %v3571 = vunpack.c.l.b16 %v3005
    %v3572 = vunpack.c.h.b16 %v3005
    %v3573 = vunpack.c.l.b16 %v3006
    %v3574 = vunpack.c.h.b16 %v3006
    %v3575 = vunpack.c.l.b16 %v3007
    %v3576 = vunpack.c.h.b16 %v3007
    %v3577 = vunpack.c.l.b16 %v3008
    %v3578 = vunpack.c.h.b16 %v3008
    %v3579 = vunpack.c.l.b16 %v3009
    %v3580 = vunpack.c.h.b16 %v3009
    %v3581 = vunpack.c.l.b16 %v3010
    %v3582 = vunpack.c.h.b16 %v3010
    %v3583 = vunpack.c.l.b16 %v3011
    %v3584 = vunpack.c.h.b16 %v3011
    %v3585 = vunpack.c.l.b16 %v3012
    %v3586 = vunpack.c.h.b16 %v3012
    %v3587 = vunpack.c.l.b16 %v3013
    %v3588 = vunpack.c.h.b16 %v3013
    %v3589 = vunpack.c.l.b16 %v3014
    %v3590 = vunpack.c.h.b16 %v3014
    %v3591 = vunpack.c.l.b16 %v3015
    %v3592 = vunpack.c.h.b16 %v3015
    %v3593 = vunpack.c.l.b16 %v3016
    %v3594 = vunpack.c.h.b16 %v3016
    %v3595 = vunpack.c.l.b16 %v3017
    %v3596 = vunpack.c.h.b16 %v3017
    %v3597 = vunpack.c.l.b16 %v3018
    %v3598 = vunpack.c.h.b16 %v3018
    %v3599 = vunpack.c.l.b16 %v3019
    %v3600 = vunpack.c.h.b16 %v3019
    %v3601 = vunpack.c.l.b16 %v3020
    %v3602 = vunpack.c.h.b16 %v3020
    %v3603 = vunpack.c.l.b16 %v3021
    %v3604 = vunpack.c.h.b16 %v3021
    %v3605 = vunpack.c.l.b16 %v3022
    %v3606 = vunpack.c.h.b16 %v3022
    %v3607 = vunpack.c.l.b16 %v3023
    %v3608 = vunpack.c.h.b16 %v3023
    %v3609 = vunpack.c.l.b16 %v3024
    %v3610 = vunpack.c.h.b16 %v3024
    %v3611 = vunpack.c.l.b16 %v3025
    %v3612 = vunpack.c.h.b16 %v3025
    %v3613 = vunpack.c.l.b16 %v3026
    %v3614 = vunpack.c.h.b16 %v3026
    %v3615 = vunpack.c.l.b16 %v3027
    %v3616 = vunpack.c.h.b16 %v3027
    %v3617 = vunpack.c.l.b16 %v3028
    %v3618 = vunpack.c.h.b16 %v3028
    %v3619 = vunpack.c.l.b16 %v3029
    %v3620 = vunpack.c.h.b16 %v3029
    %v3621 = vunpack.c.l.b16 %v3030
    %v3622 = vunpack.c.h.b16 %v3030
    %v3623 = vunpack.c.l.b16 %v3031
    %v3624 = vunpack.c.h.b16 %v3031
    %v3625 = vunpack.c.l.b16 %v3032
    %v3626 = vunpack.c.h.b16 %v3032
    %v3627 = vunpack.c.l.b16 %v3033
    %v3628 = vunpack.c.h.b16 %v3033
    %v3629 = vunpack.c.l.b16 %v3034
    %v3630 = vunpack.c.h.b16 %v3034
    %v3631 = vunpack.c.l.b16 %v3035
    %v3632 = vunpack.c.h.b16 %v3035
    %v3633 = vunpack.c.l.b16 %v3036
    %v3634 = vunpack.c.h.b16 %v3036
    %v3635 = vunpack.c.l.b16 %v3037
    %v3636 = vunpack.c.h.b16 %v3037
    %v3637 = vunpack.c.l.b16 %v3038
    %v3638 = vunpack.c.h.b16 %v3038
    %v3639 = vunpack.c.l.b16 %v3039
    %v3640 = vunpack.c.h.b16 %v3039
    %v3641 = vunpack.c.l.b16 %v3040
    %v3642 = vunpack.c.h.b16 %v3040
    %v3643 = vunpack.c.l.b16 %v3041
    %v3644 = vunpack.c.h.b16 %v3041
    %v3645 = vunpack.c.l.b16 %v3042
    %v3646 = vunpack.c.h.b16 %v3042
    %v3647 = vunpack.c.l.b16 %v3043
    %v3648 = vunpack.c.h.b16 %v3043
    %v3649 = vunpack.c.l.b16 %v3044
    %v3650 = vunpack.c.h.b16 %v3044
    %v3651 = vunpack.c.l.b16 %v3045
    %v3652 = vunpack.c.h.b16 %v3045
    %v3653 = vunpack.c.l.b16 %v3046
    %v3654 = vunpack.c.h.b16 %v3046
    %v3655 = vunpack.c.l.b16 %v3047
    %v3656 = vunpack.c.h.b16 %v3047
    %v3657 = vunpack.c.l.b16 %v3048
    %v3658 = vunpack.c.h.b16 %v3048
    %v3659 = vunpack.c.l.b16 %v3049
    %v3660 = vunpack.c.h.b16 %v3049
    %v3661 = vunpack.c.l.b16 %v3050
    %v3662 = vunpack.c.h.b16 %v3050
    %v3663 = vunpack.c.l.b16 %v3051
    %v3664 = vunpack.c.h.b16 %v3051
    %v3665 = vunpack.c.l.b16 %v3052
    %v3666 = vunpack.c.h.b16 %v3052
    %v3667 = vunpack.c.l.b16 %v3053
    %v3668 = vunpack.c.h.b16 %v3053
    %v3669 = vunpack.c.l.b16 %v3054
    %v3670 = vunpack.c.h.b16 %v3054
    %v3671 = vunpack.c.l.b16 %v3055
    %v3672 = vunpack.c.h.b16 %v3055
    %v3673 = vunpack.c.l.b16 %v3056
    %v3674 = vunpack.c.h.b16 %v3056
    %v3675 = vunpack.c.l.b16 %v3057
    %v3676 = vunpack.c.h.b16 %v3057
    %v3677 = vunpack.c.l.b16 %v3058
    %v3678 = vunpack.c.h.b16 %v3058
    %v3679 = vunpack.c.l.b16 %v3059
    %v3680 = vunpack.c.h.b16 %v3059
    %v3681 = vunpack.c.l.b16 %v3060
    %v3682 = vunpack.c.h.b16 %v3060
    %v3683 = vunpack.c.l.b16 %v3061
    %v3684 = vunpack.c.h.b16 %v3061
    %v3685 = vunpack.c.l.b16 %v3062
    %v3686 = vunpack.c.h.b16 %v3062
    %v3687 = vunpack.c.l.b16 %v3063
    %v3688 = vunpack.c.h.b16 %v3063
    %v3689 = vunpack.c.l.b16 %v3064
    %v3690 = vunpack.c.h.b16 %v3064
    %v3691 = vunpack.c.l.b16 %v3065
    %v3692 = vunpack.c.h.b16 %v3065
    %v3693 = vunpack.c.l.b16 %v3066
    %v3694 = vunpack.c.h.b16 %v3066
    %v3695 = vunpack.c.l.b16 %v3067
    %v3696 = vunpack.c.h.b16 %v3067
    %v3697 = vunpack.c.l.b16 %v3068
    %v3698 = vunpack.c.h.b16 %v3068
    %v3699 = vunpack.c.l.b16 %v3069
    %v3700 = vunpack.c.h.b16 %v3069
    %v3701 = vunpack.c.l.b16 %v3070
    %v3702 = vunpack.c.h.b16 %v3070
    %v3703 = vunpack.c.l.b16 %v3071
    %v3704 = vunpack.c.h.b16 %v3071
    %v3705 = vunpack.c.l.b16 %v3072
    %v3706 = vunpack.c.h.b16 %v3072
    %v3707 = vunpack.c.l.b16 %v3073
    %v3708 = vunpack.c.h.b16 %v3073
    %v3709 = vunpack.c.l.b16 %v3074
    %v3710 = vunpack.c.h.b16 %v3074
    %v3711 = vunpack.c.l.b16 %v3075
    %v3712 = vunpack.c.h.b16 %v3075
    %v3713 = vunpack.c.l.b16 %v3076
    %v3714 = vunpack.c.h.b16 %v3076
    %v3715 = vunpack.c.l.b16 %v3077
    %v3716 = vunpack.c.h.b16 %v3077
    %v3717 = vunpack.c.l.b16 %v3078
    %v3718 = vunpack.c.h.b16 %v3078
    %v3719 = vunpack.c.l.b16 %v3079
    %v3720 = vunpack.c.h.b16 %v3079
    %v3721 = vunpack.c.l.b16 %v3080
    %v3722 = vunpack.c.h.b16 %v3080
    %v3723 = vunpack.c.l.b16 %v3081
    %v3724 = vunpack.c.h.b16 %v3081
    %v3725 = vunpack.c.l.b16 %v3082
    %v3726 = vunpack.c.h.b16 %v3082
    %v3727 = vunpack.c.l.b16 %v3083
    %v3728 = vunpack.c.h.b16 %v3083
    %v3729 = vunpack.c.l.b16 %v3084
    %v3730 = vunpack.c.h.b16 %v3084
    %v3731 = vunpack.c.l.b16 %v3085
    %v3732 = vunpack.c.h.b16 %v3085
    %v3733 = vunpack.c.l.b16 %v3086
    %v3734 = vunpack.c.h.b16 %v3086
    %v3735 = vunpack.c.l.b16 %v3087
    %v3736 = vunpack.c.h.b16 %v3087
    %v3737 = vunpack.c.l.b16 %v3088
    %v3738 = vunpack.c.h.b16 %v3088
    %v3739 = vunpack.c.l.b16 %v3089
    %v3740 = vunpack.c.h.b16 %v3089
    %v3741 = vunpack.c.l.b16 %v3090
    %v3742 = vunpack.c.h.b16 %v3090
    %v3743 = vunpack.c.l.b16 %v3091
    %v3744 = vunpack.c.h.b16 %v3091
    %v3745 = vunpack.c.l.b16 %v3092
    %v3746 = vunpack.c.h.b16 %v3092
    %v3747 = vunpack.c.l.b16 %v3093
    %v3748 = vunpack.c.h.b16 %v3093
    %v3749 = vunpack.c.l.b16 %v3094
    %v3750 = vunpack.c.h.b16 %v3094
    %v3751 = vunpack.c.l.b16 %v3095
    %v3752 = vunpack.c.h.b16 %v3095
    %v3753 = vunpack.c.l.b16 %v3096
    %v3754 = vunpack.c.h.b16 %v3096
    %v3755 = vunpack.c.l.b16 %v3097
    %v3756 = vunpack.c.h.b16 %v3097
    %v3757 = vunpack.c.l.b16 %v3098
    %v3758 = vunpack.c.h.b16 %v3098
    %v3759 = vunpack.c.l.b16 %v3099
    %v3760 = vunpack.c.h.b16 %v3099
    %v3761 = vunpack.c.l.b16 %v3100
    %v3762 = vunpack.c.h.b16 %v3100
    %v3763 = vunpack.c.l.b16 %v3101
    %v3764 = vunpack.c.h.b16 %v3101
    %v3765 = vunpack.c.l.b16 %v3102
    %v3766 = vunpack.c.h.b16 %v3102
    %v3767 = vunpack.c.l.b16 %v3103
    %v3768 = vunpack.c.h.b16 %v3103
    %v3769 = vunpack.c.l.b16 %v3104
    %v3770 = vunpack.c.h.b16 %v3104
    %v3771 = vunpack.c.l.b16 %v3105
    %v3772 = vunpack.c.h.b16 %v3105
    %v3773 = vunpack.c.l.b16 %v3106
    %v3774 = vunpack.c.h.b16 %v3106
    %v3775 = vunpack.c.l.b16 %v3107
    %v3776 = vunpack.c.h.b16 %v3107
    %v3777 = vunpack.c.l.b16 %v3108
    %v3778 = vunpack.c.h.b16 %v3108
    %v3779 = vunpack.c.l.b16 %v3109
    %v3780 = vunpack.c.h.b16 %v3109
    %v3781 = vunpack.c.l.b16 %v3110
    %v3782 = vunpack.c.h.b16 %v3110
    %v3783 = vunpack.c.l.b16 %v3111
    %v3784 = vunpack.c.h.b16 %v3111
    %v3785 = vunpack.c.l.b16 %v3112
    %v3786 = vunpack.c.h.b16 %v3112
    %v3787 = vunpack.c.l.b16 %v3113
    %v3788 = vunpack.c.h.b16 %v3113
    %v3789 = vunpack.c.l.b16 %v3114
    %v3790 = vunpack.c.h.b16 %v3114
    %v3791 = vunpack.c.l.b16 %v3115
    %v3792 = vunpack.c.h.b16 %v3115
    %v3793 = vunpack.c.l.b16 %v3116
    %v3794 = vunpack.c.h.b16 %v3116
    %v3795 = vunpack.c.l.b16 %v3117
    %v3796 = vunpack.c.h.b16 %v3117
    %v3797 = vunpack.c.l.b16 %v3118
    %v3798 = vunpack.c.h.b16 %v3118
    %v3799 = vunpack.c.l.b16 %v3119
    %v3800 = vunpack.c.h.b16 %v3119
    %v3801 = vunpack.c.l.b16 %v3120
    %v3802 = vunpack.c.h.b16 %v3120
    %v3803 = vunpack.c.l.b16 %v3121
    %v3804 = vunpack.c.h.b16 %v3121
    %v3805 = vunpack.c.l.b16 %v3122
    %v3806 = vunpack.c.h.b16 %v3122
    %v3807 = vunpack.c.l.b16 %v3123
    %v3808 = vunpack.c.h.b16 %v3123
    %v3809 = vunpack.c.l.b16 %v3124
    %v3810 = vunpack.c.h.b16 %v3124
    %v3811 = vunpack.c.l.b16 %v3125
    %v3812 = vunpack.c.h.b16 %v3125
    %v3813 = vunpack.c.l.b16 %v3126
    %v3814 = vunpack.c.h.b16 %v3126
    %v3815 = vunpack.c.l.b16 %v3127
    %v3816 = vunpack.c.h.b16 %v3127
    %v3817 = vunpack.c.l.b16 %v3128
    %v3818 = vunpack.c.h.b16 %v3128
    %v3819 = vunpack.c.l.b16 %v3129
    %v3820 = vunpack.c.h.b16 %v3129
    %v3821 = vunpack.c.l.b16 %v3130
    %v3822 = vunpack.c.h.b16 %v3130
    %v3823 = vunpack.c.l.b16 %v3131
    %v3824 = vunpack.c.h.b16 %v3131
    %v3825 = vunpack.c.l.b16 %v3132
    %v3826 = vunpack.c.h.b16 %v3132
    %v3827 = vunpack.c.l.b16 %v3133
    %v3828 = vunpack.c.h.b16 %v3133
    %v3829 = vunpack.c.l.b16 %v3134
    %v3830 = vunpack.c.h.b16 %v3134
    %v3831 = vunpack.c.l.b16 %v3135
    %v3832 = vunpack.c.h.b16 %v3135
    %v3833 = vunpack.c.l.b16 %v3136
    %v3834 = vunpack.c.h.b16 %v3136
    %v3835 = vunpack.c.l.b16 %v3137
    %v3836 = vunpack.c.h.b16 %v3137
    %v3837 = vunpack.c.l.b16 %v3138
    %v3838 = vunpack.c.h.b16 %v3138
    %v3839 = vunpack.c.l.b16 %v3139
    %v3840 = vunpack.c.h.b16 %v3139
    %v3841 = vunpack.c.l.b16 %v3140
    %v3842 = vunpack.c.h.b16 %v3140
    %v3843 = vunpack.c.l.b16 %v3141
    %v3844 = vunpack.c.h.b16 %v3141
    %v3845 = vunpack.c.l.b16 %v3142
    %v3846 = vunpack.c.h.b16 %v3142
    %v3847 = vunpack.c.l.b16 %v3143
    %v3848 = vunpack.c.h.b16 %v3143
    %v3849 = vunpack.c.l.b16 %v3144
    %v3850 = vunpack.c.h.b16 %v3144
    %v3851 = vunpack.c.l.b16 %v3145
    %v3852 = vunpack.c.h.b16 %v3145
    %v3853 = vunpack.c.l.b16 %v3146
    %v3854 = vunpack.c.h.b16 %v3146
    %v3855 = vunpack.c.l.b16 %v3147
    %v3856 = vunpack.c.h.b16 %v3147
    %v3857 = vunpack.c.l.b16 %v3148
    %v3858 = vunpack.c.h.b16 %v3148
    %v3859 = vunpack.c.l.b16 %v3149
    %v3860 = vunpack.c.h.b16 %v3149
    %v3861 = vunpack.c.l.b16 %v3150
    %v3862 = vunpack.c.h.b16 %v3150
    %v3863 = vunpack.c.l.b16 %v3151
    %v3864 = vunpack.c.h.b16 %v3151
    %v3865 = vunpack.c.l.b16 %v3152
    %v3866 = vunpack.c.h.b16 %v3152
    %v3867 = vunpack.c.l.b16 %v3153
    %v3868 = vunpack.c.h.b16 %v3153
    %v3869 = vunpack.c.l.b16 %v3154
    %v3870 = vunpack.c.h.b16 %v3154
    %v3871 = vunpack.c.l.b16 %v3155
    %v3872 = vunpack.c.h.b16 %v3155
    %v3873 = vunpack.c.l.b16 %v3156
    %v3874 = vunpack.c.h.b16 %v3156
    %v3875 = vunpack.c.l.b16 %v3157
    %v3876 = vunpack.c.h.b16 %v3157
    %v3877 = vunpack.c.l.b16 %v3158
    %v3878 = vunpack.c.h.b16 %v3158
    %v3879 = vunpack.c.l.b16 %v3159
    %v3880 = vunpack.c.h.b16 %v3159
    %v3881 = vunpack.c.l.b16 %v3160
    %v3882 = vunpack.c.h.b16 %v3160
    %v3883 = vunpack.c.l.b16 %v3161
    %v3884 = vunpack.c.h.b16 %v3161
    %v3885 = vunpack.c.l.b16 %v3162
    %v3886 = vunpack.c.h.b16 %v3162
    %v3887 = vunpack.c.l.b16 %v3163
    %v3888 = vunpack.c.h.b16 %v3163
    %v3889 = vunpack.c.l.b16 %v3164
    %v3890 = vunpack.c.h.b16 %v3164
    %v3891 = vunpack.c.l.b16 %v3165
    %v3892 = vunpack.c.h.b16 %v3165
    %v3893 = vunpack.c.l.b16 %v3166
    %v3894 = vunpack.c.h.b16 %v3166
    %v3895 = vunpack.c.l.b16 %v3167
    %v3896 = vunpack.c.h.b16 %v3167
    %v3897 = vunpack.c.l.b16 %v3168
    %v3898 = vunpack.c.h.b16 %v3168
    %v3899 = vunpack.c.l.b16 %v3169
    %v3900 = vunpack.c.h.b16 %v3169
    %v3901 = vunpack.c.l.b16 %v3170
    %v3902 = vunpack.c.h.b16 %v3170
    %v3903 = vunpack.c.l.b16 %v3171
    %v3904 = vunpack.c.h.b16 %v3171
    %v3905 = vunpack.c.l.b16 %v3172
    %v3906 = vunpack.c.h.b16 %v3172
    %v3907 = vunpack.c.l.b16 %v3173
    %v3908 = vunpack.c.h.b16 %v3173
    %v3909 = vunpack.c.l.b16 %v3174
    %v3910 = vunpack.c.h.b16 %v3174
    %v3911 = vunpack.c.l.b16 %v3175
    %v3912 = vunpack.c.h.b16 %v3175
    %v3913 = vunpack.c.l.b16 %v3176
    %v3914 = vunpack.c.h.b16 %v3176
    %v3915 = vunpack.c.l.b16 %v3177
    %v3916 = vunpack.c.h.b16 %v3177
    %v3917 = vunpack.c.l.b16 %v3178
    %v3918 = vunpack.c.h.b16 %v3178
    %v3919 = vunpack.c.l.b16 %v3179
    %v3920 = vunpack.c.h.b16 %v3179
    %v3921 = vunpack.c.l.b16 %v3180
    %v3922 = vunpack.c.h.b16 %v3180
    %v3923 = vunpack.c.l.b16 %v3181
    %v3924 = vunpack.c.h.b16 %v3181
    %v3925 = vunpack.c.l.b16 %v3182
    %v3926 = vunpack.c.h.b16 %v3182
    %v3927 = vunpack.c.l.b16 %v3183
    %v3928 = vunpack.c.h.b16 %v3183
    %v3929 = vunpack.c.l.b16 %v3184
    %v3930 = vunpack.c.h.b16 %v3184
    %v3931 = vunpack.c.l.b16 %v3185
    %v3932 = vunpack.c.h.b16 %v3185
    %v3933 = vunpack.c.l.b16 %v3186
    %v3934 = vunpack.c.h.b16 %v3186
    %v3935 = vunpack.c.l.b16 %v3187
    %v3936 = vunpack.c.h.b16 %v3187
    %v3937 = vunpack.c.l.b16 %v3188
    %v3938 = vunpack.c.h.b16 %v3188
    %v3939 = vunpack.c.l.b16 %v3189
    %v3940 = vunpack.c.h.b16 %v3189
    %v3941 = vunpack.c.l.b16 %v3190
    %v3942 = vunpack.c.h.b16 %v3190
    %v3943 = vunpack.c.l.b16 %v3191
    %v3944 = vunpack.c.h.b16 %v3191
    %v3945 = vunpack.c.l.b16 %v3192
    %v3946 = vunpack.c.h.b16 %v3192
    %v3947 = vunpack.c.l.b16 %v3193
    %v3948 = vunpack.c.h.b16 %v3193
    %v3949 = vunpack.c.l.b16 %v3194
    %v3950 = vunpack.c.h.b16 %v3194
    %v3951 = vunpack.c.l.b16 %v3195
    %v3952 = vunpack.c.h.b16 %v3195
    %v3953 = vunpack.c.l.b16 %v3196
    %v3954 = vunpack.c.h.b16 %v3196
    %v3955 = vunpack.c.l.b16 %v3197
    %v3956 = vunpack.c.h.b16 %v3197
    %v3957 = vunpack.c.l.b16 %v3198
    %v3958 = vunpack.c.h.b16 %v3198
    %v3959 = vunpack.c.l.b16 %v3199
    %v3960 = vunpack.c.h.b16 %v3199
    %v3961 = vunpack.c.l.b16 %v3200
    %v3962 = vunpack.c.h.b16 %v3200
    %v3963 = vunpack.c.l.b16 %v3201
    %v3964 = vunpack.c.h.b16 %v3201
    %v3965 = vunpack.c.l.b16 %v3202
    %v3966 = vunpack.c.h.b16 %v3202
    %v3967 = vunpack.c.l.b16 %v3203
    %v3968 = vunpack.c.h.b16 %v3203
    %v3969 = vunpack.c.l.b16 %v3204
    %v3970 = vunpack.c.h.b16 %v3204
    %v3971 = vunpack.c.l.b16 %v3205
    %v3972 = vunpack.c.h.b16 %v3205
    %v3973 = vunpack.c.l.b16 %v3206
    %v3974 = vunpack.c.h.b16 %v3206
    %v3975 = vunpack.c.l.b16 %v3207
    %v3976 = vunpack.c.h.b16 %v3207
    %v3977 = vunpack.c.l.b16 %v3208
    %v3978 = vunpack.c.h.b16 %v3208
    %v3979 = vunpack.c.l.b16 %v3209
    %v3980 = vunpack.c.h.b16 %v3209
    %v3981 = vunpack.c.l.b16 %v3210
    %v3982 = vunpack.c.h.b16 %v3210
    %v3983 = vunpack.c.l.b16 %v3211
    %v3984 = vunpack.c.h.b16 %v3211
    %v3985 = vunpack.c.l.b16 %v3212
    %v3986 = vunpack.c.h.b16 %v3212
    %v3987 = vunpack.c.l.b16 %v3213
    %v3988 = vunpack.c.h.b16 %v3213
    %v3989 = vunpack.c.l.b16 %v3214
    %v3990 = vunpack.c.h.b16 %v3214
    %v3991 = vunpack.c.l.b16 %v3215
    %v3992 = vunpack.c.h.b16 %v3215
    %v3993 = vunpack.c.l.b16 %v3216
    %v3994 = vunpack.c.h.b16 %v3216
    %v3995 = vunpack.c.l.b16 %v3217
    %v3996 = vunpack.c.h.b16 %v3217
    %v3997 = vunpack.c.l.b16 %v3218
    %v3998 = vunpack.c.h.b16 %v3218
    %v3999 = vunpack.c.l.b16 %v3219
    %v4000 = vunpack.c.h.b16 %v3219
    %v4001 = vunpack.c.l.b16 %v3220
    %v4002 = vunpack.c.h.b16 %v3220
    %v4003 = vunpack.c.l.b16 %v3221
    %v4004 = vunpack.c.h.b16 %v3221
    %v4005 = vunpack.c.l.b16 %v3222
    %v4006 = vunpack.c.h.b16 %v3222
    %v4007 = vunpack.c.l.b16 %v3223
    %v4008 = vunpack.c.h.b16 %v3223
    %v4009 = vunpack.c.l.b16 %v3224
    %v4010 = vunpack.c.h.b16 %v3224
    %v4011 = vpack.c.b16 %v3507, %v3499
    %v4012 = vpack.c.b16 %v3508, %v3500
    %v4013 = vpack.c.b16 %v3509, %v3501
    %v4014 = vpack.c.b16 %v3510, %v3502
    %v4015 = vpack.c.b16 %v3511, %v3503
    %v4016 = vpack.c.b16 %v3512, %v3504
    %v4017 = vpack.c.b16 %v3513, %v3505
    %v4018 = vpack.c.b16 %v3514, %v3506
    %v4019 = vpack.c.b16 %v3523, %v3515
    %v4020 = vpack.c.b16 %v3524, %v3516
    %v4021 = vpack.c.b16 %v3525, %v3517
    %v4022 = vpack.c.b16 %v3526, %v3518
    %v4023 = vpack.c.b16 %v3527, %v3519
    %v4024 = vpack.c.b16 %v3528, %v3520
    %v4025 = vpack.c.b16 %v3529, %v3521
    %v4026 = vpack.c.b16 %v3530, %v3522
    %v4027 = vpack.c.b16 %v3539, %v3531
    %v4028 = vpack.c.b16 %v3540, %v3532
    %v4029 = vpack.c.b16 %v3541, %v3533
    %v4030 = vpack.c.b16 %v3542, %v3534
    %v4031 = vpack.c.b16 %v3543, %v3535
    %v4032 = vpack.c.b16 %v3544, %v3536
    %v4033 = vpack.c.b16 %v3545, %v3537
    %v4034 = vpack.c.b16 %v3546, %v3538
    %v4035 = vpack.c.b16 %v3555, %v3547
    %v4036 = vpack.c.b16 %v3556, %v3548
    %v4037 = vpack.c.b16 %v3557, %v3549
    %v4038 = vpack.c.b16 %v3558, %v3550
    %v4039 = vpack.c.b16 %v3559, %v3551
    %v4040 = vpack.c.b16 %v3560, %v3552
    %v4041 = vpack.c.b16 %v3561, %v3553
    %v4042 = vpack.c.b16 %v3562, %v3554
    %v4043 = vpack.c.b16 %v3571, %v3563
    %v4044 = vpack.c.b16 %v3572, %v3564
    %v4045 = vpack.c.b16 %v3573, %v3565
    %v4046 = vpack.c.b16 %v3574, %v3566
    %v4047 = vpack.c.b16 %v3575, %v3567
    %v4048 = vpack.c.b16 %v3576, %v3568
    %v4049 = vpack.c.b16 %v3577, %v3569
    %v4050 = vpack.c.b16 %v3578, %v3570
    %v4051 = vpack.c.b16 %v3587, %v3579
    %v4052 = vpack.c.b16 %v3588, %v3580
    %v4053 = vpack.c.b16 %v3589, %v3581
    %v4054 = vpack.c.b16 %v3590, %v3582
    %v4055 = vpack.c.b16 %v3591, %v3583
    %v4056 = vpack.c.b16 %v3592, %v3584
    %v4057 = vpack.c.b16 %v3593, %v3585
    %v4058 = vpack.c.b16 %v3594, %v3586
    %v4059 = vpack.c.b16 %v3603, %v3595
    %v4060 = vpack.c.b16 %v3604, %v3596
    %v4061 = vpack.c.b16 %v3605, %v3597
    %v4062 = vpack.c.b16 %v3606, %v3598
    %v4063 = vpack.c.b16 %v3607, %v3599
    %v4064 = vpack.c.b16 %v3608, %v3600
    %v4065 = vpack.c.b16 %v3609, %v3601
    %v4066 = vpack.c.b16 %v3610, %v3602
    %v4067 = vpack.c.b16 %v3619, %v3611
    %v4068 = vpack.c.b16 %v3620, %v3612
    %v4069 = vpack.c.b16 %v3621, %v3613
    %v4070 = vpack.c.b16 %v3622, %v3614
    %v4071 = vpack.c.b16 %v3623, %v3615
    %v4072 = vpack.c.b16 %v3624, %v3616
    %v4073 = vpack.c.b16 %v3625, %v3617
    %v4074 = vpack.c.b16 %v3626, %v3618
    %v4075 = vpack.c.b16 %v3635, %v3627
    %v4076 = vpack.c.b16 %v3636, %v3628
    %v4077 = vpack.c.b16 %v3637, %v3629
    %v4078 = vpack.c.b16 %v3638, %v3630
    %v4079 = vpack.c.b16 %v3639, %v3631
    %v4080 = vpack.c.b16 %v3640, %v3632
    %v4081 = vpack.c.b16 %v3641, %v3633
    %v4082 = vpack.c.b16 %v3642, %v3634
    %v4083 = vpack.c.b16 %v3651, %v3643
    %v4084 = vpack.c.b16 %v3652, %v3644
    %v4085 = vpack.c.b16 %v3653, %v3645
    %v4086 = vpack.c.b16 %v3654, %v3646
    %v4087 = vpack.c.b16 %v3655, %v3647
    %v4088 = vpack.c.b16 %v3656, %v3648
    %v4089 = vpack.c.b16 %v3657, %v3649
    %v4090 = vpack.c.b16 %v3658, %v3650
    %v4091 = vpack.c.b16 %v3667, %v3659
    %v4092 = vpack.c.b16 %v3668, %v3660
    %v4093 = vpack.c.b16 %v3669, %v3661
    %v4094 = vpack.c.b16 %v3670, %v3662
    %v4095 = vpack.c.b16 %v3671, %v3663
    %v4096 = vpack.c.b16 %v3672, %v3664
    %v4097 = vpack.c.b16 %v3673, %v3665
    %v4098 = vpack.c.b16 %v3674, %v3666
    %v4099 = vpack.c.b16 %v3683, %v3675
    %v4100 = vpack.c.b16 %v3684, %v3676
    %v4101 = vpack.c.b16 %v3685, %v3677
    %v4102 = vpack.c.b16 %v3686, %v3678
    %v4103 = vpack.c.b16 %v3687, %v3679
    %v4104 = vpack.c.b16 %v3688, %v3680
    %v4105 = vpack.c.b16 %v3689, %v3681
    %v4106 = vpack.c.b16 %v3690, %v3682
    %v4107 = vpack.c.b16 %v3699, %v3691
    %v4108 = vpack.c.b16 %v3700, %v3692
    %v4109 = vpack.c.b16 %v3701, %v3693
    %v4110 = vpack.c.b16 %v3702, %v3694
    %v4111 = vpack.c.b16 %v3703, %v3695
    %v4112 = vpack.c.b16 %v3704, %v3696
    %v4113 = vpack.c.b16 %v3705, %v3697
    %v4114 = vpack.c.b16 %v3706, %v3698
    %v4115 = vpack.c.b16 %v3715, %v3707
    %v4116 = vpack.c.b16 %v3716, %v3708
    %v4117 = vpack.c.b16 %v3717, %v3709
    %v4118 = vpack.c.b16 %v3718, %v3710
    %v4119 = vpack.c.b16 %v3719, %v3711
    %v4120 = vpack.c.b16 %v3720, %v3712
    %v4121 = vpack.c.b16 %v3721, %v3713
    %v4122 = vpack.c.b16 %v3722, %v3714
    %v4123 = vpack.c.b16 %v3731, %v3723
    %v4124 = vpack.c.b16 %v3732, %v3724
    %v4125 = vpack.c.b16 %v3733, %v3725
    %v4126 = vpack.c.b16 %v3734, %v3726
    %v4127 = vpack.c.b16 %v3735, %v3727
    %v4128 = vpack.c.b16 %v3736, %v3728
    %v4129 = vpack.c.b16 %v3737, %v3729
    %v4130 = vpack.c.b16 %v3738, %v3730
    %v4131 = vpack.c.b16 %v3747, %v3739
    %v4132 = vpack.c.b16 %v3748, %v3740
    %v4133 = vpack.c.b16 %v3749, %v3741
    %v4134 = vpack.c.b16 %v3750, %v3742
    %v4135 = vpack.c.b16 %v3751, %v3743
    %v4136 = vpack.c.b16 %v3752, %v3744
    %v4137 = vpack.c.b16 %v3753, %v3745
    %v4138 = vpack.c.b16 %v3754, %v3746
    %v4139 = vpack.c.b16 %v3763, %v3755
    %v4140 = vpack.c.b16 %v3764, %v3756
    %v4141 = vpack.c.b16 %v3765, %v3757
    %v4142 = vpack.c.b16 %v3766, %v3758
    %v4143 = vpack.c.b16 %v3767, %v3759
    %v4144 = vpack.c.b16 %v3768, %v3760
    %v4145 = vpack.c.b16 %v3769, %v3761
    %v4146 = vpack.c.b16 %v3770, %v3762
    %v4147 = vpack.c.b16 %v3779, %v3771
    %v4148 = vpack.c.b16 %v3780, %v3772
    %v4149 = vpack.c.b16 %v3781, %v3773
    %v4150 = vpack.c.b16 %v3782, %v3774
    %v4151 = vpack.c.b16 %v3783, %v3775
    %v4152 = vpack.c.b16 %v3784, %v3776
    %v4153 = vpack.c.b16 %v3785, %v3777
    %v4154 = vpack.c.b16 %v3786, %v3778
    %v4155 = vpack.c.b16 %v3795, %v3787
    %v4156 = vpack.c.b16 %v3796, %v3788
    %v4157 = vpack.c.b16 %v3797, %v3789
    %v4158 = vpack.c.b16 %v3798, %v3790
    %v4159 = vpack.c.b16 %v3799, %v3791
    %v4160 = vpack.c.b16 %v3800, %v3792
    %v4161 = vpack.c.b16 %v3801, %v3793
    %v4162 = vpack.c.b16 %v3802, %v3794
    %v4163 = vpack.c.b16 %v3811, %v3803
    %v4164 = vpack.c.b16 %v3812, %v3804
    %v4165 = vpack.c.b16 %v3813, %v3805
    %v4166 = vpack.c.b16 %v3814, %v3806
    %v4167 = vpack.c.b16 %v3815, %v3807
    %v4168 = vpack.c.b16 %v3816, %v3808
    %v4169 = vpack.c.b16 %v3817, %v3809
    %v4170 = vpack.c.b16 %v3818, %v3810
    %v4171 = vpack.c.b16 %v3827, %v3819
    %v4172 = vpack.c.b16 %v3828, %v3820
    %v4173 = vpack.c.b16 %v3829, %v3821
    %v4174 = vpack.c.b16 %v3830, %v3822
    %v4175 = vpack.c.b16 %v3831, %v3823
    %v4176 = vpack.c.b16 %v3832, %v3824
    %v4177 = vpack.c.b16 %v3833, %v3825
    %v4178 = vpack.c.b16 %v3834, %v3826
    %v4179 = vpack.c.b16 %v3843, %v3835
    %v4180 = vpack.c.b16 %v3844, %v3836
    %v4181 = vpack.c.b16 %v3845, %v3837
    %v4182 = vpack.c.b16 %v3846, %v3838
    %v4183 = vpack.c.b16 %v3847, %v3839
    %v4184 = vpack.c.b16 %v3848, %v3840
    %v4185 = vpack.c.b16 %v3849, %v3841
    %v4186 = vpack.c.b16 %v3850, %v3842
    %v4187 = vpack.c.b16 %v3859, %v3851
    %v4188 = vpack.c.b16 %v3860, %v3852
    %v4189 = vpack.c.b16 %v3861, %v3853
    %v4190 = vpack.c.b16 %v3862, %v3854
    %v4191 = vpack.c.b16 %v3863, %v3855
    %v4192 = vpack.c.b16 %v3864, %v3856
    %v4193 = vpack.c.b16 %v3865, %v3857
    %v4194 = vpack.c.b16 %v3866, %v3858
    %v4195 = vpack.c.b16 %v3875, %v3867
    %v4196 = vpack.c.b16 %v3876, %v3868
    %v4197 = vpack.c.b16 %v3877, %v3869
    %v4198 = vpack.c.b16 %v3878, %v3870
    %v4199 = vpack.c.b16 %v3879, %v3871
    %v4200 = vpack.c.b16 %v3880, %v3872
    %v4201 = vpack.c.b16 %v3881, %v3873
    %v4202 = vpack.c.b16 %v3882, %v3874
    %v4203 = vpack.c.b16 %v3891, %v3883
    %v4204 = vpack.c.b16 %v3892, %v3884
    %v4205 = vpack.c.b16 %v3893, %v3885
    %v4206 = vpack.c.b16 %v3894, %v3886
    %v4207 = vpack.c.b16 %v3895, %v3887
    %v4208 = vpack.c.b16 %v3896, %v3888
    %v4209 = vpack.c.b16 %v3897, %v3889
    %v4210 = vpack.c.b16 %v3898, %v3890
    %v4211 = vpack.c.b16 %v3907, %v3899
    %v4212 = vpack.c.b16 %v3908, %v3900
    %v4213 = vpack.c.b16 %v3909, %v3901
    %v4214 = vpack.c.b16 %v3910, %v3902
    %v4215 = vpack.c.b16 %v3911, %v3903
    %v4216 = vpack.c.b16 %v3912, %v3904
    %v4217 = vpack.c.b16 %v3913, %v3905
    %v4218 = vpack.c.b16 %v3914, %v3906
    %v4219 = vpack.c.b16 %v3923, %v3915
    %v4220 = vpack.c.b16 %v3924, %v3916
    %v4221 = vpack.c.b16 %v3925, %v3917
    %v4222 = vpack.c.b16 %v3926, %v3918
    %v4223 = vpack.c.b16 %v3927, %v3919
    %v4224 = vpack.c.b16 %v3928, %v3920
    %v4225 = vpack.c.b16 %v3929, %v3921
    %v4226 = vpack.c.b16 %v3930, %v3922
    %v4227 = vpack.c.b16 %v3939, %v3931
    %v4228 = vpack.c.b16 %v3940, %v3932
    %v4229 = vpack.c.b16 %v3941, %v3933
    %v4230 = vpack.c.b16 %v3942, %v3934
    %v4231 = vpack.c.b16 %v3943, %v3935
    %v4232 = vpack.c.b16 %v3944, %v3936
    %v4233 = vpack.c.b16 %v3945, %v3937
    %v4234 = vpack.c.b16 %v3946, %v3938
    %v4235 = vpack.c.b16 %v3955, %v3947
    %v4236 = vpack.c.b16 %v3956, %v3948
    %v4237 = vpack.c.b16 %v3957, %v3949
    %v4238 = vpack.c.b16 %v3958, %v3950
    %v4239 = vpack.c.b16 %v3959, %v3951
    %v4240 = vpack.c.b16 %v3960, %v3952
    %v4241 = vpack.c.b16 %v3961, %v3953
    %v4242 = vpack.c.b16 %v3962, %v3954
    %v4243 = vpack.c.b16 %v3971, %v3963
    %v4244 = vpack.c.b16 %v3972, %v3964
    %v4245 = vpack.c.b16 %v3973, %v3965
    %v4246 = vpack.c.b16 %v3974, %v3966
    %v4247 = vpack.c.b16 %v3975, %v3967
    %v4248 = vpack.c.b16 %v3976, %v3968
    %v4249 = vpack.c.b16 %v3977, %v3969
    %v4250 = vpack.c.b16 %v3978, %v3970
    %v4251 = vpack.c.b16 %v3987, %v3979
    %v4252 = vpack.c.b16 %v3988, %v3980
    %v4253 = vpack.c.b16 %v3989, %v3981
    %v4254 = vpack.c.b16 %v3990, %v3982
    %v4255 = vpack.c.b16 %v3991, %v3983
    %v4256 = vpack.c.b16 %v3992, %v3984
    %v4257 = vpack.c.b16 %v3993, %v3985
    %v4258 = vpack.c.b16 %v3994, %v3986
    %v4259 = vpack.c.b16 %v4003, %v3995
    %v4260 = vpack.c.b16 %v4004, %v3996
    %v4261 = vpack.c.b16 %v4005, %v3997
    %v4262 = vpack.c.b16 %v4006, %v3998
    %v4263 = vpack.c.b16 %v4007, %v3999
    %v4264 = vpack.c.b16 %v4008, %v4000
    %v4265 = vpack.c.b16 %v4009, %v4001
    %v4266 = vpack.c.b16 %v4010, %v4002
    %4523 = vmatpush.bf16.msra.mxu0 %v4067
    %4524 = vmatpush.bf16.msra.mxu0 %v4059
    %4525 = vmatpush.bf16.msra.mxu0 %v4051
    %4526 = vmatpush.bf16.msra.mxu0 %v4043
    %4527 = vmatpush.bf16.msra.mxu0 %v4035
    %4528 = vmatpush.bf16.msra.mxu0 %v4027
    %4529 = vmatpush.bf16.msra.mxu0 %v4019
    %4530 = vmatpush.bf16.msra.mxu0 %v4011
    %4531 = vmatmul.bf16.gmra.mxu0 %v771
    %v4532 = vpop.f32.mrf.mxu0
    %v4533 = vadd.f32 %v3227, %v4532
    %v4534 = vpop.f32.mrf.mxu0
    %v4535 = vadd.f32 %v3227, %v4534
    %4536 = vdwg.mxu0
    %4537 = vmatpush.bf16.msra.mxu0 %v4131
    %4538 = vmatpush.bf16.msra.mxu0 %v4123
    %4539 = vmatpush.bf16.msra.mxu0 %v4115
    %4540 = vmatpush.bf16.msra.mxu0 %v4107
    %4541 = vmatpush.bf16.msra.mxu0 %v4099
    %4542 = vmatpush.bf16.msra.mxu0 %v4091
    %4543 = vmatpush.bf16.msra.mxu0 %v4083
    %4544 = vmatpush.bf16.msra.mxu0 %v4075
    %4545 = vmatmul.bf16.gmra.mxu0 %v772
    %v4546 = vpop.f32.mrf.mxu0
    %v4547 = vadd.f32 %v4533, %v4546
    %v4548 = vpop.f32.mrf.mxu0
    %v4549 = vadd.f32 %v4535, %v4548
    %4550 = vdwg.mxu0
    %4551 = vmatpush.bf16.msra.mxu0 %v4195
    %4552 = vmatpush.bf16.msra.mxu0 %v4187
    %4553 = vmatpush.bf16.msra.mxu0 %v4179
    %4554 = vmatpush.bf16.msra.mxu0 %v4171
    %4555 = vmatpush.bf16.msra.mxu0 %v4163
    %4556 = vmatpush.bf16.msra.mxu0 %v4155
    %4557 = vmatpush.bf16.msra.mxu0 %v4147
    %4558 = vmatpush.bf16.msra.mxu0 %v4139
    %4559 = vmatmul.bf16.gmra.mxu0 %v773
    %v4560 = vpop.f32.mrf.mxu0
    %v4561 = vadd.f32 %v4547, %v4560
    %v4562 = vpop.f32.mrf.mxu0
    %v4563 = vadd.f32 %v4549, %v4562
    %4564 = vdwg.mxu0
    %4565 = vmatpush.bf16.msra.mxu0 %v4259
    %4566 = vmatpush.bf16.msra.mxu0 %v4251
    %4567 = vmatpush.bf16.msra.mxu0 %v4243
    %4568 = vmatpush.bf16.msra.mxu0 %v4235
    %4569 = vmatpush.bf16.msra.mxu0 %v4227
    %4570 = vmatpush.bf16.msra.mxu0 %v4219
    %4571 = vmatpush.bf16.msra.mxu0 %v4211
    %4572 = vmatpush.bf16.msra.mxu0 %v4203
    %4573 = vmatmul.bf16.gmra.mxu0 %v774
    %v4574 = vpop.f32.mrf.mxu0
    %v4575 = vadd.f32 %v4561, %v4574
    %v4576 = vpop.f32.mrf.mxu0
    %v4577 = vadd.f32 %v4563, %v4576
    %4578 = vdwg.mxu0
    %4579 = vmatpush.bf16.msra.mxu0 %v4068
    %4580 = vmatpush.bf16.msra.mxu0 %v4060
    %4581 = vmatpush.bf16.msra.mxu0 %v4052
    %4582 = vmatpush.bf16.msra.mxu0 %v4044
    %4583 = vmatpush.bf16.msra.mxu0 %v4036
    %4584 = vmatpush.bf16.msra.mxu0 %v4028
    %4585 = vmatpush.bf16.msra.mxu0 %v4020
    %4586 = vmatpush.bf16.msra.mxu0 %v4012
    %4587 = vmatmul.bf16.gmra.mxu0 %v771
    %v4588 = vpop.f32.mrf.mxu0
    %v4589 = vadd.f32 %v3228, %v4588
    %v4590 = vpop.f32.mrf.mxu0
    %v4591 = vadd.f32 %v3228, %v4590
    %4592 = vdwg.mxu0
    %4593 = vmatpush.bf16.msra.mxu0 %v4132
    %4594 = vmatpush.bf16.msra.mxu0 %v4124
    %4595 = vmatpush.bf16.msra.mxu0 %v4116
    %4596 = vmatpush.bf16.msra.mxu0 %v4108
    %4597 = vmatpush.bf16.msra.mxu0 %v4100
    %4598 = vmatpush.bf16.msra.mxu0 %v4092
    %4599 = vmatpush.bf16.msra.mxu0 %v4084
    %4600 = vmatpush.bf16.msra.mxu0 %v4076
    %4601 = vmatmul.bf16.gmra.mxu0 %v772
    %v4602 = vpop.f32.mrf.mxu0
    %v4603 = vadd.f32 %v4589, %v4602
    %v4604 = vpop.f32.mrf.mxu0
    %v4605 = vadd.f32 %v4591, %v4604
    %4606 = vdwg.mxu0
    %4607 = vmatpush.bf16.msra.mxu0 %v4196
    %4608 = vmatpush.bf16.msra.mxu0 %v4188
    %4609 = vmatpush.bf16.msra.mxu0 %v4180
    %4610 = vmatpush.bf16.msra.mxu0 %v4172
    %4611 = vmatpush.bf16.msra.mxu0 %v4164
    %4612 = vmatpush.bf16.msra.mxu0 %v4156
    %4613 = vmatpush.bf16.msra.mxu0 %v4148
    %4614 = vmatpush.bf16.msra.mxu0 %v4140
    %4615 = vmatmul.bf16.gmra.mxu0 %v773
    %v4616 = vpop.f32.mrf.mxu0
    %v4617 = vadd.f32 %v4603, %v4616
    %v4618 = vpop.f32.mrf.mxu0
    %v4619 = vadd.f32 %v4605, %v4618
    %4620 = vdwg.mxu0
    %4621 = vmatpush.bf16.msra.mxu0 %v4260
    %4622 = vmatpush.bf16.msra.mxu0 %v4252
    %4623 = vmatpush.bf16.msra.mxu0 %v4244
    %4624 = vmatpush.bf16.msra.mxu0 %v4236
    %4625 = vmatpush.bf16.msra.mxu0 %v4228
    %4626 = vmatpush.bf16.msra.mxu0 %v4220
    %4627 = vmatpush.bf16.msra.mxu0 %v4212
    %4628 = vmatpush.bf16.msra.mxu0 %v4204
    %4629 = vmatmul.bf16.gmra.mxu0 %v774
    %v4630 = vpop.f32.mrf.mxu0
    %v4631 = vadd.f32 %v4617, %v4630
    %v4632 = vpop.f32.mrf.mxu0
    %v4633 = vadd.f32 %v4619, %v4632
    %4634 = vdwg.mxu0
    %4635 = vmatpush.bf16.msra.mxu0 %v4069
    %4636 = vmatpush.bf16.msra.mxu0 %v4061
    %4637 = vmatpush.bf16.msra.mxu0 %v4053
    %4638 = vmatpush.bf16.msra.mxu0 %v4045
    %4639 = vmatpush.bf16.msra.mxu0 %v4037
    %4640 = vmatpush.bf16.msra.mxu0 %v4029
    %4641 = vmatpush.bf16.msra.mxu0 %v4021
    %4642 = vmatpush.bf16.msra.mxu0 %v4013
    %4643 = vmatmul.bf16.gmra.mxu0 %v771
    %v4644 = vpop.f32.mrf.mxu0
    %v4645 = vadd.f32 %v3229, %v4644
    %v4646 = vpop.f32.mrf.mxu0
    %v4647 = vadd.f32 %v3229, %v4646
    %4648 = vdwg.mxu0
    %4649 = vmatpush.bf16.msra.mxu0 %v4133
    %4650 = vmatpush.bf16.msra.mxu0 %v4125
    %4651 = vmatpush.bf16.msra.mxu0 %v4117
    %4652 = vmatpush.bf16.msra.mxu0 %v4109
    %4653 = vmatpush.bf16.msra.mxu0 %v4101
    %4654 = vmatpush.bf16.msra.mxu0 %v4093
    %4655 = vmatpush.bf16.msra.mxu0 %v4085
    %4656 = vmatpush.bf16.msra.mxu0 %v4077
    %4657 = vmatmul.bf16.gmra.mxu0 %v772
    %v4658 = vpop.f32.mrf.mxu0
    %v4659 = vadd.f32 %v4645, %v4658
    %v4660 = vpop.f32.mrf.mxu0
    %v4661 = vadd.f32 %v4647, %v4660
    %4662 = vdwg.mxu0
    %4663 = vmatpush.bf16.msra.mxu0 %v4197
    %4664 = vmatpush.bf16.msra.mxu0 %v4189
    %4665 = vmatpush.bf16.msra.mxu0 %v4181
    %4666 = vmatpush.bf16.msra.mxu0 %v4173
    %4667 = vmatpush.bf16.msra.mxu0 %v4165
    %4668 = vmatpush.bf16.msra.mxu0 %v4157
    %4669 = vmatpush.bf16.msra.mxu0 %v4149
    %4670 = vmatpush.bf16.msra.mxu0 %v4141
    %4671 = vmatmul.bf16.gmra.mxu0 %v773
    %v4672 = vpop.f32.mrf.mxu0
    %v4673 = vadd.f32 %v4659, %v4672
    %v4674 = vpop.f32.mrf.mxu0
    %v4675 = vadd.f32 %v4661, %v4674
    %4676 = vdwg.mxu0
    %4677 = vmatpush.bf16.msra.mxu0 %v4261
    %4678 = vmatpush.bf16.msra.mxu0 %v4253
    %4679 = vmatpush.bf16.msra.mxu0 %v4245
    %4680 = vmatpush.bf16.msra.mxu0 %v4237
    %4681 = vmatpush.bf16.msra.mxu0 %v4229
    %4682 = vmatpush.bf16.msra.mxu0 %v4221
    %4683 = vmatpush.bf16.msra.mxu0 %v4213
    %4684 = vmatpush.bf16.msra.mxu0 %v4205
    %4685 = vmatmul.bf16.gmra.mxu0 %v774
    %v4686 = vpop.f32.mrf.mxu0
    %v4687 = vadd.f32 %v4673, %v4686
    %v4688 = vpop.f32.mrf.mxu0
    %v4689 = vadd.f32 %v4675, %v4688
    %4690 = vdwg.mxu0
    %4691 = vmatpush.bf16.msra.mxu0 %v4070
    %4692 = vmatpush.bf16.msra.mxu0 %v4062
    %4693 = vmatpush.bf16.msra.mxu0 %v4054
    %4694 = vmatpush.bf16.msra.mxu0 %v4046
    %4695 = vmatpush.bf16.msra.mxu0 %v4038
    %4696 = vmatpush.bf16.msra.mxu0 %v4030
    %4697 = vmatpush.bf16.msra.mxu0 %v4022
    %4698 = vmatpush.bf16.msra.mxu0 %v4014
    %4699 = vmatmul.bf16.gmra.mxu0 %v771
    %v4700 = vpop.f32.mrf.mxu0
    %v4701 = vadd.f32 %v3230, %v4700
    %v4702 = vpop.f32.mrf.mxu0
    %v4703 = vadd.f32 %v3230, %v4702
    %4704 = vdwg.mxu0
    %4705 = vmatpush.bf16.msra.mxu0 %v4134
    %4706 = vmatpush.bf16.msra.mxu0 %v4126
    %4707 = vmatpush.bf16.msra.mxu0 %v4118
    %4708 = vmatpush.bf16.msra.mxu0 %v4110
    %4709 = vmatpush.bf16.msra.mxu0 %v4102
    %4710 = vmatpush.bf16.msra.mxu0 %v4094
    %4711 = vmatpush.bf16.msra.mxu0 %v4086
    %4712 = vmatpush.bf16.msra.mxu0 %v4078
    %4713 = vmatmul.bf16.gmra.mxu0 %v772
    %v4714 = vpop.f32.mrf.mxu0
    %v4715 = vadd.f32 %v4701, %v4714
    %v4716 = vpop.f32.mrf.mxu0
    %v4717 = vadd.f32 %v4703, %v4716
    %4718 = vdwg.mxu0
    %4719 = vmatpush.bf16.msra.mxu0 %v4198
    %4720 = vmatpush.bf16.msra.mxu0 %v4190
    %4721 = vmatpush.bf16.msra.mxu0 %v4182
    %4722 = vmatpush.bf16.msra.mxu0 %v4174
    %4723 = vmatpush.bf16.msra.mxu0 %v4166
    %4724 = vmatpush.bf16.msra.mxu0 %v4158
    %4725 = vmatpush.bf16.msra.mxu0 %v4150
    %4726 = vmatpush.bf16.msra.mxu0 %v4142
    %4727 = vmatmul.bf16.gmra.mxu0 %v773
    %v4728 = vpop.f32.mrf.mxu0
    %v4729 = vadd.f32 %v4715, %v4728
    %v4730 = vpop.f32.mrf.mxu0
    %v4731 = vadd.f32 %v4717, %v4730
    %4732 = vdwg.mxu0
    %4733 = vmatpush.bf16.msra.mxu0 %v4262
    %4734 = vmatpush.bf16.msra.mxu0 %v4254
    %4735 = vmatpush.bf16.msra.mxu0 %v4246
    %4736 = vmatpush.bf16.msra.mxu0 %v4238
    %4737 = vmatpush.bf16.msra.mxu0 %v4230
    %4738 = vmatpush.bf16.msra.mxu0 %v4222
    %4739 = vmatpush.bf16.msra.mxu0 %v4214
    %4740 = vmatpush.bf16.msra.mxu0 %v4206
    %4741 = vmatmul.bf16.gmra.mxu0 %v774
    %v4742 = vpop.f32.mrf.mxu0
    %v4743 = vadd.f32 %v4729, %v4742
    %v4744 = vpop.f32.mrf.mxu0
    %v4745 = vadd.f32 %v4731, %v4744
    %4746 = vdwg.mxu0
    %4747 = vmatpush.bf16.msra.mxu0 %v4071
    %4748 = vmatpush.bf16.msra.mxu0 %v4063
    %4749 = vmatpush.bf16.msra.mxu0 %v4055
    %4750 = vmatpush.bf16.msra.mxu0 %v4047
    %4751 = vmatpush.bf16.msra.mxu0 %v4039
    %4752 = vmatpush.bf16.msra.mxu0 %v4031
    %4753 = vmatpush.bf16.msra.mxu0 %v4023
    %4754 = vmatpush.bf16.msra.mxu0 %v4015
    %4755 = vmatmul.bf16.gmra.mxu0 %v771
    %v4756 = vpop.f32.mrf.mxu0
    %v4757 = vadd.f32 %v3231, %v4756
    %v4758 = vpop.f32.mrf.mxu0
    %v4759 = vadd.f32 %v3231, %v4758
    %4760 = vdwg.mxu0
    %4761 = vmatpush.bf16.msra.mxu0 %v4135
    %4762 = vmatpush.bf16.msra.mxu0 %v4127
    %4763 = vmatpush.bf16.msra.mxu0 %v4119
    %4764 = vmatpush.bf16.msra.mxu0 %v4111
    %4765 = vmatpush.bf16.msra.mxu0 %v4103
    %4766 = vmatpush.bf16.msra.mxu0 %v4095
    %4767 = vmatpush.bf16.msra.mxu0 %v4087
    %4768 = vmatpush.bf16.msra.mxu0 %v4079
    %4769 = vmatmul.bf16.gmra.mxu0 %v772
    %v4770 = vpop.f32.mrf.mxu0
    %v4771 = vadd.f32 %v4757, %v4770
    %v4772 = vpop.f32.mrf.mxu0
    %v4773 = vadd.f32 %v4759, %v4772
    %4774 = vdwg.mxu0
    %4775 = vmatpush.bf16.msra.mxu0 %v4199
    %4776 = vmatpush.bf16.msra.mxu0 %v4191
    %4777 = vmatpush.bf16.msra.mxu0 %v4183
    %4778 = vmatpush.bf16.msra.mxu0 %v4175
    %4779 = vmatpush.bf16.msra.mxu0 %v4167
    %4780 = vmatpush.bf16.msra.mxu0 %v4159
    %4781 = vmatpush.bf16.msra.mxu0 %v4151
    %4782 = vmatpush.bf16.msra.mxu0 %v4143
    %4783 = vmatmul.bf16.gmra.mxu0 %v773
    %v4784 = vpop.f32.mrf.mxu0
    %v4785 = vadd.f32 %v4771, %v4784
    %v4786 = vpop.f32.mrf.mxu0
    %v4787 = vadd.f32 %v4773, %v4786
    %4788 = vdwg.mxu0
    %4789 = vmatpush.bf16.msra.mxu0 %v4263
    %4790 = vmatpush.bf16.msra.mxu0 %v4255
    %4791 = vmatpush.bf16.msra.mxu0 %v4247
    %4792 = vmatpush.bf16.msra.mxu0 %v4239
    %4793 = vmatpush.bf16.msra.mxu0 %v4231
    %4794 = vmatpush.bf16.msra.mxu0 %v4223
    %4795 = vmatpush.bf16.msra.mxu0 %v4215
    %4796 = vmatpush.bf16.msra.mxu0 %v4207
    %4797 = vmatmul.bf16.gmra.mxu0 %v774
    %v4798 = vpop.f32.mrf.mxu0
    %v4799 = vadd.f32 %v4785, %v4798
    %v4800 = vpop.f32.mrf.mxu0
    %v4801 = vadd.f32 %v4787, %v4800
    %4802 = vdwg.mxu0
    %4803 = vmatpush.bf16.msra.mxu0 %v4072
    %4804 = vmatpush.bf16.msra.mxu0 %v4064
    %4805 = vmatpush.bf16.msra.mxu0 %v4056
    %4806 = vmatpush.bf16.msra.mxu0 %v4048
    %4807 = vmatpush.bf16.msra.mxu0 %v4040
    %4808 = vmatpush.bf16.msra.mxu0 %v4032
    %4809 = vmatpush.bf16.msra.mxu0 %v4024
    %4810 = vmatpush.bf16.msra.mxu0 %v4016
    %4811 = vmatmul.bf16.gmra.mxu0 %v771
    %v4812 = vpop.f32.mrf.mxu0
    %v4813 = vadd.f32 %v3232, %v4812
    %v4814 = vpop.f32.mrf.mxu0
    %v4815 = vadd.f32 %v3232, %v4814
    %4816 = vdwg.mxu0
    %4817 = vmatpush.bf16.msra.mxu0 %v4136
    %4818 = vmatpush.bf16.msra.mxu0 %v4128
    %4819 = vmatpush.bf16.msra.mxu0 %v4120
    %4820 = vmatpush.bf16.msra.mxu0 %v4112
    %4821 = vmatpush.bf16.msra.mxu0 %v4104
    %4822 = vmatpush.bf16.msra.mxu0 %v4096
    %4823 = vmatpush.bf16.msra.mxu0 %v4088
    %4824 = vmatpush.bf16.msra.mxu0 %v4080
    %4825 = vmatmul.bf16.gmra.mxu0 %v772
    %v4826 = vpop.f32.mrf.mxu0
    %v4827 = vadd.f32 %v4813, %v4826
    %v4828 = vpop.f32.mrf.mxu0
    %v4829 = vadd.f32 %v4815, %v4828
    %4830 = vdwg.mxu0
    %4831 = vmatpush.bf16.msra.mxu0 %v4200
    %4832 = vmatpush.bf16.msra.mxu0 %v4192
    %4833 = vmatpush.bf16.msra.mxu0 %v4184
    %4834 = vmatpush.bf16.msra.mxu0 %v4176
    %4835 = vmatpush.bf16.msra.mxu0 %v4168
    %4836 = vmatpush.bf16.msra.mxu0 %v4160
    %4837 = vmatpush.bf16.msra.mxu0 %v4152
    %4838 = vmatpush.bf16.msra.mxu0 %v4144
    %4839 = vmatmul.bf16.gmra.mxu0 %v773
    %v4840 = vpop.f32.mrf.mxu0
    %v4841 = vadd.f32 %v4827, %v4840
    %v4842 = vpop.f32.mrf.mxu0
    %v4843 = vadd.f32 %v4829, %v4842
    %4844 = vdwg.mxu0
    %4845 = vmatpush.bf16.msra.mxu0 %v4264
    %4846 = vmatpush.bf16.msra.mxu0 %v4256
    %4847 = vmatpush.bf16.msra.mxu0 %v4248
    %4848 = vmatpush.bf16.msra.mxu0 %v4240
    %4849 = vmatpush.bf16.msra.mxu0 %v4232
    %4850 = vmatpush.bf16.msra.mxu0 %v4224
    %4851 = vmatpush.bf16.msra.mxu0 %v4216
    %4852 = vmatpush.bf16.msra.mxu0 %v4208
    %4853 = vmatmul.bf16.gmra.mxu0 %v774
    %v4854 = vpop.f32.mrf.mxu0
    %v4855 = vadd.f32 %v4841, %v4854
    %v4856 = vpop.f32.mrf.mxu0
    %v4857 = vadd.f32 %v4843, %v4856
    %4858 = vdwg.mxu0
    %4859 = vmatpush.bf16.msra.mxu0 %v4073
    %4860 = vmatpush.bf16.msra.mxu0 %v4065
    %4861 = vmatpush.bf16.msra.mxu0 %v4057
    %4862 = vmatpush.bf16.msra.mxu0 %v4049
    %4863 = vmatpush.bf16.msra.mxu0 %v4041
    %4864 = vmatpush.bf16.msra.mxu0 %v4033
    %4865 = vmatpush.bf16.msra.mxu0 %v4025
    %4866 = vmatpush.bf16.msra.mxu0 %v4017
    %4867 = vmatmul.bf16.gmra.mxu0 %v771
    %v4868 = vpop.f32.mrf.mxu0
    %v4869 = vadd.f32 %v3233, %v4868
    %v4870 = vpop.f32.mrf.mxu0
    %v4871 = vadd.f32 %v3233, %v4870
    %4872 = vdwg.mxu0
    %4873 = vmatpush.bf16.msra.mxu0 %v4137
    %4874 = vmatpush.bf16.msra.mxu0 %v4129
    %4875 = vmatpush.bf16.msra.mxu0 %v4121
    %4876 = vmatpush.bf16.msra.mxu0 %v4113
    %4877 = vmatpush.bf16.msra.mxu0 %v4105
    %4878 = vmatpush.bf16.msra.mxu0 %v4097
    %4879 = vmatpush.bf16.msra.mxu0 %v4089
    %4880 = vmatpush.bf16.msra.mxu0 %v4081
    %4881 = vmatmul.bf16.gmra.mxu0 %v772
    %v4882 = vpop.f32.mrf.mxu0
    %v4883 = vadd.f32 %v4869, %v4882
    %v4884 = vpop.f32.mrf.mxu0
    %v4885 = vadd.f32 %v4871, %v4884
    %4886 = vdwg.mxu0
    %4887 = vmatpush.bf16.msra.mxu0 %v4201
    %4888 = vmatpush.bf16.msra.mxu0 %v4193
    %4889 = vmatpush.bf16.msra.mxu0 %v4185
    %4890 = vmatpush.bf16.msra.mxu0 %v4177
    %4891 = vmatpush.bf16.msra.mxu0 %v4169
    %4892 = vmatpush.bf16.msra.mxu0 %v4161
    %4893 = vmatpush.bf16.msra.mxu0 %v4153
    %4894 = vmatpush.bf16.msra.mxu0 %v4145
    %4895 = vmatmul.bf16.gmra.mxu0 %v773
    %v4896 = vpop.f32.mrf.mxu0
    %v4897 = vadd.f32 %v4883, %v4896
    %v4898 = vpop.f32.mrf.mxu0
    %v4899 = vadd.f32 %v4885, %v4898
    %4900 = vdwg.mxu0
    %4901 = vmatpush.bf16.msra.mxu0 %v4265
    %4902 = vmatpush.bf16.msra.mxu0 %v4257
    %4903 = vmatpush.bf16.msra.mxu0 %v4249
    %4904 = vmatpush.bf16.msra.mxu0 %v4241
    %4905 = vmatpush.bf16.msra.mxu0 %v4233
    %4906 = vmatpush.bf16.msra.mxu0 %v4225
    %4907 = vmatpush.bf16.msra.mxu0 %v4217
    %4908 = vmatpush.bf16.msra.mxu0 %v4209
    %4909 = vmatmul.bf16.gmra.mxu0 %v774
    %v4910 = vpop.f32.mrf.mxu0
    %v4911 = vadd.f32 %v4897, %v4910
    %v4912 = vpop.f32.mrf.mxu0
    %v4913 = vadd.f32 %v4899, %v4912
    %4914 = vdwg.mxu0
    %4915 = vmatpush.bf16.msra.mxu0 %v4074
    %4916 = vmatpush.bf16.msra.mxu0 %v4066
    %4917 = vmatpush.bf16.msra.mxu0 %v4058
    %4918 = vmatpush.bf16.msra.mxu0 %v4050
    %4919 = vmatpush.bf16.msra.mxu0 %v4042
    %4920 = vmatpush.bf16.msra.mxu0 %v4034
    %4921 = vmatpush.bf16.msra.mxu0 %v4026
    %4922 = vmatpush.bf16.msra.mxu0 %v4018
    %4923 = vmatmul.bf16.gmra.mxu0 %v771
    %v4924 = vpop.f32.mrf.mxu0
    %v4925 = vadd.f32 %v3234, %v4924
    %v4926 = vpop.f32.mrf.mxu0
    %v4927 = vadd.f32 %v3234, %v4926
    %4928 = vdwg.mxu0
    %4929 = vmatpush.bf16.msra.mxu0 %v4138
    %4930 = vmatpush.bf16.msra.mxu0 %v4130
    %4931 = vmatpush.bf16.msra.mxu0 %v4122
    %4932 = vmatpush.bf16.msra.mxu0 %v4114
    %4933 = vmatpush.bf16.msra.mxu0 %v4106
    %4934 = vmatpush.bf16.msra.mxu0 %v4098
    %4935 = vmatpush.bf16.msra.mxu0 %v4090
    %4936 = vmatpush.bf16.msra.mxu0 %v4082
    %4937 = vmatmul.bf16.gmra.mxu0 %v772
    %v4938 = vpop.f32.mrf.mxu0
    %v4939 = vadd.f32 %v4925, %v4938
    %v4940 = vpop.f32.mrf.mxu0
    %v4941 = vadd.f32 %v4927, %v4940
    %4942 = vdwg.mxu0
    %4943 = vmatpush.bf16.msra.mxu0 %v4202
    %4944 = vmatpush.bf16.msra.mxu0 %v4194
    %4945 = vmatpush.bf16.msra.mxu0 %v4186
    %4946 = vmatpush.bf16.msra.mxu0 %v4178
    %4947 = vmatpush.bf16.msra.mxu0 %v4170
    %4948 = vmatpush.bf16.msra.mxu0 %v4162
    %4949 = vmatpush.bf16.msra.mxu0 %v4154
    %4950 = vmatpush.bf16.msra.mxu0 %v4146
    %4951 = vmatmul.bf16.gmra.mxu0 %v773
    %v4952 = vpop.f32.mrf.mxu0
    %v4953 = vadd.f32 %v4939, %v4952
    %v4954 = vpop.f32.mrf.mxu0
    %v4955 = vadd.f32 %v4941, %v4954
    %4956 = vdwg.mxu0
    %4957 = vmatpush.bf16.msra.mxu0 %v4266
    %4958 = vmatpush.bf16.msra.mxu0 %v4258
    %4959 = vmatpush.bf16.msra.mxu0 %v4250
    %4960 = vmatpush.bf16.msra.mxu0 %v4242
    %4961 = vmatpush.bf16.msra.mxu0 %v4234
    %4962 = vmatpush.bf16.msra.mxu0 %v4226
    %4963 = vmatpush.bf16.msra.mxu0 %v4218
    %4964 = vmatpush.bf16.msra.mxu0 %v4210
    %4965 = vmatmul.bf16.gmra.mxu0 %v774
    %v4966 = vpop.f32.mrf.mxu0
    %v4967 = vadd.f32 %v4953, %v4966
    %v4968 = vpop.f32.mrf.mxu0
    %v4969 = vadd.f32 %v4955, %v4968
    %4970 = vdwg.mxu0
    %v4971 = vmin.f32 %v4575, 20.0
    %v4972 = vmin.f32 %v4631, 20.0
    %v4973 = vmin.f32 %v4687, 20.0
    %v4974 = vmin.f32 %v4743, 20.0
    %v4975 = vmin.f32 %v4799, 20.0
    %v4976 = vmin.f32 %v4855, 20.0
    %v4977 = vmin.f32 %v4911, 20.0
    %v4978 = vmin.f32 %v4967, 20.0
    %v4979 = vmin.f32 %v4577, 20.0
    %v4980 = vmin.f32 %v4633, 20.0
    %v4981 = vmin.f32 %v4689, 20.0
    %v4982 = vmin.f32 %v4745, 20.0
    %v4983 = vmin.f32 %v4801, 20.0
    %v4984 = vmin.f32 %v4857, 20.0
    %v4985 = vmin.f32 %v4913, 20.0
    %v4986 = vmin.f32 %v4969, 20.0
    %v4987 = vmul.f32 %v4971, 1.442695
    %v4988 = vpow.pop %v4987
    %v4989 = vmul.f32 %v4972, 1.442695
    %v4990 = vpow.pop %v4989
    %v4991 = vmul.f32 %v4973, 1.442695
    %v4992 = vpow.pop %v4991
    %v4993 = vmul.f32 %v4974, 1.442695
    %v4994 = vpow.pop %v4993
    %v4995 = vmul.f32 %v4975, 1.442695
    %v4996 = vpow.pop %v4995
    %v4997 = vmul.f32 %v4976, 1.442695
    %v4998 = vpow.pop %v4997
    %v4999 = vmul.f32 %v4977, 1.442695
    %v5000 = vpow.pop %v4999
    %v5001 = vmul.f32 %v4978, 1.442695
    %v5002 = vpow.pop %v5001
    %v5003 = vmul.f32 %v4979, 1.442695
    %v5004 = vpow.pop %v5003
    %v5005 = vmul.f32 %v4980, 1.442695
    %v5006 = vpow.pop %v5005
    %v5007 = vmul.f32 %v4981, 1.442695
    %v5008 = vpow.pop %v5007
    %v5009 = vmul.f32 %v4982, 1.442695
    %v5010 = vpow.pop %v5009
    %v5011 = vmul.f32 %v4983, 1.442695
    %v5012 = vpow.pop %v5011
    %v5013 = vmul.f32 %v4984, 1.442695
    %v5014 = vpow.pop %v5013
    %v5015 = vmul.f32 %v4985, 1.442695
    %v5016 = vpow.pop %v5015
    %v5017 = vmul.f32 %v4986, 1.442695
    %v5018 = vpow.pop %v5017
    %v5019 = vadd.f32 %v4988, 1.0
    %v5020 = vadd.f32 %v4990, 1.0
    %v5021 = vadd.f32 %v4992, 1.0
    %v5022 = vadd.f32 %v4994, 1.0
    %v5023 = vadd.f32 %v4996, 1.0
    %v5024 = vadd.f32 %v4998, 1.0
    %v5025 = vadd.f32 %v5000, 1.0
    %v5026 = vadd.f32 %v5002, 1.0
    %v5027 = vadd.f32 %v5004, 1.0
    %v5028 = vadd.f32 %v5006, 1.0
    %v5029 = vadd.f32 %v5008, 1.0
    %v5030 = vadd.f32 %v5010, 1.0
    %v5031 = vadd.f32 %v5012, 1.0
    %v5032 = vadd.f32 %v5014, 1.0
    %v5033 = vadd.f32 %v5016, 1.0
    %v5034 = vadd.f32 %v5018, 1.0
    %v5035 = vmul.f32 %v5019, %v5019
    %v5036 = vmul.f32 %v5020, %v5020
    %v5037 = vmul.f32 %v5021, %v5021
    %v5038 = vmul.f32 %v5022, %v5022
    %v5039 = vmul.f32 %v5023, %v5023
    %v5040 = vmul.f32 %v5024, %v5024
    %v5041 = vmul.f32 %v5025, %v5025
    %v5042 = vmul.f32 %v5026, %v5026
    %v5043 = vmul.f32 %v5027, %v5027
    %v5044 = vmul.f32 %v5028, %v5028
    %v5045 = vmul.f32 %v5029, %v5029
    %v5046 = vmul.f32 %v5030, %v5030
    %v5047 = vmul.f32 %v5031, %v5031
    %v5048 = vmul.f32 %v5032, %v5032
    %v5049 = vmul.f32 %v5033, %v5033
    %v5050 = vmul.f32 %v5034, %v5034
    %v5051 = vsub.f32 %v5035, 1.0
    %v5052 = vsub.f32 %v5036, 1.0
    %v5053 = vsub.f32 %v5037, 1.0
    %v5054 = vsub.f32 %v5038, 1.0
    %v5055 = vsub.f32 %v5039, 1.0
    %v5056 = vsub.f32 %v5040, 1.0
    %v5057 = vsub.f32 %v5041, 1.0
    %v5058 = vsub.f32 %v5042, 1.0
    %v5059 = vsub.f32 %v5043, 1.0
    %v5060 = vsub.f32 %v5044, 1.0
    %v5061 = vsub.f32 %v5045, 1.0
    %v5062 = vsub.f32 %v5046, 1.0
    %v5063 = vsub.f32 %v5047, 1.0
    %v5064 = vsub.f32 %v5048, 1.0
    %v5065 = vsub.f32 %v5049, 1.0
    %v5066 = vsub.f32 %v5050, 1.0
    %v5067 = vmul.f32 %v4575, %v5051
    %v5068 = vmul.f32 %v4631, %v5052
    %v5069 = vmul.f32 %v4687, %v5053
    %v5070 = vmul.f32 %v4743, %v5054
    %v5071 = vmul.f32 %v4799, %v5055
    %v5072 = vmul.f32 %v4855, %v5056
    %v5073 = vmul.f32 %v4911, %v5057
    %v5074 = vmul.f32 %v4967, %v5058
    %v5075 = vmul.f32 %v4577, %v5059
    %v5076 = vmul.f32 %v4633, %v5060
    %v5077 = vmul.f32 %v4689, %v5061
    %v5078 = vmul.f32 %v4745, %v5062
    %v5079 = vmul.f32 %v4801, %v5063
    %v5080 = vmul.f32 %v4857, %v5064
    %v5081 = vmul.f32 %v4913, %v5065
    %v5082 = vmul.f32 %v4969, %v5066
    %v5083 = vadd.f32 %v5035, 1.0
    %v5084 = vadd.f32 %v5036, 1.0
    %v5085 = vadd.f32 %v5037, 1.0
    %v5086 = vadd.f32 %v5038, 1.0
    %v5087 = vadd.f32 %v5039, 1.0
    %v5088 = vadd.f32 %v5040, 1.0
    %v5089 = vadd.f32 %v5041, 1.0
    %v5090 = vadd.f32 %v5042, 1.0
    %v5091 = vadd.f32 %v5043, 1.0
    %v5092 = vadd.f32 %v5044, 1.0
    %v5093 = vadd.f32 %v5045, 1.0
    %v5094 = vadd.f32 %v5046, 1.0
    %v5095 = vadd.f32 %v5047, 1.0
    %v5096 = vadd.f32 %v5048, 1.0
    %v5097 = vadd.f32 %v5049, 1.0
    %v5098 = vadd.f32 %v5050, 1.0
    %v5099 = vrcp.pop %v5083
    %v5100 = vrcp.pop %v5084
    %v5101 = vrcp.pop %v5085
    %v5102 = vrcp.pop %v5086
    %v5103 = vrcp.pop %v5087
    %v5104 = vrcp.pop %v5088
    %v5105 = vrcp.pop %v5089
    %v5106 = vrcp.pop %v5090
    %v5107 = vrcp.pop %v5091
    %v5108 = vrcp.pop %v5092
    %v5109 = vrcp.pop %v5093
    %v5110 = vrcp.pop %v5094
    %v5111 = vrcp.pop %v5095
    %v5112 = vrcp.pop %v5096
    %v5113 = vrcp.pop %v5097
    %v5114 = vrcp.pop %v5098
    %v5115 = vmul.f32 %v5067, %v5099
    %v5116 = vmul.f32 %v5068, %v5100
    %v5117 = vmul.f32 %v5069, %v5101
    %v5118 = vmul.f32 %v5070, %v5102
    %v5119 = vmul.f32 %v5071, %v5103
    %v5120 = vmul.f32 %v5072, %v5104
    %v5121 = vmul.f32 %v5073, %v5105
    %v5122 = vmul.f32 %v5074, %v5106
    %v5123 = vmul.f32 %v5075, %v5107
    %v5124 = vmul.f32 %v5076, %v5108
    %v5125 = vmul.f32 %v5077, %v5109
    %v5126 = vmul.f32 %v5078, %v5110
    %v5127 = vmul.f32 %v5079, %v5111
    %v5128 = vmul.f32 %v5080, %v5112
    %v5129 = vmul.f32 %v5081, %v5113
    %v5130 = vmul.f32 %v5082, %v5114
    %vm5131 = vcmp.gt.f32.partialorder %v4575, 20.0
    %vm5132 = vcmp.gt.f32.partialorder %v4631, 20.0
    %vm5133 = vcmp.gt.f32.partialorder %v4687, 20.0
    %vm5134 = vcmp.gt.f32.partialorder %v4743, 20.0
    %vm5135 = vcmp.gt.f32.partialorder %v4799, 20.0
    %vm5136 = vcmp.gt.f32.partialorder %v4855, 20.0
    %vm5137 = vcmp.gt.f32.partialorder %v4911, 20.0
    %vm5138 = vcmp.gt.f32.partialorder %v4967, 20.0
    %vm5139 = vcmp.gt.f32.partialorder %v4577, 20.0
    %vm5140 = vcmp.gt.f32.partialorder %v4633, 20.0
    %vm5141 = vcmp.gt.f32.partialorder %v4689, 20.0
    %vm5142 = vcmp.gt.f32.partialorder %v4745, 20.0
    %vm5143 = vcmp.gt.f32.partialorder %v4801, 20.0
    %vm5144 = vcmp.gt.f32.partialorder %v4857, 20.0
    %vm5145 = vcmp.gt.f32.partialorder %v4913, 20.0
    %vm5146 = vcmp.gt.f32.partialorder %v4969, 20.0
    %v5147 = vsel %vm5131, %v4575, %v5115
    %v5148 = vsel %vm5132, %v4631, %v5116
    %v5149 = vsel %vm5133, %v4687, %v5117
    %v5150 = vsel %vm5134, %v4743, %v5118
    %v5151 = vsel %vm5135, %v4799, %v5119
    %v5152 = vsel %vm5136, %v4855, %v5120
    %v5153 = vsel %vm5137, %v4911, %v5121
    %v5154 = vsel %vm5138, %v4967, %v5122
    %v5155 = vsel %vm5139, %v4577, %v5123
    %v5156 = vsel %vm5140, %v4633, %v5124
    %v5157 = vsel %vm5141, %v4689, %v5125
    %v5158 = vsel %vm5142, %v4745, %v5126
    %v5159 = vsel %vm5143, %v4801, %v5127
    %v5160 = vsel %vm5144, %v4857, %v5128
    %v5161 = vsel %vm5145, %v4913, %v5129
    %v5162 = vsel %vm5146, %v4969, %v5130
    %v5163 = vpack.c.bf16 %v2961, %v2953
    %v5164 = vpack.c.bf16 %v2962, %v2954
    %v5165 = vpack.c.bf16 %v2963, %v2955
    %v5166 = vpack.c.bf16 %v2964, %v2956
    %v5167 = vpack.c.bf16 %v2965, %v2957
    %v5168 = vpack.c.bf16 %v2966, %v2958
    %v5169 = vpack.c.bf16 %v2967, %v2959
    %v5170 = vpack.c.bf16 %v2968, %v2960
    %v5171 = vld [vmem:[#allocation17] sm:$0xff]
    %v5172 = vld [vmem:[#allocation17 + $0x8] sm:$0xff]
    %v5173 = vld [vmem:[#allocation17 + $0x10] sm:$0xff]
    %v5174 = vld [vmem:[#allocation17 + $0x18] sm:$0xff]
    %v5175 = vld [vmem:[#allocation17 + $0x20] sm:$0xff]
    %v5176 = vld [vmem:[#allocation17 + $0x28] sm:$0xff]
    %v5177 = vld [vmem:[#allocation17 + $0x30] sm:$0xff]
    %v5178 = vld [vmem:[#allocation17 + $0x38] sm:$0xff]
    %v5179 = vld [vmem:[#allocation17 + $0x40] sm:$0xff]
    %v5180 = vld [vmem:[#allocation17 + $0x48] sm:$0xff]
    %v5181 = vld [vmem:[#allocation17 + $0x50] sm:$0xff]
    %v5182 = vld [vmem:[#allocation17 + $0x58] sm:$0xff]
    %v5183 = vld [vmem:[#allocation17 + $0x60] sm:$0xff]
    %v5184 = vld [vmem:[#allocation17 + $0x68] sm:$0xff]
    %v5185 = vld [vmem:[#allocation17 + $0x70] sm:$0xff]
    %v5186 = vld [vmem:[#allocation17 + $0x78] sm:$0xff]
    %v5187 = vld [vmem:[#allocation17 + $0x80] sm:$0xff]
    %v5188 = vld [vmem:[#allocation17 + $0x88] sm:$0xff]
    %v5189 = vld [vmem:[#allocation17 + $0x90] sm:$0xff]
    %v5190 = vld [vmem:[#allocation17 + $0x98] sm:$0xff]
    %v5191 = vld [vmem:[#allocation17 + $0xa0] sm:$0xff]
    %v5192 = vld [vmem:[#allocation17 + $0xa8] sm:$0xff]
    %v5193 = vld [vmem:[#allocation17 + $0xb0] sm:$0xff]
    %v5194 = vld [vmem:[#allocation17 + $0xb8] sm:$0xff]
    %v5195 = vld [vmem:[#allocation17 + $0xc0] sm:$0xff]
    %v5196 = vld [vmem:[#allocation17 + $0xc8] sm:$0xff]
    %v5197 = vld [vmem:[#allocation17 + $0xd0] sm:$0xff]
    %v5198 = vld [vmem:[#allocation17 + $0xd8] sm:$0xff]
    %v5199 = vld [vmem:[#allocation17 + $0xe0] sm:$0xff]
    %v5200 = vld [vmem:[#allocation17 + $0xe8] sm:$0xff]
    %v5201 = vld [vmem:[#allocation17 + $0xf0] sm:$0xff]
    %v5202 = vld [vmem:[#allocation17 + $0xf8] sm:$0xff]
    %v5203 = vld [vmem:[#allocation17 + $0x100] sm:$0xff]
    %v5204 = vld [vmem:[#allocation17 + $0x108] sm:$0xff]
    %v5205 = vld [vmem:[#allocation17 + $0x110] sm:$0xff]
    %v5206 = vld [vmem:[#allocation17 + $0x118] sm:$0xff]
    %v5207 = vld [vmem:[#allocation17 + $0x120] sm:$0xff]
    %v5208 = vld [vmem:[#allocation17 + $0x128] sm:$0xff]
    %v5209 = vld [vmem:[#allocation17 + $0x130] sm:$0xff]
    %v5210 = vld [vmem:[#allocation17 + $0x138] sm:$0xff]
    %v5211 = vld [vmem:[#allocation17 + $0x140] sm:$0xff]
    %v5212 = vld [vmem:[#allocation17 + $0x148] sm:$0xff]
    %v5213 = vld [vmem:[#allocation17 + $0x150] sm:$0xff]
    %v5214 = vld [vmem:[#allocation17 + $0x158] sm:$0xff]
    %v5215 = vld [vmem:[#allocation17 + $0x160] sm:$0xff]
    %v5216 = vld [vmem:[#allocation17 + $0x168] sm:$0xff]
    %v5217 = vld [vmem:[#allocation17 + $0x170] sm:$0xff]
    %v5218 = vld [vmem:[#allocation17 + $0x178] sm:$0xff]
    %v5219 = vld [vmem:[#allocation17 + $0x180] sm:$0xff]
    %v5220 = vld [vmem:[#allocation17 + $0x188] sm:$0xff]
    %v5221 = vld [vmem:[#allocation17 + $0x190] sm:$0xff]
    %v5222 = vld [vmem:[#allocation17 + $0x198] sm:$0xff]
    %v5223 = vld [vmem:[#allocation17 + $0x1a0] sm:$0xff]
    %v5224 = vld [vmem:[#allocation17 + $0x1a8] sm:$0xff]
    %v5225 = vld [vmem:[#allocation17 + $0x1b0] sm:$0xff]
    %v5226 = vld [vmem:[#allocation17 + $0x1b8] sm:$0xff]
    %v5227 = vld [vmem:[#allocation17 + $0x1c0] sm:$0xff]
    %v5228 = vld [vmem:[#allocation17 + $0x1c8] sm:$0xff]
    %v5229 = vld [vmem:[#allocation17 + $0x1d0] sm:$0xff]
    %v5230 = vld [vmem:[#allocation17 + $0x1d8] sm:$0xff]
    %v5231 = vld [vmem:[#allocation17 + $0x1e0] sm:$0xff]
    %v5232 = vld [vmem:[#allocation17 + $0x1e8] sm:$0xff]
    %v5233 = vld [vmem:[#allocation17 + $0x1f0] sm:$0xff]
    %v5234 = vld [vmem:[#allocation17 + $0x1f8] sm:$0xff]
    %v5235 = vld [vmem:[#allocation17 + $0x200] sm:$0xff]
    %v5236 = vld [vmem:[#allocation17 + $0x208] sm:$0xff]
    %v5237 = vld [vmem:[#allocation17 + $0x210] sm:$0xff]
    %v5238 = vld [vmem:[#allocation17 + $0x218] sm:$0xff]
    %v5239 = vld [vmem:[#allocation17 + $0x220] sm:$0xff]
    %v5240 = vld [vmem:[#allocation17 + $0x228] sm:$0xff]
    %v5241 = vld [vmem:[#allocation17 + $0x230] sm:$0xff]
    %v5242 = vld [vmem:[#allocation17 + $0x238] sm:$0xff]
    %v5243 = vld [vmem:[#allocation17 + $0x240] sm:$0xff]
    %v5244 = vld [vmem:[#allocation17 + $0x248] sm:$0xff]
    %v5245 = vld [vmem:[#allocation17 + $0x250] sm:$0xff]
    %v5246 = vld [vmem:[#allocation17 + $0x258] sm:$0xff]
    %v5247 = vld [vmem:[#allocation17 + $0x260] sm:$0xff]
    %v5248 = vld [vmem:[#allocation17 + $0x268] sm:$0xff]
    %v5249 = vld [vmem:[#allocation17 + $0x270] sm:$0xff]
    %v5250 = vld [vmem:[#allocation17 + $0x278] sm:$0xff]
    %v5251 = vld [vmem:[#allocation17 + $0x280] sm:$0xff]
    %v5252 = vld [vmem:[#allocation17 + $0x288] sm:$0xff]
    %v5253 = vld [vmem:[#allocation17 + $0x290] sm:$0xff]
    %v5254 = vld [vmem:[#allocation17 + $0x298] sm:$0xff]
    %v5255 = vld [vmem:[#allocation17 + $0x2a0] sm:$0xff]
    %v5256 = vld [vmem:[#allocation17 + $0x2a8] sm:$0xff]
    %v5257 = vld [vmem:[#allocation17 + $0x2b0] sm:$0xff]
    %v5258 = vld [vmem:[#allocation17 + $0x2b8] sm:$0xff]
    %v5259 = vld [vmem:[#allocation17 + $0x2c0] sm:$0xff]
    %v5260 = vld [vmem:[#allocation17 + $0x2c8] sm:$0xff]
    %v5261 = vld [vmem:[#allocation17 + $0x2d0] sm:$0xff]
    %v5262 = vld [vmem:[#allocation17 + $0x2d8] sm:$0xff]
    %v5263 = vld [vmem:[#allocation17 + $0x2e0] sm:$0xff]
    %v5264 = vld [vmem:[#allocation17 + $0x2e8] sm:$0xff]
    %v5265 = vld [vmem:[#allocation17 + $0x2f0] sm:$0xff]
    %v5266 = vld [vmem:[#allocation17 + $0x2f8] sm:$0xff]
    %v5267 = vld [vmem:[#allocation17 + $0x300] sm:$0xff]
    %v5268 = vld [vmem:[#allocation17 + $0x308] sm:$0xff]
    %v5269 = vld [vmem:[#allocation17 + $0x310] sm:$0xff]
    %v5270 = vld [vmem:[#allocation17 + $0x318] sm:$0xff]
    %v5271 = vld [vmem:[#allocation17 + $0x320] sm:$0xff]
    %v5272 = vld [vmem:[#allocation17 + $0x328] sm:$0xff]
    %v5273 = vld [vmem:[#allocation17 + $0x330] sm:$0xff]
    %v5274 = vld [vmem:[#allocation17 + $0x338] sm:$0xff]
    %v5275 = vld [vmem:[#allocation17 + $0x340] sm:$0xff]
    %v5276 = vld [vmem:[#allocation17 + $0x348] sm:$0xff]
    %v5277 = vld [vmem:[#allocation17 + $0x350] sm:$0xff]
    %v5278 = vld [vmem:[#allocation17 + $0x358] sm:$0xff]
    %v5279 = vld [vmem:[#allocation17 + $0x360] sm:$0xff]
    %v5280 = vld [vmem:[#allocation17 + $0x368] sm:$0xff]
    %v5281 = vld [vmem:[#allocation17 + $0x370] sm:$0xff]
    %v5282 = vld [vmem:[#allocation17 + $0x378] sm:$0xff]
    %v5283 = vld [vmem:[#allocation17 + $0x380] sm:$0xff]
    %v5284 = vld [vmem:[#allocation17 + $0x388] sm:$0xff]
    %v5285 = vld [vmem:[#allocation17 + $0x390] sm:$0xff]
    %v5286 = vld [vmem:[#allocation17 + $0x398] sm:$0xff]
    %v5287 = vld [vmem:[#allocation17 + $0x3a0] sm:$0xff]
    %v5288 = vld [vmem:[#allocation17 + $0x3a8] sm:$0xff]
    %v5289 = vld [vmem:[#allocation17 + $0x3b0] sm:$0xff]
    %v5290 = vld [vmem:[#allocation17 + $0x3b8] sm:$0xff]
    %v5291 = vld [vmem:[#allocation17 + $0x3c0] sm:$0xff]
    %v5292 = vld [vmem:[#allocation17 + $0x3c8] sm:$0xff]
    %v5293 = vld [vmem:[#allocation17 + $0x3d0] sm:$0xff]
    %v5294 = vld [vmem:[#allocation17 + $0x3d8] sm:$0xff]
    %v5295 = vld [vmem:[#allocation17 + $0x3e0] sm:$0xff]
    %v5296 = vld [vmem:[#allocation17 + $0x3e8] sm:$0xff]
    %v5297 = vld [vmem:[#allocation17 + $0x3f0] sm:$0xff]
    %v5298 = vld [vmem:[#allocation17 + $0x3f8] sm:$0xff]
    %v5299 = vpack.c.bf16 %v5155, %v5147
    %v5300 = vpack.c.bf16 %v5156, %v5148
    %v5301 = vpack.c.bf16 %v5157, %v5149
    %v5302 = vpack.c.bf16 %v5158, %v5150
    %v5303 = vpack.c.bf16 %v5159, %v5151
    %v5304 = vpack.c.bf16 %v5160, %v5152
    %v5305 = vpack.c.bf16 %v5161, %v5153
    %v5306 = vpack.c.bf16 %v5162, %v5154
    %v5307 = vld [vmem:[#allocation19] sm:$0xff]
    %v5308 = vld [vmem:[#allocation19 + $0x8] sm:$0xff]
    %v5309 = vld [vmem:[#allocation19 + $0x10] sm:$0xff]
    %v5310 = vld [vmem:[#allocation19 + $0x18] sm:$0xff]
    %v5311 = vld [vmem:[#allocation19 + $0x20] sm:$0xff]
    %v5312 = vld [vmem:[#allocation19 + $0x28] sm:$0xff]
    %v5313 = vld [vmem:[#allocation19 + $0x30] sm:$0xff]
    %v5314 = vld [vmem:[#allocation19 + $0x38] sm:$0xff]
    %v5315 = vld [vmem:[#allocation19 + $0x40] sm:$0xff]
    %v5316 = vld [vmem:[#allocation19 + $0x48] sm:$0xff]
    %v5317 = vld [vmem:[#allocation19 + $0x50] sm:$0xff]
    %v5318 = vld [vmem:[#allocation19 + $0x58] sm:$0xff]
    %v5319 = vld [vmem:[#allocation19 + $0x60] sm:$0xff]
    %v5320 = vld [vmem:[#allocation19 + $0x68] sm:$0xff]
    %v5321 = vld [vmem:[#allocation19 + $0x70] sm:$0xff]
    %v5322 = vld [vmem:[#allocation19 + $0x78] sm:$0xff]
    %v5323 = vld [vmem:[#allocation19 + $0x80] sm:$0xff]
    %v5324 = vld [vmem:[#allocation19 + $0x88] sm:$0xff]
    %v5325 = vld [vmem:[#allocation19 + $0x90] sm:$0xff]
    %v5326 = vld [vmem:[#allocation19 + $0x98] sm:$0xff]
    %v5327 = vld [vmem:[#allocation19 + $0xa0] sm:$0xff]
    %v5328 = vld [vmem:[#allocation19 + $0xa8] sm:$0xff]
    %v5329 = vld [vmem:[#allocation19 + $0xb0] sm:$0xff]
    %v5330 = vld [vmem:[#allocation19 + $0xb8] sm:$0xff]
    %v5331 = vld [vmem:[#allocation19 + $0xc0] sm:$0xff]
    %v5332 = vld [vmem:[#allocation19 + $0xc8] sm:$0xff]
    %v5333 = vld [vmem:[#allocation19 + $0xd0] sm:$0xff]
    %v5334 = vld [vmem:[#allocation19 + $0xd8] sm:$0xff]
    %v5335 = vld [vmem:[#allocation19 + $0xe0] sm:$0xff]
    %v5336 = vld [vmem:[#allocation19 + $0xe8] sm:$0xff]
    %v5337 = vld [vmem:[#allocation19 + $0xf0] sm:$0xff]
    %v5338 = vld [vmem:[#allocation19 + $0xf8] sm:$0xff]
    %v5339 = vld [vmem:[#allocation19 + $0x100] sm:$0xff]
    %v5340 = vld [vmem:[#allocation19 + $0x108] sm:$0xff]
    %v5341 = vld [vmem:[#allocation19 + $0x110] sm:$0xff]
    %v5342 = vld [vmem:[#allocation19 + $0x118] sm:$0xff]
    %v5343 = vld [vmem:[#allocation19 + $0x120] sm:$0xff]
    %v5344 = vld [vmem:[#allocation19 + $0x128] sm:$0xff]
    %v5345 = vld [vmem:[#allocation19 + $0x130] sm:$0xff]
    %v5346 = vld [vmem:[#allocation19 + $0x138] sm:$0xff]
    %v5347 = vld [vmem:[#allocation19 + $0x140] sm:$0xff]
    %v5348 = vld [vmem:[#allocation19 + $0x148] sm:$0xff]
    %v5349 = vld [vmem:[#allocation19 + $0x150] sm:$0xff]
    %v5350 = vld [vmem:[#allocation19 + $0x158] sm:$0xff]
    %v5351 = vld [vmem:[#allocation19 + $0x160] sm:$0xff]
    %v5352 = vld [vmem:[#allocation19 + $0x168] sm:$0xff]
    %v5353 = vld [vmem:[#allocation19 + $0x170] sm:$0xff]
    %v5354 = vld [vmem:[#allocation19 + $0x178] sm:$0xff]
    %v5355 = vld [vmem:[#allocation19 + $0x180] sm:$0xff]
    %v5356 = vld [vmem:[#allocation19 + $0x188] sm:$0xff]
    %v5357 = vld [vmem:[#allocation19 + $0x190] sm:$0xff]
    %v5358 = vld [vmem:[#allocation19 + $0x198] sm:$0xff]
    %v5359 = vld [vmem:[#allocation19 + $0x1a0] sm:$0xff]
    %v5360 = vld [vmem:[#allocation19 + $0x1a8] sm:$0xff]
    %v5361 = vld [vmem:[#allocation19 + $0x1b0] sm:$0xff]
    %v5362 = vld [vmem:[#allocation19 + $0x1b8] sm:$0xff]
    %v5363 = vld [vmem:[#allocation19 + $0x1c0] sm:$0xff]
    %v5364 = vld [vmem:[#allocation19 + $0x1c8] sm:$0xff]
    %v5365 = vld [vmem:[#allocation19 + $0x1d0] sm:$0xff]
    %v5366 = vld [vmem:[#allocation19 + $0x1d8] sm:$0xff]
    %v5367 = vld [vmem:[#allocation19 + $0x1e0] sm:$0xff]
    %v5368 = vld [vmem:[#allocation19 + $0x1e8] sm:$0xff]
    %v5369 = vld [vmem:[#allocation19 + $0x1f0] sm:$0xff]
    %v5370 = vld [vmem:[#allocation19 + $0x1f8] sm:$0xff]
    %v5371 = vld [vmem:[#allocation19 + $0x200] sm:$0xff]
    %v5372 = vld [vmem:[#allocation19 + $0x208] sm:$0xff]
    %v5373 = vld [vmem:[#allocation19 + $0x210] sm:$0xff]
    %v5374 = vld [vmem:[#allocation19 + $0x218] sm:$0xff]
    %v5375 = vld [vmem:[#allocation19 + $0x220] sm:$0xff]
    %v5376 = vld [vmem:[#allocation19 + $0x228] sm:$0xff]
    %v5377 = vld [vmem:[#allocation19 + $0x230] sm:$0xff]
    %v5378 = vld [vmem:[#allocation19 + $0x238] sm:$0xff]
    %v5379 = vld [vmem:[#allocation19 + $0x240] sm:$0xff]
    %v5380 = vld [vmem:[#allocation19 + $0x248] sm:$0xff]
    %v5381 = vld [vmem:[#allocation19 + $0x250] sm:$0xff]
    %v5382 = vld [vmem:[#allocation19 + $0x258] sm:$0xff]
    %v5383 = vld [vmem:[#allocation19 + $0x260] sm:$0xff]
    %v5384 = vld [vmem:[#allocation19 + $0x268] sm:$0xff]
    %v5385 = vld [vmem:[#allocation19 + $0x270] sm:$0xff]
    %v5386 = vld [vmem:[#allocation19 + $0x278] sm:$0xff]
    %v5387 = vld [vmem:[#allocation19 + $0x280] sm:$0xff]
    %v5388 = vld [vmem:[#allocation19 + $0x288] sm:$0xff]
    %v5389 = vld [vmem:[#allocation19 + $0x290] sm:$0xff]
    %v5390 = vld [vmem:[#allocation19 + $0x298] sm:$0xff]
    %v5391 = vld [vmem:[#allocation19 + $0x2a0] sm:$0xff]
    %v5392 = vld [vmem:[#allocation19 + $0x2a8] sm:$0xff]
    %v5393 = vld [vmem:[#allocation19 + $0x2b0] sm:$0xff]
    %v5394 = vld [vmem:[#allocation19 + $0x2b8] sm:$0xff]
    %v5395 = vld [vmem:[#allocation19 + $0x2c0] sm:$0xff]
    %v5396 = vld [vmem:[#allocation19 + $0x2c8] sm:$0xff]
    %v5397 = vld [vmem:[#allocation19 + $0x2d0] sm:$0xff]
    %v5398 = vld [vmem:[#allocation19 + $0x2d8] sm:$0xff]
    %v5399 = vld [vmem:[#allocation19 + $0x2e0] sm:$0xff]
    %v5400 = vld [vmem:[#allocation19 + $0x2e8] sm:$0xff]
    %v5401 = vld [vmem:[#allocation19 + $0x2f0] sm:$0xff]
    %v5402 = vld [vmem:[#allocation19 + $0x2f8] sm:$0xff]
    %v5403 = vld [vmem:[#allocation19 + $0x300] sm:$0xff]
    %v5404 = vld [vmem:[#allocation19 + $0x308] sm:$0xff]
    %v5405 = vld [vmem:[#allocation19 + $0x310] sm:$0xff]
    %v5406 = vld [vmem:[#allocation19 + $0x318] sm:$0xff]
    %v5407 = vld [vmem:[#allocation19 + $0x320] sm:$0xff]
    %v5408 = vld [vmem:[#allocation19 + $0x328] sm:$0xff]
    %v5409 = vld [vmem:[#allocation19 + $0x330] sm:$0xff]
    %v5410 = vld [vmem:[#allocation19 + $0x338] sm:$0xff]
    %v5411 = vld [vmem:[#allocation19 + $0x340] sm:$0xff]
    %v5412 = vld [vmem:[#allocation19 + $0x348] sm:$0xff]
    %v5413 = vld [vmem:[#allocation19 + $0x350] sm:$0xff]
    %v5414 = vld [vmem:[#allocation19 + $0x358] sm:$0xff]
    %v5415 = vld [vmem:[#allocation19 + $0x360] sm:$0xff]
    %v5416 = vld [vmem:[#allocation19 + $0x368] sm:$0xff]
    %v5417 = vld [vmem:[#allocation19 + $0x370] sm:$0xff]
    %v5418 = vld [vmem:[#allocation19 + $0x378] sm:$0xff]
    %v5419 = vld [vmem:[#allocation19 + $0x380] sm:$0xff]
    %v5420 = vld [vmem:[#allocation19 + $0x388] sm:$0xff]
    %v5421 = vld [vmem:[#allocation19 + $0x390] sm:$0xff]
    %v5422 = vld [vmem:[#allocation19 + $0x398] sm:$0xff]
    %v5423 = vld [vmem:[#allocation19 + $0x3a0] sm:$0xff]
    %v5424 = vld [vmem:[#allocation19 + $0x3a8] sm:$0xff]
    %v5425 = vld [vmem:[#allocation19 + $0x3b0] sm:$0xff]
    %v5426 = vld [vmem:[#allocation19 + $0x3b8] sm:$0xff]
    %v5427 = vld [vmem:[#allocation19 + $0x3c0] sm:$0xff]
    %v5428 = vld [vmem:[#allocation19 + $0x3c8] sm:$0xff]
    %v5429 = vld [vmem:[#allocation19 + $0x3d0] sm:$0xff]
    %v5430 = vld [vmem:[#allocation19 + $0x3d8] sm:$0xff]
    %v5431 = vld [vmem:[#allocation19 + $0x3e0] sm:$0xff]
    %v5432 = vld [vmem:[#allocation19 + $0x3e8] sm:$0xff]
    %v5433 = vld [vmem:[#allocation19 + $0x3f0] sm:$0xff]
    %v5434 = vld [vmem:[#allocation19 + $0x3f8] sm:$0xff]
    %v5563 = vunpack.c.l.b16 %v5307
    %v5564 = vunpack.c.h.b16 %v5307
    %v5565 = vunpack.c.l.b16 %v5308
    %v5566 = vunpack.c.h.b16 %v5308
    %v5567 = vunpack.c.l.b16 %v5309
    %v5568 = vunpack.c.h.b16 %v5309
    %v5569 = vunpack.c.l.b16 %v5310
    %v5570 = vunpack.c.h.b16 %v5310
    %v5571 = vunpack.c.l.b16 %v5311
    %v5572 = vunpack.c.h.b16 %v5311
    %v5573 = vunpack.c.l.b16 %v5312
    %v5574 = vunpack.c.h.b16 %v5312
    %v5575 = vunpack.c.l.b16 %v5313
    %v5576 = vunpack.c.h.b16 %v5313
    %v5577 = vunpack.c.l.b16 %v5314
    %v5578 = vunpack.c.h.b16 %v5314
    %v5579 = vunpack.c.l.b16 %v5315
    %v5580 = vunpack.c.h.b16 %v5315
    %v5581 = vunpack.c.l.b16 %v5316
    %v5582 = vunpack.c.h.b16 %v5316
    %v5583 = vunpack.c.l.b16 %v5317
    %v5584 = vunpack.c.h.b16 %v5317
    %v5585 = vunpack.c.l.b16 %v5318
    %v5586 = vunpack.c.h.b16 %v5318
    %v5587 = vunpack.c.l.b16 %v5319
    %v5588 = vunpack.c.h.b16 %v5319
    %v5589 = vunpack.c.l.b16 %v5320
    %v5590 = vunpack.c.h.b16 %v5320
    %v5591 = vunpack.c.l.b16 %v5321
    %v5592 = vunpack.c.h.b16 %v5321
    %v5593 = vunpack.c.l.b16 %v5322
    %v5594 = vunpack.c.h.b16 %v5322
    %v5595 = vunpack.c.l.b16 %v5323
    %v5596 = vunpack.c.h.b16 %v5323
    %v5597 = vunpack.c.l.b16 %v5324
    %v5598 = vunpack.c.h.b16 %v5324
    %v5599 = vunpack.c.l.b16 %v5325
    %v5600 = vunpack.c.h.b16 %v5325
    %v5601 = vunpack.c.l.b16 %v5326
    %v5602 = vunpack.c.h.b16 %v5326
    %v5603 = vunpack.c.l.b16 %v5327
    %v5604 = vunpack.c.h.b16 %v5327
    %v5605 = vunpack.c.l.b16 %v5328
    %v5606 = vunpack.c.h.b16 %v5328
    %v5607 = vunpack.c.l.b16 %v5329
    %v5608 = vunpack.c.h.b16 %v5329
    %v5609 = vunpack.c.l.b16 %v5330
    %v5610 = vunpack.c.h.b16 %v5330
    %v5611 = vunpack.c.l.b16 %v5331
    %v5612 = vunpack.c.h.b16 %v5331
    %v5613 = vunpack.c.l.b16 %v5332
    %v5614 = vunpack.c.h.b16 %v5332
    %v5615 = vunpack.c.l.b16 %v5333
    %v5616 = vunpack.c.h.b16 %v5333
    %v5617 = vunpack.c.l.b16 %v5334
    %v5618 = vunpack.c.h.b16 %v5334
    %v5619 = vunpack.c.l.b16 %v5335
    %v5620 = vunpack.c.h.b16 %v5335
    %v5621 = vunpack.c.l.b16 %v5336
    %v5622 = vunpack.c.h.b16 %v5336
    %v5623 = vunpack.c.l.b16 %v5337
    %v5624 = vunpack.c.h.b16 %v5337
    %v5625 = vunpack.c.l.b16 %v5338
    %v5626 = vunpack.c.h.b16 %v5338
    %v5627 = vunpack.c.l.b16 %v5339
    %v5628 = vunpack.c.h.b16 %v5339
    %v5629 = vunpack.c.l.b16 %v5340
    %v5630 = vunpack.c.h.b16 %v5340
    %v5631 = vunpack.c.l.b16 %v5341
    %v5632 = vunpack.c.h.b16 %v5341
    %v5633 = vunpack.c.l.b16 %v5342
    %v5634 = vunpack.c.h.b16 %v5342
    %v5635 = vunpack.c.l.b16 %v5343
    %v5636 = vunpack.c.h.b16 %v5343
    %v5637 = vunpack.c.l.b16 %v5344
    %v5638 = vunpack.c.h.b16 %v5344
    %v5639 = vunpack.c.l.b16 %v5345
    %v5640 = vunpack.c.h.b16 %v5345
    %v5641 = vunpack.c.l.b16 %v5346
    %v5642 = vunpack.c.h.b16 %v5346
    %v5643 = vunpack.c.l.b16 %v5347
    %v5644 = vunpack.c.h.b16 %v5347
    %v5645 = vunpack.c.l.b16 %v5348
    %v5646 = vunpack.c.h.b16 %v5348
    %v5647 = vunpack.c.l.b16 %v5349
    %v5648 = vunpack.c.h.b16 %v5349
    %v5649 = vunpack.c.l.b16 %v5350
    %v5650 = vunpack.c.h.b16 %v5350
    %v5651 = vunpack.c.l.b16 %v5351
    %v5652 = vunpack.c.h.b16 %v5351
    %v5653 = vunpack.c.l.b16 %v5352
    %v5654 = vunpack.c.h.b16 %v5352
    %v5655 = vunpack.c.l.b16 %v5353
    %v5656 = vunpack.c.h.b16 %v5353
    %v5657 = vunpack.c.l.b16 %v5354
    %v5658 = vunpack.c.h.b16 %v5354
    %v5659 = vunpack.c.l.b16 %v5355
    %v5660 = vunpack.c.h.b16 %v5355
    %v5661 = vunpack.c.l.b16 %v5356
    %v5662 = vunpack.c.h.b16 %v5356
    %v5663 = vunpack.c.l.b16 %v5357
    %v5664 = vunpack.c.h.b16 %v5357
    %v5665 = vunpack.c.l.b16 %v5358
    %v5666 = vunpack.c.h.b16 %v5358
    %v5667 = vunpack.c.l.b16 %v5359
    %v5668 = vunpack.c.h.b16 %v5359
    %v5669 = vunpack.c.l.b16 %v5360
    %v5670 = vunpack.c.h.b16 %v5360
    %v5671 = vunpack.c.l.b16 %v5361
    %v5672 = vunpack.c.h.b16 %v5361
    %v5673 = vunpack.c.l.b16 %v5362
    %v5674 = vunpack.c.h.b16 %v5362
    %v5675 = vunpack.c.l.b16 %v5363
    %v5676 = vunpack.c.h.b16 %v5363
    %v5677 = vunpack.c.l.b16 %v5364
    %v5678 = vunpack.c.h.b16 %v5364
    %v5679 = vunpack.c.l.b16 %v5365
    %v5680 = vunpack.c.h.b16 %v5365
    %v5681 = vunpack.c.l.b16 %v5366
    %v5682 = vunpack.c.h.b16 %v5366
    %v5683 = vunpack.c.l.b16 %v5367
    %v5684 = vunpack.c.h.b16 %v5367
    %v5685 = vunpack.c.l.b16 %v5368
    %v5686 = vunpack.c.h.b16 %v5368
    %v5687 = vunpack.c.l.b16 %v5369
    %v5688 = vunpack.c.h.b16 %v5369
    %v5689 = vunpack.c.l.b16 %v5370
    %v5690 = vunpack.c.h.b16 %v5370
    %v5691 = vunpack.c.l.b16 %v5371
    %v5692 = vunpack.c.h.b16 %v5371
    %v5693 = vunpack.c.l.b16 %v5372
    %v5694 = vunpack.c.h.b16 %v5372
    %v5695 = vunpack.c.l.b16 %v5373
    %v5696 = vunpack.c.h.b16 %v5373
    %v5697 = vunpack.c.l.b16 %v5374
    %v5698 = vunpack.c.h.b16 %v5374
    %v5699 = vunpack.c.l.b16 %v5375
    %v5700 = vunpack.c.h.b16 %v5375
    %v5701 = vunpack.c.l.b16 %v5376
    %v5702 = vunpack.c.h.b16 %v5376
    %v5703 = vunpack.c.l.b16 %v5377
    %v5704 = vunpack.c.h.b16 %v5377
    %v5705 = vunpack.c.l.b16 %v5378
    %v5706 = vunpack.c.h.b16 %v5378
    %v5707 = vunpack.c.l.b16 %v5379
    %v5708 = vunpack.c.h.b16 %v5379
    %v5709 = vunpack.c.l.b16 %v5380
    %v5710 = vunpack.c.h.b16 %v5380
    %v5711 = vunpack.c.l.b16 %v5381
    %v5712 = vunpack.c.h.b16 %v5381
    %v5713 = vunpack.c.l.b16 %v5382
    %v5714 = vunpack.c.h.b16 %v5382
    %v5715 = vunpack.c.l.b16 %v5383
    %v5716 = vunpack.c.h.b16 %v5383
    %v5717 = vunpack.c.l.b16 %v5384
    %v5718 = vunpack.c.h.b16 %v5384
    %v5719 = vunpack.c.l.b16 %v5385
    %v5720 = vunpack.c.h.b16 %v5385
    %v5721 = vunpack.c.l.b16 %v5386
    %v5722 = vunpack.c.h.b16 %v5386
    %v5723 = vunpack.c.l.b16 %v5387
    %v5724 = vunpack.c.h.b16 %v5387
    %v5725 = vunpack.c.l.b16 %v5388
    %v5726 = vunpack.c.h.b16 %v5388
    %v5727 = vunpack.c.l.b16 %v5389
    %v5728 = vunpack.c.h.b16 %v5389
    %v5729 = vunpack.c.l.b16 %v5390
    %v5730 = vunpack.c.h.b16 %v5390
    %v5731 = vunpack.c.l.b16 %v5391
    %v5732 = vunpack.c.h.b16 %v5391
    %v5733 = vunpack.c.l.b16 %v5392
    %v5734 = vunpack.c.h.b16 %v5392
    %v5735 = vunpack.c.l.b16 %v5393
    %v5736 = vunpack.c.h.b16 %v5393
    %v5737 = vunpack.c.l.b16 %v5394
    %v5738 = vunpack.c.h.b16 %v5394
    %v5739 = vunpack.c.l.b16 %v5395
    %v5740 = vunpack.c.h.b16 %v5395
    %v5741 = vunpack.c.l.b16 %v5396
    %v5742 = vunpack.c.h.b16 %v5396
    %v5743 = vunpack.c.l.b16 %v5397
    %v5744 = vunpack.c.h.b16 %v5397
    %v5745 = vunpack.c.l.b16 %v5398
    %v5746 = vunpack.c.h.b16 %v5398
    %v5747 = vunpack.c.l.b16 %v5399
    %v5748 = vunpack.c.h.b16 %v5399
    %v5749 = vunpack.c.l.b16 %v5400
    %v5750 = vunpack.c.h.b16 %v5400
    %v5751 = vunpack.c.l.b16 %v5401
    %v5752 = vunpack.c.h.b16 %v5401
    %v5753 = vunpack.c.l.b16 %v5402
    %v5754 = vunpack.c.h.b16 %v5402
    %v5755 = vunpack.c.l.b16 %v5403
    %v5756 = vunpack.c.h.b16 %v5403
    %v5757 = vunpack.c.l.b16 %v5404
    %v5758 = vunpack.c.h.b16 %v5404
    %v5759 = vunpack.c.l.b16 %v5405
    %v5760 = vunpack.c.h.b16 %v5405
    %v5761 = vunpack.c.l.b16 %v5406
    %v5762 = vunpack.c.h.b16 %v5406
    %v5763 = vunpack.c.l.b16 %v5407
    %v5764 = vunpack.c.h.b16 %v5407
    %v5765 = vunpack.c.l.b16 %v5408
    %v5766 = vunpack.c.h.b16 %v5408
    %v5767 = vunpack.c.l.b16 %v5409
    %v5768 = vunpack.c.h.b16 %v5409
    %v5769 = vunpack.c.l.b16 %v5410
    %v5770 = vunpack.c.h.b16 %v5410
    %v5771 = vunpack.c.l.b16 %v5411
    %v5772 = vunpack.c.h.b16 %v5411
    %v5773 = vunpack.c.l.b16 %v5412
    %v5774 = vunpack.c.h.b16 %v5412
    %v5775 = vunpack.c.l.b16 %v5413
    %v5776 = vunpack.c.h.b16 %v5413
    %v5777 = vunpack.c.l.b16 %v5414
    %v5778 = vunpack.c.h.b16 %v5414
    %v5779 = vunpack.c.l.b16 %v5415
    %v5780 = vunpack.c.h.b16 %v5415
    %v5781 = vunpack.c.l.b16 %v5416
    %v5782 = vunpack.c.h.b16 %v5416
    %v5783 = vunpack.c.l.b16 %v5417
    %v5784 = vunpack.c.h.b16 %v5417
    %v5785 = vunpack.c.l.b16 %v5418
    %v5786 = vunpack.c.h.b16 %v5418
    %v5787 = vunpack.c.l.b16 %v5419
    %v5788 = vunpack.c.h.b16 %v5419
    %v5789 = vunpack.c.l.b16 %v5420
    %v5790 = vunpack.c.h.b16 %v5420
    %v5791 = vunpack.c.l.b16 %v5421
    %v5792 = vunpack.c.h.b16 %v5421
    %v5793 = vunpack.c.l.b16 %v5422
    %v5794 = vunpack.c.h.b16 %v5422
    %v5795 = vunpack.c.l.b16 %v5423
    %v5796 = vunpack.c.h.b16 %v5423
    %v5797 = vunpack.c.l.b16 %v5424
    %v5798 = vunpack.c.h.b16 %v5424
    %v5799 = vunpack.c.l.b16 %v5425
    %v5800 = vunpack.c.h.b16 %v5425
    %v5801 = vunpack.c.l.b16 %v5426
    %v5802 = vunpack.c.h.b16 %v5426
    %v5803 = vunpack.c.l.b16 %v5427
    %v5804 = vunpack.c.h.b16 %v5427
    %v5805 = vunpack.c.l.b16 %v5428
    %v5806 = vunpack.c.h.b16 %v5428
    %v5807 = vunpack.c.l.b16 %v5429
    %v5808 = vunpack.c.h.b16 %v5429
    %v5809 = vunpack.c.l.b16 %v5430
    %v5810 = vunpack.c.h.b16 %v5430
    %v5811 = vunpack.c.l.b16 %v5431
    %v5812 = vunpack.c.h.b16 %v5431
    %v5813 = vunpack.c.l.b16 %v5432
    %v5814 = vunpack.c.h.b16 %v5432
    %v5815 = vunpack.c.l.b16 %v5433
    %v5816 = vunpack.c.h.b16 %v5433
    %v5817 = vunpack.c.l.b16 %v5434
    %v5818 = vunpack.c.h.b16 %v5434
    %v5819 = vpack.c.b16 %v5565, %v5563
    %v5820 = vpack.c.b16 %v5566, %v5564
    %v5821 = vpack.c.b16 %v5569, %v5567
    %v5822 = vpack.c.b16 %v5570, %v5568
    %v5823 = vpack.c.b16 %v5573, %v5571
    %v5824 = vpack.c.b16 %v5574, %v5572
    %v5825 = vpack.c.b16 %v5577, %v5575
    %v5826 = vpack.c.b16 %v5578, %v5576
    %v5827 = vpack.c.b16 %v5581, %v5579
    %v5828 = vpack.c.b16 %v5582, %v5580
    %v5829 = vpack.c.b16 %v5585, %v5583
    %v5830 = vpack.c.b16 %v5586, %v5584
    %v5831 = vpack.c.b16 %v5589, %v5587
    %v5832 = vpack.c.b16 %v5590, %v5588
    %v5833 = vpack.c.b16 %v5593, %v5591
    %v5834 = vpack.c.b16 %v5594, %v5592
    %v5835 = vpack.c.b16 %v5597, %v5595
    %v5836 = vpack.c.b16 %v5598, %v5596
    %v5837 = vpack.c.b16 %v5601, %v5599
    %v5838 = vpack.c.b16 %v5602, %v5600
    %v5839 = vpack.c.b16 %v5605, %v5603
    %v5840 = vpack.c.b16 %v5606, %v5604
    %v5841 = vpack.c.b16 %v5609, %v5607
    %v5842 = vpack.c.b16 %v5610, %v5608
    %v5843 = vpack.c.b16 %v5613, %v5611
    %v5844 = vpack.c.b16 %v5614, %v5612
    %v5845 = vpack.c.b16 %v5617, %v5615
    %v5846 = vpack.c.b16 %v5618, %v5616
    %v5847 = vpack.c.b16 %v5621, %v5619
    %v5848 = vpack.c.b16 %v5622, %v5620
    %v5849 = vpack.c.b16 %v5625, %v5623
    %v5850 = vpack.c.b16 %v5626, %v5624
    %v5851 = vpack.c.b16 %v5629, %v5627
    %v5852 = vpack.c.b16 %v5630, %v5628
    %v5853 = vpack.c.b16 %v5633, %v5631
    %v5854 = vpack.c.b16 %v5634, %v5632
    %v5855 = vpack.c.b16 %v5637, %v5635
    %v5856 = vpack.c.b16 %v5638, %v5636
    %v5857 = vpack.c.b16 %v5641, %v5639
    %v5858 = vpack.c.b16 %v5642, %v5640
    %v5859 = vpack.c.b16 %v5645, %v5643
    %v5860 = vpack.c.b16 %v5646, %v5644
    %v5861 = vpack.c.b16 %v5649, %v5647
    %v5862 = vpack.c.b16 %v5650, %v5648
    %v5863 = vpack.c.b16 %v5653, %v5651
    %v5864 = vpack.c.b16 %v5654, %v5652
    %v5865 = vpack.c.b16 %v5657, %v5655
    %v5866 = vpack.c.b16 %v5658, %v5656
    %v5867 = vpack.c.b16 %v5661, %v5659
    %v5868 = vpack.c.b16 %v5662, %v5660
    %v5869 = vpack.c.b16 %v5665, %v5663
    %v5870 = vpack.c.b16 %v5666, %v5664
    %v5871 = vpack.c.b16 %v5669, %v5667
    %v5872 = vpack.c.b16 %v5670, %v5668
    %v5873 = vpack.c.b16 %v5673, %v5671
    %v5874 = vpack.c.b16 %v5674, %v5672
    %v5875 = vpack.c.b16 %v5677, %v5675
    %v5876 = vpack.c.b16 %v5678, %v5676
    %v5877 = vpack.c.b16 %v5681, %v5679
    %v5878 = vpack.c.b16 %v5682, %v5680
    %v5879 = vpack.c.b16 %v5685, %v5683
    %v5880 = vpack.c.b16 %v5686, %v5684
    %v5881 = vpack.c.b16 %v5689, %v5687
    %v5882 = vpack.c.b16 %v5690, %v5688
    %v5883 = vpack.c.b16 %v5693, %v5691
    %v5884 = vpack.c.b16 %v5694, %v5692
    %v5885 = vpack.c.b16 %v5697, %v5695
    %v5886 = vpack.c.b16 %v5698, %v5696
    %v5887 = vpack.c.b16 %v5701, %v5699
    %v5888 = vpack.c.b16 %v5702, %v5700
    %v5889 = vpack.c.b16 %v5705, %v5703
    %v5890 = vpack.c.b16 %v5706, %v5704
    %v5891 = vpack.c.b16 %v5709, %v5707
    %v5892 = vpack.c.b16 %v5710, %v5708
    %v5893 = vpack.c.b16 %v5713, %v5711
    %v5894 = vpack.c.b16 %v5714, %v5712
    %v5895 = vpack.c.b16 %v5717, %v5715
    %v5896 = vpack.c.b16 %v5718, %v5716
    %v5897 = vpack.c.b16 %v5721, %v5719
    %v5898 = vpack.c.b16 %v5722, %v5720
    %v5899 = vpack.c.b16 %v5725, %v5723
    %v5900 = vpack.c.b16 %v5726, %v5724
    %v5901 = vpack.c.b16 %v5729, %v5727
    %v5902 = vpack.c.b16 %v5730, %v5728
    %v5903 = vpack.c.b16 %v5733, %v5731
    %v5904 = vpack.c.b16 %v5734, %v5732
    %v5905 = vpack.c.b16 %v5737, %v5735
    %v5906 = vpack.c.b16 %v5738, %v5736
    %v5907 = vpack.c.b16 %v5741, %v5739
    %v5908 = vpack.c.b16 %v5742, %v5740
    %v5909 = vpack.c.b16 %v5745, %v5743
    %v5910 = vpack.c.b16 %v5746, %v5744
    %v5911 = vpack.c.b16 %v5749, %v5747
    %v5912 = vpack.c.b16 %v5750, %v5748
    %v5913 = vpack.c.b16 %v5753, %v5751
    %v5914 = vpack.c.b16 %v5754, %v5752
    %v5915 = vpack.c.b16 %v5757, %v5755
    %v5916 = vpack.c.b16 %v5758, %v5756
    %v5917 = vpack.c.b16 %v5761, %v5759
    %v5918 = vpack.c.b16 %v5762, %v5760
    %v5919 = vpack.c.b16 %v5765, %v5763
    %v5920 = vpack.c.b16 %v5766, %v5764
    %v5921 = vpack.c.b16 %v5769, %v5767
    %v5922 = vpack.c.b16 %v5770, %v5768
    %v5923 = vpack.c.b16 %v5773, %v5771
    %v5924 = vpack.c.b16 %v5774, %v5772
    %v5925 = vpack.c.b16 %v5777, %v5775
    %v5926 = vpack.c.b16 %v5778, %v5776
    %v5927 = vpack.c.b16 %v5781, %v5779
    %v5928 = vpack.c.b16 %v5782, %v5780
    %v5929 = vpack.c.b16 %v5785, %v5783
    %v5930 = vpack.c.b16 %v5786, %v5784
    %v5931 = vpack.c.b16 %v5789, %v5787
    %v5932 = vpack.c.b16 %v5790, %v5788
    %v5933 = vpack.c.b16 %v5793, %v5791
    %v5934 = vpack.c.b16 %v5794, %v5792
    %v5935 = vpack.c.b16 %v5797, %v5795
    %v5936 = vpack.c.b16 %v5798, %v5796
    %v5937 = vpack.c.b16 %v5801, %v5799
    %v5938 = vpack.c.b16 %v5802, %v5800
    %v5939 = vpack.c.b16 %v5805, %v5803
    %v5940 = vpack.c.b16 %v5806, %v5804
    %v5941 = vpack.c.b16 %v5809, %v5807
    %v5942 = vpack.c.b16 %v5810, %v5808
    %v5943 = vpack.c.b16 %v5813, %v5811
    %v5944 = vpack.c.b16 %v5814, %v5812
    %v5945 = vpack.c.b16 %v5817, %v5815
    %v5946 = vpack.c.b16 %v5818, %v5816
    %6075 = vmatpush.bf16.msra.mxu0 %v5833
    %6076 = vmatpush.bf16.msra.mxu0 %v5831
    %6077 = vmatpush.bf16.msra.mxu0 %v5829
    %6078 = vmatpush.bf16.msra.mxu0 %v5827
    %6079 = vmatpush.bf16.msra.mxu0 %v5825
    %6080 = vmatpush.bf16.msra.mxu0 %v5823
    %6081 = vmatpush.bf16.msra.mxu0 %v5821
    %6082 = vmatpush.bf16.msra.mxu0 %v5819
    %6083 = vmatmul.bf16.gmra.mxu0 %v5299
    %v6084 = vpop.f32.mrf.mxu0
    %v6085 = vadd.f32 0.0, %v6084
    %v6086 = vpop.f32.mrf.mxu0
    %v6087 = vadd.f32 0.0, %v6086
    %6088 = vdwg.mxu0
    %6089 = vmatpush.bf16.msra.mxu0 %v5849
    %6090 = vmatpush.bf16.msra.mxu0 %v5847
    %6091 = vmatpush.bf16.msra.mxu0 %v5845
    %6092 = vmatpush.bf16.msra.mxu0 %v5843
    %6093 = vmatpush.bf16.msra.mxu0 %v5841
    %6094 = vmatpush.bf16.msra.mxu0 %v5839
    %6095 = vmatpush.bf16.msra.mxu0 %v5837
    %6096 = vmatpush.bf16.msra.mxu0 %v5835
    %6097 = vmatmul.bf16.gmra.mxu0 %v5300
    %v6098 = vpop.f32.mrf.mxu0
    %v6099 = vadd.f32 %v6085, %v6098
    %v6100 = vpop.f32.mrf.mxu0
    %v6101 = vadd.f32 %v6087, %v6100
    %6102 = vdwg.mxu0
    %6103 = vmatpush.bf16.msra.mxu0 %v5865
    %6104 = vmatpush.bf16.msra.mxu0 %v5863
    %6105 = vmatpush.bf16.msra.mxu0 %v5861
    %6106 = vmatpush.bf16.msra.mxu0 %v5859
    %6107 = vmatpush.bf16.msra.mxu0 %v5857
    %6108 = vmatpush.bf16.msra.mxu0 %v5855
    %6109 = vmatpush.bf16.msra.mxu0 %v5853
    %6110 = vmatpush.bf16.msra.mxu0 %v5851
    %6111 = vmatmul.bf16.gmra.mxu0 %v5301
    %v6112 = vpop.f32.mrf.mxu0
    %v6113 = vadd.f32 %v6099, %v6112
    %v6114 = vpop.f32.mrf.mxu0
    %v6115 = vadd.f32 %v6101, %v6114
    %6116 = vdwg.mxu0
    %6117 = vmatpush.bf16.msra.mxu0 %v5881
    %6118 = vmatpush.bf16.msra.mxu0 %v5879
    %6119 = vmatpush.bf16.msra.mxu0 %v5877
    %6120 = vmatpush.bf16.msra.mxu0 %v5875
    %6121 = vmatpush.bf16.msra.mxu0 %v5873
    %6122 = vmatpush.bf16.msra.mxu0 %v5871
    %6123 = vmatpush.bf16.msra.mxu0 %v5869
    %6124 = vmatpush.bf16.msra.mxu0 %v5867
    %6125 = vmatmul.bf16.gmra.mxu0 %v5302
    %v6126 = vpop.f32.mrf.mxu0
    %v6127 = vadd.f32 %v6113, %v6126
    %v6128 = vpop.f32.mrf.mxu0
    %v6129 = vadd.f32 %v6115, %v6128
    %6130 = vdwg.mxu0
    %6131 = vmatpush.bf16.msra.mxu0 %v5897
    %6132 = vmatpush.bf16.msra.mxu0 %v5895
    %6133 = vmatpush.bf16.msra.mxu0 %v5893
    %6134 = vmatpush.bf16.msra.mxu0 %v5891
    %6135 = vmatpush.bf16.msra.mxu0 %v5889
    %6136 = vmatpush.bf16.msra.mxu0 %v5887
    %6137 = vmatpush.bf16.msra.mxu0 %v5885
    %6138 = vmatpush.bf16.msra.mxu0 %v5883
    %6139 = vmatmul.bf16.gmra.mxu0 %v5303
    %v6140 = vpop.f32.mrf.mxu0
    %v6141 = vadd.f32 %v6127, %v6140
    %v6142 = vpop.f32.mrf.mxu0
    %v6143 = vadd.f32 %v6129, %v6142
    %6144 = vdwg.mxu0
    %6145 = vmatpush.bf16.msra.mxu0 %v5913
    %6146 = vmatpush.bf16.msra.mxu0 %v5911
    %6147 = vmatpush.bf16.msra.mxu0 %v5909
    %6148 = vmatpush.bf16.msra.mxu0 %v5907
    %6149 = vmatpush.bf16.msra.mxu0 %v5905
    %6150 = vmatpush.bf16.msra.mxu0 %v5903
    %6151 = vmatpush.bf16.msra.mxu0 %v5901
    %6152 = vmatpush.bf16.msra.mxu0 %v5899
    %6153 = vmatmul.bf16.gmra.mxu0 %v5304
    %v6154 = vpop.f32.mrf.mxu0
    %v6155 = vadd.f32 %v6141, %v6154
    %v6156 = vpop.f32.mrf.mxu0
    %v6157 = vadd.f32 %v6143, %v6156
    %6158 = vdwg.mxu0
    %6159 = vmatpush.bf16.msra.mxu0 %v5929
    %6160 = vmatpush.bf16.msra.mxu0 %v5927
    %6161 = vmatpush.bf16.msra.mxu0 %v5925
    %6162 = vmatpush.bf16.msra.mxu0 %v5923
    %6163 = vmatpush.bf16.msra.mxu0 %v5921
    %6164 = vmatpush.bf16.msra.mxu0 %v5919
    %6165 = vmatpush.bf16.msra.mxu0 %v5917
    %6166 = vmatpush.bf16.msra.mxu0 %v5915
    %6167 = vmatmul.bf16.gmra.mxu0 %v5305
    %v6168 = vpop.f32.mrf.mxu0
    %v6169 = vadd.f32 %v6155, %v6168
    %v6170 = vpop.f32.mrf.mxu0
    %v6171 = vadd.f32 %v6157, %v6170
    %6172 = vdwg.mxu0
    %6173 = vmatpush.bf16.msra.mxu0 %v5945
    %6174 = vmatpush.bf16.msra.mxu0 %v5943
    %6175 = vmatpush.bf16.msra.mxu0 %v5941
    %6176 = vmatpush.bf16.msra.mxu0 %v5939
    %6177 = vmatpush.bf16.msra.mxu0 %v5937
    %6178 = vmatpush.bf16.msra.mxu0 %v5935
    %6179 = vmatpush.bf16.msra.mxu0 %v5933
    %6180 = vmatpush.bf16.msra.mxu0 %v5931
    %6181 = vmatmul.bf16.gmra.mxu0 %v5306
    %v6182 = vpop.f32.mrf.mxu0
    %v6183 = vadd.f32 %v6169, %v6182
    %v6184 = vpop.f32.mrf.mxu0
    %v6185 = vadd.f32 %v6171, %v6184
    %6186 = vdwg.mxu0
    %6187 = vmatpush.bf16.msra.mxu0 %v5834
    %6188 = vmatpush.bf16.msra.mxu0 %v5832
    %6189 = vmatpush.bf16.msra.mxu0 %v5830
    %6190 = vmatpush.bf16.msra.mxu0 %v5828
    %6191 = vmatpush.bf16.msra.mxu0 %v5826
    %6192 = vmatpush.bf16.msra.mxu0 %v5824
    %6193 = vmatpush.bf16.msra.mxu0 %v5822
    %6194 = vmatpush.bf16.msra.mxu0 %v5820
    %6195 = vmatmul.bf16.gmra.mxu0 %v5299
    %v6196 = vpop.f32.mrf.mxu0
    %v6197 = vadd.f32 0.0, %v6196
    %v6198 = vpop.f32.mrf.mxu0
    %v6199 = vadd.f32 0.0, %v6198
    %6200 = vdwg.mxu0
    %6201 = vmatpush.bf16.msra.mxu0 %v5850
    %6202 = vmatpush.bf16.msra.mxu0 %v5848
    %6203 = vmatpush.bf16.msra.mxu0 %v5846
    %6204 = vmatpush.bf16.msra.mxu0 %v5844
    %6205 = vmatpush.bf16.msra.mxu0 %v5842
    %6206 = vmatpush.bf16.msra.mxu0 %v5840
    %6207 = vmatpush.bf16.msra.mxu0 %v5838
    %6208 = vmatpush.bf16.msra.mxu0 %v5836
    %6209 = vmatmul.bf16.gmra.mxu0 %v5300
    %v6210 = vpop.f32.mrf.mxu0
    %v6211 = vadd.f32 %v6197, %v6210
    %v6212 = vpop.f32.mrf.mxu0
    %v6213 = vadd.f32 %v6199, %v6212
    %6214 = vdwg.mxu0
    %6215 = vmatpush.bf16.msra.mxu0 %v5866
    %6216 = vmatpush.bf16.msra.mxu0 %v5864
    %6217 = vmatpush.bf16.msra.mxu0 %v5862
    %6218 = vmatpush.bf16.msra.mxu0 %v5860
    %6219 = vmatpush.bf16.msra.mxu0 %v5858
    %6220 = vmatpush.bf16.msra.mxu0 %v5856
    %6221 = vmatpush.bf16.msra.mxu0 %v5854
    %6222 = vmatpush.bf16.msra.mxu0 %v5852
    %6223 = vmatmul.bf16.gmra.mxu0 %v5301
    %v6224 = vpop.f32.mrf.mxu0
    %v6225 = vadd.f32 %v6211, %v6224
    %v6226 = vpop.f32.mrf.mxu0
    %v6227 = vadd.f32 %v6213, %v6226
    %6228 = vdwg.mxu0
    %6229 = vmatpush.bf16.msra.mxu0 %v5882
    %6230 = vmatpush.bf16.msra.mxu0 %v5880
    %6231 = vmatpush.bf16.msra.mxu0 %v5878
    %6232 = vmatpush.bf16.msra.mxu0 %v5876
    %6233 = vmatpush.bf16.msra.mxu0 %v5874
    %6234 = vmatpush.bf16.msra.mxu0 %v5872
    %6235 = vmatpush.bf16.msra.mxu0 %v5870
    %6236 = vmatpush.bf16.msra.mxu0 %v5868
    %6237 = vmatmul.bf16.gmra.mxu0 %v5302
    %v6238 = vpop.f32.mrf.mxu0
    %v6239 = vadd.f32 %v6225, %v6238
    %v6240 = vpop.f32.mrf.mxu0
    %v6241 = vadd.f32 %v6227, %v6240
    %6242 = vdwg.mxu0
    %6243 = vmatpush.bf16.msra.mxu0 %v5898
    %6244 = vmatpush.bf16.msra.mxu0 %v5896
    %6245 = vmatpush.bf16.msra.mxu0 %v5894
    %6246 = vmatpush.bf16.msra.mxu0 %v5892
    %6247 = vmatpush.bf16.msra.mxu0 %v5890
    %6248 = vmatpush.bf16.msra.mxu0 %v5888
    %6249 = vmatpush.bf16.msra.mxu0 %v5886
    %6250 = vmatpush.bf16.msra.mxu0 %v5884
    %6251 = vmatmul.bf16.gmra.mxu0 %v5303
    %v6252 = vpop.f32.mrf.mxu0
    %v6253 = vadd.f32 %v6239, %v6252
    %v6254 = vpop.f32.mrf.mxu0
    %v6255 = vadd.f32 %v6241, %v6254
    %6256 = vdwg.mxu0
    %6257 = vmatpush.bf16.msra.mxu0 %v5914
    %6258 = vmatpush.bf16.msra.mxu0 %v5912
    %6259 = vmatpush.bf16.msra.mxu0 %v5910
    %6260 = vmatpush.bf16.msra.mxu0 %v5908
    %6261 = vmatpush.bf16.msra.mxu0 %v5906
    %6262 = vmatpush.bf16.msra.mxu0 %v5904
    %6263 = vmatpush.bf16.msra.mxu0 %v5902
    %6264 = vmatpush.bf16.msra.mxu0 %v5900
    %6265 = vmatmul.bf16.gmra.mxu0 %v5304
    %v6266 = vpop.f32.mrf.mxu0
    %v6267 = vadd.f32 %v6253, %v6266
    %v6268 = vpop.f32.mrf.mxu0
    %v6269 = vadd.f32 %v6255, %v6268
    %6270 = vdwg.mxu0
    %6271 = vmatpush.bf16.msra.mxu0 %v5930
    %6272 = vmatpush.bf16.msra.mxu0 %v5928
    %6273 = vmatpush.bf16.msra.mxu0 %v5926
    %6274 = vmatpush.bf16.msra.mxu0 %v5924
    %6275 = vmatpush.bf16.msra.mxu0 %v5922
    %6276 = vmatpush.bf16.msra.mxu0 %v5920
    %6277 = vmatpush.bf16.msra.mxu0 %v5918
    %6278 = vmatpush.bf16.msra.mxu0 %v5916
    %6279 = vmatmul.bf16.gmra.mxu0 %v5305
    %v6280 = vpop.f32.mrf.mxu0
    %v6281 = vadd.f32 %v6267, %v6280
    %v6282 = vpop.f32.mrf.mxu0
    %v6283 = vadd.f32 %v6269, %v6282
    %6284 = vdwg.mxu0
    %6285 = vmatpush.bf16.msra.mxu0 %v5946
    %6286 = vmatpush.bf16.msra.mxu0 %v5944
    %6287 = vmatpush.bf16.msra.mxu0 %v5942
    %6288 = vmatpush.bf16.msra.mxu0 %v5940
    %6289 = vmatpush.bf16.msra.mxu0 %v5938
    %6290 = vmatpush.bf16.msra.mxu0 %v5936
    %6291 = vmatpush.bf16.msra.mxu0 %v5934
    %6292 = vmatpush.bf16.msra.mxu0 %v5932
    %6293 = vmatmul.bf16.gmra.mxu0 %v5306
    %v6294 = vpop.f32.mrf.mxu0
    %v6295 = vadd.f32 %v6281, %v6294
    %v6296 = vpop.f32.mrf.mxu0
    %v6297 = vadd.f32 %v6283, %v6296
    %6298 = vdwg.mxu0
    %v6427 = vunpack.c.l.b16 %v5171
    %v6428 = vunpack.c.h.b16 %v5171
    %v6429 = vunpack.c.l.b16 %v5172
    %v6430 = vunpack.c.h.b16 %v5172
    %v6431 = vunpack.c.l.b16 %v5173
    %v6432 = vunpack.c.h.b16 %v5173
    %v6433 = vunpack.c.l.b16 %v5174
    %v6434 = vunpack.c.h.b16 %v5174
    %v6435 = vunpack.c.l.b16 %v5175
    %v6436 = vunpack.c.h.b16 %v5175
    %v6437 = vunpack.c.l.b16 %v5176
    %v6438 = vunpack.c.h.b16 %v5176
    %v6439 = vunpack.c.l.b16 %v5177
    %v6440 = vunpack.c.h.b16 %v5177
    %v6441 = vunpack.c.l.b16 %v5178
    %v6442 = vunpack.c.h.b16 %v5178
    %v6443 = vunpack.c.l.b16 %v5179
    %v6444 = vunpack.c.h.b16 %v5179
    %v6445 = vunpack.c.l.b16 %v5180
    %v6446 = vunpack.c.h.b16 %v5180
    %v6447 = vunpack.c.l.b16 %v5181
    %v6448 = vunpack.c.h.b16 %v5181
    %v6449 = vunpack.c.l.b16 %v5182
    %v6450 = vunpack.c.h.b16 %v5182
    %v6451 = vunpack.c.l.b16 %v5183
    %v6452 = vunpack.c.h.b16 %v5183
    %v6453 = vunpack.c.l.b16 %v5184
    %v6454 = vunpack.c.h.b16 %v5184
    %v6455 = vunpack.c.l.b16 %v5185
    %v6456 = vunpack.c.h.b16 %v5185
    %v6457 = vunpack.c.l.b16 %v5186
    %v6458 = vunpack.c.h.b16 %v5186
    %v6459 = vunpack.c.l.b16 %v5187
    %v6460 = vunpack.c.h.b16 %v5187
    %v6461 = vunpack.c.l.b16 %v5188
    %v6462 = vunpack.c.h.b16 %v5188
    %v6463 = vunpack.c.l.b16 %v5189
    %v6464 = vunpack.c.h.b16 %v5189
    %v6465 = vunpack.c.l.b16 %v5190
    %v6466 = vunpack.c.h.b16 %v5190
    %v6467 = vunpack.c.l.b16 %v5191
    %v6468 = vunpack.c.h.b16 %v5191
    %v6469 = vunpack.c.l.b16 %v5192
    %v6470 = vunpack.c.h.b16 %v5192
    %v6471 = vunpack.c.l.b16 %v5193
    %v6472 = vunpack.c.h.b16 %v5193
    %v6473 = vunpack.c.l.b16 %v5194
    %v6474 = vunpack.c.h.b16 %v5194
    %v6475 = vunpack.c.l.b16 %v5195
    %v6476 = vunpack.c.h.b16 %v5195
    %v6477 = vunpack.c.l.b16 %v5196
    %v6478 = vunpack.c.h.b16 %v5196
    %v6479 = vunpack.c.l.b16 %v5197
    %v6480 = vunpack.c.h.b16 %v5197
    %v6481 = vunpack.c.l.b16 %v5198
    %v6482 = vunpack.c.h.b16 %v5198
    %v6483 = vunpack.c.l.b16 %v5199
    %v6484 = vunpack.c.h.b16 %v5199
    %v6485 = vunpack.c.l.b16 %v5200
    %v6486 = vunpack.c.h.b16 %v5200
    %v6487 = vunpack.c.l.b16 %v5201
    %v6488 = vunpack.c.h.b16 %v5201
    %v6489 = vunpack.c.l.b16 %v5202
    %v6490 = vunpack.c.h.b16 %v5202
    %v6491 = vunpack.c.l.b16 %v5203
    %v6492 = vunpack.c.h.b16 %v5203
    %v6493 = vunpack.c.l.b16 %v5204
    %v6494 = vunpack.c.h.b16 %v5204
    %v6495 = vunpack.c.l.b16 %v5205
    %v6496 = vunpack.c.h.b16 %v5205
    %v6497 = vunpack.c.l.b16 %v5206
    %v6498 = vunpack.c.h.b16 %v5206
    %v6499 = vunpack.c.l.b16 %v5207
    %v6500 = vunpack.c.h.b16 %v5207
    %v6501 = vunpack.c.l.b16 %v5208
    %v6502 = vunpack.c.h.b16 %v5208
    %v6503 = vunpack.c.l.b16 %v5209
    %v6504 = vunpack.c.h.b16 %v5209
    %v6505 = vunpack.c.l.b16 %v5210
    %v6506 = vunpack.c.h.b16 %v5210
    %v6507 = vunpack.c.l.b16 %v5211
    %v6508 = vunpack.c.h.b16 %v5211
    %v6509 = vunpack.c.l.b16 %v5212
    %v6510 = vunpack.c.h.b16 %v5212
    %v6511 = vunpack.c.l.b16 %v5213
    %v6512 = vunpack.c.h.b16 %v5213
    %v6513 = vunpack.c.l.b16 %v5214
    %v6514 = vunpack.c.h.b16 %v5214
    %v6515 = vunpack.c.l.b16 %v5215
    %v6516 = vunpack.c.h.b16 %v5215
    %v6517 = vunpack.c.l.b16 %v5216
    %v6518 = vunpack.c.h.b16 %v5216
    %v6519 = vunpack.c.l.b16 %v5217
    %v6520 = vunpack.c.h.b16 %v5217
    %v6521 = vunpack.c.l.b16 %v5218
    %v6522 = vunpack.c.h.b16 %v5218
    %v6523 = vunpack.c.l.b16 %v5219
    %v6524 = vunpack.c.h.b16 %v5219
    %v6525 = vunpack.c.l.b16 %v5220
    %v6526 = vunpack.c.h.b16 %v5220
    %v6527 = vunpack.c.l.b16 %v5221
    %v6528 = vunpack.c.h.b16 %v5221
    %v6529 = vunpack.c.l.b16 %v5222
    %v6530 = vunpack.c.h.b16 %v5222
    %v6531 = vunpack.c.l.b16 %v5223
    %v6532 = vunpack.c.h.b16 %v5223
    %v6533 = vunpack.c.l.b16 %v5224
    %v6534 = vunpack.c.h.b16 %v5224
    %v6535 = vunpack.c.l.b16 %v5225
    %v6536 = vunpack.c.h.b16 %v5225
    %v6537 = vunpack.c.l.b16 %v5226
    %v6538 = vunpack.c.h.b16 %v5226
    %v6539 = vunpack.c.l.b16 %v5227
    %v6540 = vunpack.c.h.b16 %v5227
    %v6541 = vunpack.c.l.b16 %v5228
    %v6542 = vunpack.c.h.b16 %v5228
    %v6543 = vunpack.c.l.b16 %v5229
    %v6544 = vunpack.c.h.b16 %v5229
    %v6545 = vunpack.c.l.b16 %v5230
    %v6546 = vunpack.c.h.b16 %v5230
    %v6547 = vunpack.c.l.b16 %v5231
    %v6548 = vunpack.c.h.b16 %v5231
    %v6549 = vunpack.c.l.b16 %v5232
    %v6550 = vunpack.c.h.b16 %v5232
    %v6551 = vunpack.c.l.b16 %v5233
    %v6552 = vunpack.c.h.b16 %v5233
    %v6553 = vunpack.c.l.b16 %v5234
    %v6554 = vunpack.c.h.b16 %v5234
    %v6555 = vunpack.c.l.b16 %v5235
    %v6556 = vunpack.c.h.b16 %v5235
    %v6557 = vunpack.c.l.b16 %v5236
    %v6558 = vunpack.c.h.b16 %v5236
    %v6559 = vunpack.c.l.b16 %v5237
    %v6560 = vunpack.c.h.b16 %v5237
    %v6561 = vunpack.c.l.b16 %v5238
    %v6562 = vunpack.c.h.b16 %v5238
    %v6563 = vunpack.c.l.b16 %v5239
    %v6564 = vunpack.c.h.b16 %v5239
    %v6565 = vunpack.c.l.b16 %v5240
    %v6566 = vunpack.c.h.b16 %v5240
    %v6567 = vunpack.c.l.b16 %v5241
    %v6568 = vunpack.c.h.b16 %v5241
    %v6569 = vunpack.c.l.b16 %v5242
    %v6570 = vunpack.c.h.b16 %v5242
    %v6571 = vunpack.c.l.b16 %v5243
    %v6572 = vunpack.c.h.b16 %v5243
    %v6573 = vunpack.c.l.b16 %v5244
    %v6574 = vunpack.c.h.b16 %v5244
    %v6575 = vunpack.c.l.b16 %v5245
    %v6576 = vunpack.c.h.b16 %v5245
    %v6577 = vunpack.c.l.b16 %v5246
    %v6578 = vunpack.c.h.b16 %v5246
    %v6579 = vunpack.c.l.b16 %v5247
    %v6580 = vunpack.c.h.b16 %v5247
    %v6581 = vunpack.c.l.b16 %v5248
    %v6582 = vunpack.c.h.b16 %v5248
    %v6583 = vunpack.c.l.b16 %v5249
    %v6584 = vunpack.c.h.b16 %v5249
    %v6585 = vunpack.c.l.b16 %v5250
    %v6586 = vunpack.c.h.b16 %v5250
    %v6587 = vunpack.c.l.b16 %v5251
    %v6588 = vunpack.c.h.b16 %v5251
    %v6589 = vunpack.c.l.b16 %v5252
    %v6590 = vunpack.c.h.b16 %v5252
    %v6591 = vunpack.c.l.b16 %v5253
    %v6592 = vunpack.c.h.b16 %v5253
    %v6593 = vunpack.c.l.b16 %v5254
    %v6594 = vunpack.c.h.b16 %v5254
    %v6595 = vunpack.c.l.b16 %v5255
    %v6596 = vunpack.c.h.b16 %v5255
    %v6597 = vunpack.c.l.b16 %v5256
    %v6598 = vunpack.c.h.b16 %v5256
    %v6599 = vunpack.c.l.b16 %v5257
    %v6600 = vunpack.c.h.b16 %v5257
    %v6601 = vunpack.c.l.b16 %v5258
    %v6602 = vunpack.c.h.b16 %v5258
    %v6603 = vunpack.c.l.b16 %v5259
    %v6604 = vunpack.c.h.b16 %v5259
    %v6605 = vunpack.c.l.b16 %v5260
    %v6606 = vunpack.c.h.b16 %v5260
    %v6607 = vunpack.c.l.b16 %v5261
    %v6608 = vunpack.c.h.b16 %v5261
    %v6609 = vunpack.c.l.b16 %v5262
    %v6610 = vunpack.c.h.b16 %v5262
    %v6611 = vunpack.c.l.b16 %v5263
    %v6612 = vunpack.c.h.b16 %v5263
    %v6613 = vunpack.c.l.b16 %v5264
    %v6614 = vunpack.c.h.b16 %v5264
    %v6615 = vunpack.c.l.b16 %v5265
    %v6616 = vunpack.c.h.b16 %v5265
    %v6617 = vunpack.c.l.b16 %v5266
    %v6618 = vunpack.c.h.b16 %v5266
    %v6619 = vunpack.c.l.b16 %v5267
    %v6620 = vunpack.c.h.b16 %v5267
    %v6621 = vunpack.c.l.b16 %v5268
    %v6622 = vunpack.c.h.b16 %v5268
    %v6623 = vunpack.c.l.b16 %v5269
    %v6624 = vunpack.c.h.b16 %v5269
    %v6625 = vunpack.c.l.b16 %v5270
    %v6626 = vunpack.c.h.b16 %v5270
    %v6627 = vunpack.c.l.b16 %v5271
    %v6628 = vunpack.c.h.b16 %v5271
    %v6629 = vunpack.c.l.b16 %v5272
    %v6630 = vunpack.c.h.b16 %v5272
    %v6631 = vunpack.c.l.b16 %v5273
    %v6632 = vunpack.c.h.b16 %v5273
    %v6633 = vunpack.c.l.b16 %v5274
    %v6634 = vunpack.c.h.b16 %v5274
    %v6635 = vunpack.c.l.b16 %v5275
    %v6636 = vunpack.c.h.b16 %v5275
    %v6637 = vunpack.c.l.b16 %v5276
    %v6638 = vunpack.c.h.b16 %v5276
    %v6639 = vunpack.c.l.b16 %v5277
    %v6640 = vunpack.c.h.b16 %v5277
    %v6641 = vunpack.c.l.b16 %v5278
    %v6642 = vunpack.c.h.b16 %v5278
    %v6643 = vunpack.c.l.b16 %v5279
    %v6644 = vunpack.c.h.b16 %v5279
    %v6645 = vunpack.c.l.b16 %v5280
    %v6646 = vunpack.c.h.b16 %v5280
    %v6647 = vunpack.c.l.b16 %v5281
    %v6648 = vunpack.c.h.b16 %v5281
    %v6649 = vunpack.c.l.b16 %v5282
    %v6650 = vunpack.c.h.b16 %v5282
    %v6651 = vunpack.c.l.b16 %v5283
    %v6652 = vunpack.c.h.b16 %v5283
    %v6653 = vunpack.c.l.b16 %v5284
    %v6654 = vunpack.c.h.b16 %v5284
    %v6655 = vunpack.c.l.b16 %v5285
    %v6656 = vunpack.c.h.b16 %v5285
    %v6657 = vunpack.c.l.b16 %v5286
    %v6658 = vunpack.c.h.b16 %v5286
    %v6659 = vunpack.c.l.b16 %v5287
    %v6660 = vunpack.c.h.b16 %v5287
    %v6661 = vunpack.c.l.b16 %v5288
    %v6662 = vunpack.c.h.b16 %v5288
    %v6663 = vunpack.c.l.b16 %v5289
    %v6664 = vunpack.c.h.b16 %v5289
    %v6665 = vunpack.c.l.b16 %v5290
    %v6666 = vunpack.c.h.b16 %v5290
    %v6667 = vunpack.c.l.b16 %v5291
    %v6668 = vunpack.c.h.b16 %v5291
    %v6669 = vunpack.c.l.b16 %v5292
    %v6670 = vunpack.c.h.b16 %v5292
    %v6671 = vunpack.c.l.b16 %v5293
    %v6672 = vunpack.c.h.b16 %v5293
    %v6673 = vunpack.c.l.b16 %v5294
    %v6674 = vunpack.c.h.b16 %v5294
    %v6675 = vunpack.c.l.b16 %v5295
    %v6676 = vunpack.c.h.b16 %v5295
    %v6677 = vunpack.c.l.b16 %v5296
    %v6678 = vunpack.c.h.b16 %v5296
    %v6679 = vunpack.c.l.b16 %v5297
    %v6680 = vunpack.c.h.b16 %v5297
    %v6681 = vunpack.c.l.b16 %v5298
    %v6682 = vunpack.c.h.b16 %v5298
    %v6683 = vpack.c.b16 %v6429, %v6427
    %v6684 = vpack.c.b16 %v6430, %v6428
    %v6685 = vpack.c.b16 %v6433, %v6431
    %v6686 = vpack.c.b16 %v6434, %v6432
    %v6687 = vpack.c.b16 %v6437, %v6435
    %v6688 = vpack.c.b16 %v6438, %v6436
    %v6689 = vpack.c.b16 %v6441, %v6439
    %v6690 = vpack.c.b16 %v6442, %v6440
    %v6691 = vpack.c.b16 %v6445, %v6443
    %v6692 = vpack.c.b16 %v6446, %v6444
    %v6693 = vpack.c.b16 %v6449, %v6447
    %v6694 = vpack.c.b16 %v6450, %v6448
    %v6695 = vpack.c.b16 %v6453, %v6451
    %v6696 = vpack.c.b16 %v6454, %v6452
    %v6697 = vpack.c.b16 %v6457, %v6455
    %v6698 = vpack.c.b16 %v6458, %v6456
    %v6699 = vpack.c.b16 %v6461, %v6459
    %v6700 = vpack.c.b16 %v6462, %v6460
    %v6701 = vpack.c.b16 %v6465, %v6463
    %v6702 = vpack.c.b16 %v6466, %v6464
    %v6703 = vpack.c.b16 %v6469, %v6467
    %v6704 = vpack.c.b16 %v6470, %v6468
    %v6705 = vpack.c.b16 %v6473, %v6471
    %v6706 = vpack.c.b16 %v6474, %v6472
    %v6707 = vpack.c.b16 %v6477, %v6475
    %v6708 = vpack.c.b16 %v6478, %v6476
    %v6709 = vpack.c.b16 %v6481, %v6479
    %v6710 = vpack.c.b16 %v6482, %v6480
    %v6711 = vpack.c.b16 %v6485, %v6483
    %v6712 = vpack.c.b16 %v6486, %v6484
    %v6713 = vpack.c.b16 %v6489, %v6487
    %v6714 = vpack.c.b16 %v6490, %v6488
    %v6715 = vpack.c.b16 %v6493, %v6491
    %v6716 = vpack.c.b16 %v6494, %v6492
    %v6717 = vpack.c.b16 %v6497, %v6495
    %v6718 = vpack.c.b16 %v6498, %v6496
    %v6719 = vpack.c.b16 %v6501, %v6499
    %v6720 = vpack.c.b16 %v6502, %v6500
    %v6721 = vpack.c.b16 %v6505, %v6503
    %v6722 = vpack.c.b16 %v6506, %v6504
    %v6723 = vpack.c.b16 %v6509, %v6507
    %v6724 = vpack.c.b16 %v6510, %v6508
    %v6725 = vpack.c.b16 %v6513, %v6511
    %v6726 = vpack.c.b16 %v6514, %v6512
    %v6727 = vpack.c.b16 %v6517, %v6515
    %v6728 = vpack.c.b16 %v6518, %v6516
    %v6729 = vpack.c.b16 %v6521, %v6519
    %v6730 = vpack.c.b16 %v6522, %v6520
    %v6731 = vpack.c.b16 %v6525, %v6523
    %v6732 = vpack.c.b16 %v6526, %v6524
    %v6733 = vpack.c.b16 %v6529, %v6527
    %v6734 = vpack.c.b16 %v6530, %v6528
    %v6735 = vpack.c.b16 %v6533, %v6531
    %v6736 = vpack.c.b16 %v6534, %v6532
    %v6737 = vpack.c.b16 %v6537, %v6535
    %v6738 = vpack.c.b16 %v6538, %v6536
    %v6739 = vpack.c.b16 %v6541, %v6539
    %v6740 = vpack.c.b16 %v6542, %v6540
    %v6741 = vpack.c.b16 %v6545, %v6543
    %v6742 = vpack.c.b16 %v6546, %v6544
    %v6743 = vpack.c.b16 %v6549, %v6547
    %v6744 = vpack.c.b16 %v6550, %v6548
    %v6745 = vpack.c.b16 %v6553, %v6551
    %v6746 = vpack.c.b16 %v6554, %v6552
    %v6747 = vpack.c.b16 %v6557, %v6555
    %v6748 = vpack.c.b16 %v6558, %v6556
    %v6749 = vpack.c.b16 %v6561, %v6559
    %v6750 = vpack.c.b16 %v6562, %v6560
    %v6751 = vpack.c.b16 %v6565, %v6563
    %v6752 = vpack.c.b16 %v6566, %v6564
    %v6753 = vpack.c.b16 %v6569, %v6567
    %v6754 = vpack.c.b16 %v6570, %v6568
    %v6755 = vpack.c.b16 %v6573, %v6571
    %v6756 = vpack.c.b16 %v6574, %v6572
    %v6757 = vpack.c.b16 %v6577, %v6575
    %v6758 = vpack.c.b16 %v6578, %v6576
    %v6759 = vpack.c.b16 %v6581, %v6579
    %v6760 = vpack.c.b16 %v6582, %v6580
    %v6761 = vpack.c.b16 %v6585, %v6583
    %v6762 = vpack.c.b16 %v6586, %v6584
    %v6763 = vpack.c.b16 %v6589, %v6587
    %v6764 = vpack.c.b16 %v6590, %v6588
    %v6765 = vpack.c.b16 %v6593, %v6591
    %v6766 = vpack.c.b16 %v6594, %v6592
    %v6767 = vpack.c.b16 %v6597, %v6595
    %v6768 = vpack.c.b16 %v6598, %v6596
    %v6769 = vpack.c.b16 %v6601, %v6599
    %v6770 = vpack.c.b16 %v6602, %v6600
    %v6771 = vpack.c.b16 %v6605, %v6603
    %v6772 = vpack.c.b16 %v6606, %v6604
    %v6773 = vpack.c.b16 %v6609, %v6607
    %v6774 = vpack.c.b16 %v6610, %v6608
    %v6775 = vpack.c.b16 %v6613, %v6611
    %v6776 = vpack.c.b16 %v6614, %v6612
    %v6777 = vpack.c.b16 %v6617, %v6615
    %v6778 = vpack.c.b16 %v6618, %v6616
    %v6779 = vpack.c.b16 %v6621, %v6619
    %v6780 = vpack.c.b16 %v6622, %v6620
    %v6781 = vpack.c.b16 %v6625, %v6623
    %v6782 = vpack.c.b16 %v6626, %v6624
    %v6783 = vpack.c.b16 %v6629, %v6627
    %v6784 = vpack.c.b16 %v6630, %v6628
    %v6785 = vpack.c.b16 %v6633, %v6631
    %v6786 = vpack.c.b16 %v6634, %v6632
    %v6787 = vpack.c.b16 %v6637, %v6635
    %v6788 = vpack.c.b16 %v6638, %v6636
    %v6789 = vpack.c.b16 %v6641, %v6639
    %v6790 = vpack.c.b16 %v6642, %v6640
    %v6791 = vpack.c.b16 %v6645, %v6643
    %v6792 = vpack.c.b16 %v6646, %v6644
    %v6793 = vpack.c.b16 %v6649, %v6647
    %v6794 = vpack.c.b16 %v6650, %v6648
    %v6795 = vpack.c.b16 %v6653, %v6651
    %v6796 = vpack.c.b16 %v6654, %v6652
    %v6797 = vpack.c.b16 %v6657, %v6655
    %v6798 = vpack.c.b16 %v6658, %v6656
    %v6799 = vpack.c.b16 %v6661, %v6659
    %v6800 = vpack.c.b16 %v6662, %v6660
    %v6801 = vpack.c.b16 %v6665, %v6663
    %v6802 = vpack.c.b16 %v6666, %v6664
    %v6803 = vpack.c.b16 %v6669, %v6667
    %v6804 = vpack.c.b16 %v6670, %v6668
    %v6805 = vpack.c.b16 %v6673, %v6671
    %v6806 = vpack.c.b16 %v6674, %v6672
    %v6807 = vpack.c.b16 %v6677, %v6675
    %v6808 = vpack.c.b16 %v6678, %v6676
    %v6809 = vpack.c.b16 %v6681, %v6679
    %v6810 = vpack.c.b16 %v6682, %v6680
    %6939 = vmatpush.bf16.msra.mxu0 %v6697
    %6940 = vmatpush.bf16.msra.mxu0 %v6695
    %6941 = vmatpush.bf16.msra.mxu0 %v6693
    %6942 = vmatpush.bf16.msra.mxu0 %v6691
    %6943 = vmatpush.bf16.msra.mxu0 %v6689
    %6944 = vmatpush.bf16.msra.mxu0 %v6687
    %6945 = vmatpush.bf16.msra.mxu0 %v6685
    %6946 = vmatpush.bf16.msra.mxu0 %v6683
    %6947 = vmatmul.bf16.gmra.mxu0 %v5163
    %v6948 = vpop.f32.mrf.mxu0
    %v6949 = vadd.f32 %v6183, %v6948
    %v6950 = vpop.f32.mrf.mxu0
    %v6951 = vadd.f32 %v6185, %v6950
    %6952 = vdwg.mxu0
    %6953 = vmatpush.bf16.msra.mxu0 %v6713
    %6954 = vmatpush.bf16.msra.mxu0 %v6711
    %6955 = vmatpush.bf16.msra.mxu0 %v6709
    %6956 = vmatpush.bf16.msra.mxu0 %v6707
    %6957 = vmatpush.bf16.msra.mxu0 %v6705
    %6958 = vmatpush.bf16.msra.mxu0 %v6703
    %6959 = vmatpush.bf16.msra.mxu0 %v6701
    %6960 = vmatpush.bf16.msra.mxu0 %v6699
    %6961 = vmatmul.bf16.gmra.mxu0 %v5164
    %v6962 = vpop.f32.mrf.mxu0
    %v6963 = vadd.f32 %v6949, %v6962
    %v6964 = vpop.f32.mrf.mxu0
    %v6965 = vadd.f32 %v6951, %v6964
    %6966 = vdwg.mxu0
    %6967 = vmatpush.bf16.msra.mxu0 %v6729
    %6968 = vmatpush.bf16.msra.mxu0 %v6727
    %6969 = vmatpush.bf16.msra.mxu0 %v6725
    %6970 = vmatpush.bf16.msra.mxu0 %v6723
    %6971 = vmatpush.bf16.msra.mxu0 %v6721
    %6972 = vmatpush.bf16.msra.mxu0 %v6719
    %6973 = vmatpush.bf16.msra.mxu0 %v6717
    %6974 = vmatpush.bf16.msra.mxu0 %v6715
    %6975 = vmatmul.bf16.gmra.mxu0 %v5165
    %v6976 = vpop.f32.mrf.mxu0
    %v6977 = vadd.f32 %v6963, %v6976
    %v6978 = vpop.f32.mrf.mxu0
    %v6979 = vadd.f32 %v6965, %v6978
    %6980 = vdwg.mxu0
    %6981 = vmatpush.bf16.msra.mxu0 %v6745
    %6982 = vmatpush.bf16.msra.mxu0 %v6743
    %6983 = vmatpush.bf16.msra.mxu0 %v6741
    %6984 = vmatpush.bf16.msra.mxu0 %v6739
    %6985 = vmatpush.bf16.msra.mxu0 %v6737
    %6986 = vmatpush.bf16.msra.mxu0 %v6735
    %6987 = vmatpush.bf16.msra.mxu0 %v6733
    %6988 = vmatpush.bf16.msra.mxu0 %v6731
    %6989 = vmatmul.bf16.gmra.mxu0 %v5166
    %v6990 = vpop.f32.mrf.mxu0
    %v6991 = vadd.f32 %v6977, %v6990
    %v6992 = vpop.f32.mrf.mxu0
    %v6993 = vadd.f32 %v6979, %v6992
    %6994 = vdwg.mxu0
    %6995 = vmatpush.bf16.msra.mxu0 %v6761
    %6996 = vmatpush.bf16.msra.mxu0 %v6759
    %6997 = vmatpush.bf16.msra.mxu0 %v6757
    %6998 = vmatpush.bf16.msra.mxu0 %v6755
    %6999 = vmatpush.bf16.msra.mxu0 %v6753
    %7000 = vmatpush.bf16.msra.mxu0 %v6751
    %7001 = vmatpush.bf16.msra.mxu0 %v6749
    %7002 = vmatpush.bf16.msra.mxu0 %v6747
    %7003 = vmatmul.bf16.gmra.mxu0 %v5167
    %v7004 = vpop.f32.mrf.mxu0
    %v7005 = vadd.f32 %v6991, %v7004
    %v7006 = vpop.f32.mrf.mxu0
    %v7007 = vadd.f32 %v6993, %v7006
    %7008 = vdwg.mxu0
    %7009 = vmatpush.bf16.msra.mxu0 %v6777
    %7010 = vmatpush.bf16.msra.mxu0 %v6775
    %7011 = vmatpush.bf16.msra.mxu0 %v6773
    %7012 = vmatpush.bf16.msra.mxu0 %v6771
    %7013 = vmatpush.bf16.msra.mxu0 %v6769
    %7014 = vmatpush.bf16.msra.mxu0 %v6767
    %7015 = vmatpush.bf16.msra.mxu0 %v6765
    %7016 = vmatpush.bf16.msra.mxu0 %v6763
    %7017 = vmatmul.bf16.gmra.mxu0 %v5168
    %v7018 = vpop.f32.mrf.mxu0
    %v7019 = vadd.f32 %v7005, %v7018
    %v7020 = vpop.f32.mrf.mxu0
    %v7021 = vadd.f32 %v7007, %v7020
    %7022 = vdwg.mxu0
    %7023 = vmatpush.bf16.msra.mxu0 %v6793
    %7024 = vmatpush.bf16.msra.mxu0 %v6791
    %7025 = vmatpush.bf16.msra.mxu0 %v6789
    %7026 = vmatpush.bf16.msra.mxu0 %v6787
    %7027 = vmatpush.bf16.msra.mxu0 %v6785
    %7028 = vmatpush.bf16.msra.mxu0 %v6783
    %7029 = vmatpush.bf16.msra.mxu0 %v6781
    %7030 = vmatpush.bf16.msra.mxu0 %v6779
    %7031 = vmatmul.bf16.gmra.mxu0 %v5169
    %v7032 = vpop.f32.mrf.mxu0
    %v7033 = vadd.f32 %v7019, %v7032
    %v7034 = vpop.f32.mrf.mxu0
    %v7035 = vadd.f32 %v7021, %v7034
    %7036 = vdwg.mxu0
    %7037 = vmatpush.bf16.msra.mxu0 %v6809
    %7038 = vmatpush.bf16.msra.mxu0 %v6807
    %7039 = vmatpush.bf16.msra.mxu0 %v6805
    %7040 = vmatpush.bf16.msra.mxu0 %v6803
    %7041 = vmatpush.bf16.msra.mxu0 %v6801
    %7042 = vmatpush.bf16.msra.mxu0 %v6799
    %7043 = vmatpush.bf16.msra.mxu0 %v6797
    %7044 = vmatpush.bf16.msra.mxu0 %v6795
    %7045 = vmatmul.bf16.gmra.mxu0 %v5170
    %v7046 = vpop.f32.mrf.mxu0
    %v7047 = vadd.f32 %v7033, %v7046
    %v7048 = vpop.f32.mrf.mxu0
    %v7049 = vadd.f32 %v7035, %v7048
    %7050 = vdwg.mxu0
    %7051 = vmatpush.bf16.msra.mxu0 %v6698
    %7052 = vmatpush.bf16.msra.mxu0 %v6696
    %7053 = vmatpush.bf16.msra.mxu0 %v6694
    %7054 = vmatpush.bf16.msra.mxu0 %v6692
    %7055 = vmatpush.bf16.msra.mxu0 %v6690
    %7056 = vmatpush.bf16.msra.mxu0 %v6688
    %7057 = vmatpush.bf16.msra.mxu0 %v6686
    %7058 = vmatpush.bf16.msra.mxu0 %v6684
    %7059 = vmatmul.bf16.gmra.mxu0 %v5163
    %v7060 = vpop.f32.mrf.mxu0
    %v7061 = vadd.f32 %v6295, %v7060
    %v7062 = vpop.f32.mrf.mxu0
    %v7063 = vadd.f32 %v6297, %v7062
    %7064 = vdwg.mxu0
    %7065 = vmatpush.bf16.msra.mxu0 %v6714
    %7066 = vmatpush.bf16.msra.mxu0 %v6712
    %7067 = vmatpush.bf16.msra.mxu0 %v6710
    %7068 = vmatpush.bf16.msra.mxu0 %v6708
    %7069 = vmatpush.bf16.msra.mxu0 %v6706
    %7070 = vmatpush.bf16.msra.mxu0 %v6704
    %7071 = vmatpush.bf16.msra.mxu0 %v6702
    %7072 = vmatpush.bf16.msra.mxu0 %v6700
    %7073 = vmatmul.bf16.gmra.mxu0 %v5164
    %v7074 = vpop.f32.mrf.mxu0
    %v7075 = vadd.f32 %v7061, %v7074
    %v7076 = vpop.f32.mrf.mxu0
    %v7077 = vadd.f32 %v7063, %v7076
    %7078 = vdwg.mxu0
    %7079 = vmatpush.bf16.msra.mxu0 %v6730
    %7080 = vmatpush.bf16.msra.mxu0 %v6728
    %7081 = vmatpush.bf16.msra.mxu0 %v6726
    %7082 = vmatpush.bf16.msra.mxu0 %v6724
    %7083 = vmatpush.bf16.msra.mxu0 %v6722
    %7084 = vmatpush.bf16.msra.mxu0 %v6720
    %7085 = vmatpush.bf16.msra.mxu0 %v6718
    %7086 = vmatpush.bf16.msra.mxu0 %v6716
    %7087 = vmatmul.bf16.gmra.mxu0 %v5165
    %v7088 = vpop.f32.mrf.mxu0
    %v7089 = vadd.f32 %v7075, %v7088
    %v7090 = vpop.f32.mrf.mxu0
    %v7091 = vadd.f32 %v7077, %v7090
    %7092 = vdwg.mxu0
    %7093 = vmatpush.bf16.msra.mxu0 %v6746
    %7094 = vmatpush.bf16.msra.mxu0 %v6744
    %7095 = vmatpush.bf16.msra.mxu0 %v6742
    %7096 = vmatpush.bf16.msra.mxu0 %v6740
    %7097 = vmatpush.bf16.msra.mxu0 %v6738
    %7098 = vmatpush.bf16.msra.mxu0 %v6736
    %7099 = vmatpush.bf16.msra.mxu0 %v6734
    %7100 = vmatpush.bf16.msra.mxu0 %v6732
    %7101 = vmatmul.bf16.gmra.mxu0 %v5166
    %v7102 = vpop.f32.mrf.mxu0
    %v7103 = vadd.f32 %v7089, %v7102
    %v7104 = vpop.f32.mrf.mxu0
    %v7105 = vadd.f32 %v7091, %v7104
    %7106 = vdwg.mxu0
    %7107 = vmatpush.bf16.msra.mxu0 %v6762
    %7108 = vmatpush.bf16.msra.mxu0 %v6760
    %7109 = vmatpush.bf16.msra.mxu0 %v6758
    %7110 = vmatpush.bf16.msra.mxu0 %v6756
    %7111 = vmatpush.bf16.msra.mxu0 %v6754
    %7112 = vmatpush.bf16.msra.mxu0 %v6752
    %7113 = vmatpush.bf16.msra.mxu0 %v6750
    %7114 = vmatpush.bf16.msra.mxu0 %v6748
    %7115 = vmatmul.bf16.gmra.mxu0 %v5167
    %v7116 = vpop.f32.mrf.mxu0
    %v7117 = vadd.f32 %v7103, %v7116
    %v7118 = vpop.f32.mrf.mxu0
    %v7119 = vadd.f32 %v7105, %v7118
    %7120 = vdwg.mxu0
    %7121 = vmatpush.bf16.msra.mxu0 %v6778
    %7122 = vmatpush.bf16.msra.mxu0 %v6776
    %7123 = vmatpush.bf16.msra.mxu0 %v6774
    %7124 = vmatpush.bf16.msra.mxu0 %v6772
    %7125 = vmatpush.bf16.msra.mxu0 %v6770
    %7126 = vmatpush.bf16.msra.mxu0 %v6768
    %7127 = vmatpush.bf16.msra.mxu0 %v6766
    %7128 = vmatpush.bf16.msra.mxu0 %v6764
    %7129 = vmatmul.bf16.gmra.mxu0 %v5168
    %v7130 = vpop.f32.mrf.mxu0
    %v7131 = vadd.f32 %v7117, %v7130
    %v7132 = vpop.f32.mrf.mxu0
    %v7133 = vadd.f32 %v7119, %v7132
    %7134 = vdwg.mxu0
    %7135 = vmatpush.bf16.msra.mxu0 %v6794
    %7136 = vmatpush.bf16.msra.mxu0 %v6792
    %7137 = vmatpush.bf16.msra.mxu0 %v6790
    %7138 = vmatpush.bf16.msra.mxu0 %v6788
    %7139 = vmatpush.bf16.msra.mxu0 %v6786
    %7140 = vmatpush.bf16.msra.mxu0 %v6784
    %7141 = vmatpush.bf16.msra.mxu0 %v6782
    %7142 = vmatpush.bf16.msra.mxu0 %v6780
    %7143 = vmatmul.bf16.gmra.mxu0 %v5169
    %v7144 = vpop.f32.mrf.mxu0
    %v7145 = vadd.f32 %v7131, %v7144
    %v7146 = vpop.f32.mrf.mxu0
    %v7147 = vadd.f32 %v7133, %v7146
    %7148 = vdwg.mxu0
    %7149 = vmatpush.bf16.msra.mxu0 %v6810
    %7150 = vmatpush.bf16.msra.mxu0 %v6808
    %7151 = vmatpush.bf16.msra.mxu0 %v6806
    %7152 = vmatpush.bf16.msra.mxu0 %v6804
    %7153 = vmatpush.bf16.msra.mxu0 %v6802
    %7154 = vmatpush.bf16.msra.mxu0 %v6800
    %7155 = vmatpush.bf16.msra.mxu0 %v6798
    %7156 = vmatpush.bf16.msra.mxu0 %v6796
    %7157 = vmatmul.bf16.gmra.mxu0 %v5170
    %v7158 = vpop.f32.mrf.mxu0
    %v7159 = vadd.f32 %v7145, %v7158
    %v7160 = vpop.f32.mrf.mxu0
    %v7161 = vadd.f32 %v7147, %v7160
    %7162 = vdwg.mxu0
    %v7163 = vld [vmem:[%s11] sm:$0x3]
    %v7165 = vperm.slane %v7163, 0
    %v7166 = vperm.slane %v7163, 1
    %v7169 = vadd.f32 %v7047, %v7165
    %v7170 = vadd.f32 %v7159, %v7166
    %v7171 = vadd.f32 %v7049, %v7165
    %v7172 = vadd.f32 %v7161, %v7166
    %v7173 = vmax.f32 %v7169, 0.0
    %v7174 = vmax.f32 %v7170, 0.0
    %v7175 = vmax.f32 %v7171, 0.0
    %v7176 = vmax.f32 %v7172, 0.0
    %7177 = vst [vmem:[#allocation20] sm:$0xff] %v7173
    %7178 = vst [vmem:[#allocation20 + $0x8] sm:$0xff] %v7174
    %7179 = vst [vmem:[#allocation20 + $0x10] sm:$0xff] %v7175
    %7180 = vst [vmem:[#allocation20 + $0x18] sm:$0xff] %v7176
    // Predicated region
    $region94: #{decoder_forward.1} parent=1 // pred_check
      _
    $region95: #{decoder_forward.1} parent=1 // pred_check_branch
      %7182 = sbr.rel (0) target = $region97
    $region96: #{decoder_forward.1} parent=1 // pred_region
      %7184 = vsyncadd [#allocation4], 0
      %s7185 = sshll.u32 [#allocation20], 4
      %s7186 = int_to_ptr.vmem [resolvable:$true] %s7185
      %s7187 = sshll.u32 %s12, 4
      %s7188 = int_to_ptr.hbm [resolvable:$true] %s7187
      %7193 = dma.vmem_to_hbm [thread:$0]  %s7186, 512, %s7188, [#allocation4], 256, 256, 16
    $region97: #{decoder_forward.1} parent=1 // pred_fallthru
      _
    // Predicated region
    $region98: #{decoder_forward.1} parent=1 // pred_check
      _
    $region99: #{decoder_forward.1} parent=1 // pred_check_branch
      %7195 = sbr.rel (0) target = $region101
    $region100: #{decoder_forward.1} parent=1 // pred_region
      %7197 = dma.done [#allocation4], 512
    $region101: #{decoder_forward.1} parent=1 // pred_fallthru
      _
    %7198 = vsyncpa [#allocation3], 1
    %7199 = vsyncpa [#allocation6], 1
    %7200 = vsyncpa [#allocation9], 1
    %7201 = vsyncpa [#allocation12], 1
    %7202 = vsyncpa [#allocation15], 1
    %7203 = vsyncpa [#allocation18], 1
    %7204 = vsyncpa [#allocation4], 1

</llo_original>
